<compile_context>
chip_gen: v6e
topology: v6e:2x2x1
jax: 0.10.0
libtpu: 0.0.40
codegen_flags: <defaults>
</compile_context>

<pallas_src>
import functools

import numpy as np
import jax
import jax.numpy as jnp
from jax import lax
from jax.experimental import pallas as pl
from jax.experimental.pallas import tpu as pltpu


C_PAD = 128   # lane width for all intermediate stages


# ---------------------------------------------------------------------------
# Fused forward kernel (one image per grid step)
# ---------------------------------------------------------------------------
def _lenet_kernel(x_ref, w1_ref, b1_ref, w2_ref, b2_ref,
                  wf1_ref, bf1_ref, wf2_ref, bf2_ref, wf3_ref, bf3_ref,
                  o_ref, *, L1, L2, LP2, S1, PHROWS, HP2):
    f32 = jnp.float32

    # ---- conv1 + maxpool1, quadrant-packed, directly on the compact grid ---
    # x_ref rows: phase ph = (y&1)*2 + (x&1) at block ph*PHROWS, within a
    # phase row = (y//2)*S1 + (x//2).  Lane 8*q + c of `acc` accumulates the
    # conv1 pre-activation of pool-quadrant q = dy*2+dx, channel c, at compact
    # pool row py*S1 + px.  16 slices (u,v) = (dy+i, dx+j) cover all 4x9 taps.
    acc = None
    for u in range(4):
        for v in range(4):
            ph = (u & 1) * 2 + (v & 1)
            off = ph * PHROWS + (u >> 1) * S1 + (v >> 1)
            xs = x_ref[off:off + L1, :]                       # (L1, 1)
            xb = jnp.broadcast_to(xs, (L1, C_PAD))            # in-kernel bcast
            term = xb * w1_ref[u * 4 + v]                     # (L1,128)*(1,128)
            acc = term if acc is None else acc + term
    # max over the 4 pool quadrants = max over lane groups {0,8,16,24}+c
    m = jnp.maximum(jnp.maximum(acc, pltpu.roll(acc, 120, axis=1)),
                    jnp.maximum(pltpu.roll(acc, 112, axis=1),
                                pltpu.roll(acc, 104, axis=1)))
    p1 = jnp.maximum(m + b1_ref[...], 0.0)                    # (L1,128), ch 0..5

    # ---- conv2 (6 -> 16) + ReLU : ONE tap-packed MXU matmul ----------------
    # Implicit im2col: tap t=(i,j) occupies lanes 8t..8t+5 of the LHS.
    pieces = []
    for i in range(3):
        for j in range(3):
            d = i * S1 + j
            pieces.append(p1[d:d + L2, 0:8])                  # lanes 6,7 are 0
    lhs = jnp.concatenate(pieces, axis=1)                     # (L2, 72)
    c2 = jnp.dot(lhs, w2_ref[...], preferred_element_type=f32) + b2_ref[...]
    c2 = jnp.maximum(c2, 0.0)                                 # (L2,128), ch 0..15

    # ---- maxpool 2x2 (floor) on the conv2 grid -----------------------------
    p2 = jnp.maximum(jnp.maximum(c2[0:LP2, :], c2[1:1 + LP2, :]),
                     jnp.maximum(c2[S1:S1 + LP2, :],
                                 c2[S1 + 1:S1 + 1 + LP2, :])) # (LP2,128)

    # ---- fc1 (400 -> 120): single matmul on a lane-packed (1,400) row ------
    rows = []
    for py2 in range(HP2):
        for px2 in range(HP2):
            r = 2 * py2 * S1 + 2 * px2
            rows.append(p2[r:r + 1, 0:16])
    flat = jnp.concatenate(rows, axis=1)                      # (1, 400)
    f1 = jnp.maximum(jnp.dot(flat, wf1_ref[...], preferred_element_type=f32)
                     + bf1_ref[...], 0.0)                     # (1,128)

    # ---- fc2 (120 -> 84) + ReLU, fc3 (84 -> 5) + ReLU ----------------------
    f2 = jnp.maximum(jnp.dot(f1, wf2_ref[...], preferred_element_type=f32)
                     + bf2_ref[...], 0.0)
    f3 = jnp.maximum(jnp.dot(f2, wf3_ref[...], preferred_element_type=f32)
                     + bf3_ref[...], 0.0)
    o_ref[...] = f3.reshape(1, 1, C_PAD)


# ---------------------------------------------------------------------------
# One-time parameter preparation (pack / transpose / lane-pad, fold PyTorch's
# (C,H,W) flatten order into fc1's layout).  Runs eagerly, outside jit.
# ---------------------------------------------------------------------------
def prepare_params(p):
    f32 = np.float32
    g = lambda k: np.asarray(jax.device_get(p[k]), dtype=f32)

    # conv1: quadrant-packed.  Row u*4+v, lane 8*(dy*2+dx)+c holds
    # conv1_w[c, 0, u-dy, v-dx] (zero if that tap is out of the 3x3 window).
    w1 = g("conv1_w")                                         # (6,1,3,3)
    w1p = np.zeros((16, 1, C_PAD), f32)
    for u in range(4):
        for v in range(4):
            for dy in range(2):
                for dx in range(2):
                    i, j = u - dy, v - dx
                    if 0 <= i < 3 and 0 <= j < 3:
                        q = dy * 2 + dx
                        w1p[u * 4 + v, 0, 8 * q:8 * q + 6] = w1[:, 0, i, j]
    b1p = np.zeros((1, C_PAD), f32); b1p[0, :6] = g("conv1_b")

    # conv2: tap-packed.  Row 8*t + c (t = 3i+j), column o.
    w2 = g("conv2_w")                                         # (16,6,3,3)
    w2p = np.zeros((72, C_PAD), f32)
    for i in range(3):
        for j in range(3):
            t = 3 * i + j
            w2p[8 * t:8 * t + 6, :16] = w2[:, :, i, j].T
    b2p = np.zeros((1, C_PAD), f32); b2p[0, :16] = g("conv2_b")

    # fc1: row 16*k + c (k = py2*5+px2), column o  (folds PyTorch flatten).
    fc1 = g("fc1_w").reshape(120, 16, 25)                     # (o, c, k)
    wf1p = np.zeros((400, C_PAD), f32)
    wf1p[:, :120] = np.transpose(fc1, (2, 1, 0)).reshape(400, 120)
    bf1p = np.zeros((1, C_PAD), f32); bf1p[0, :120] = g("fc1_b")

    wf2p = np.zeros((C_PAD, C_PAD), f32); wf2p[:120, :84] = g("fc2_w").T
    bf2p = np.zeros((1, C_PAD), f32); bf2p[0, :84] = g("fc2_b")

    wf3p = np.zeros((C_PAD, C_PAD), f32); wf3p[:84, :5] = g("fc3_w").T
    bf3p = np.zeros((1, C_PAD), f32); bf3p[0, :5] = g("fc3_b")

    j = jnp.asarray
    return dict(w1=j(w1p), b1=j(b1p), w2=j(w2p), b2=j(b2p),
                wf1=j(wf1p), bf1=j(bf1p), wf2=j(wf2p), bf2=j(bf2p),
                wf3=j(wf3p), bf3=j(bf3p))


# ---------------------------------------------------------------------------
# Forward pass: one pallas_call, 1-D parallel grid over the batch.
# ---------------------------------------------------------------------------
@jax.jit
def net_forward(x, prepped):
    N, Cin, H, W = x.shape
    # fc1 = Linear(16*5*5, 120) pins the input to mono 28x28.
    assert Cin == 1 and H == 28 and W == 28

    PH = PW = 16                      # padded phase grid (14x14 real)
    PHROWS = PH * PW                  # 256 rows per phase, 1024 per image
    S1 = PW                           # compact pool1-grid row stride (x16)
    Hp1 = (H - 2) // 2                # 13
    Hp2 = (Hp1 - 2) // 2              # 5
    assert Hp2 == 5
    qmax = 2 * (Hp2 - 1) + 1                  # largest conv2 row/col consumed
    L2 = qmax * (S1 + 1) + 1                  # 154  conv2-output slab length
    L1 = (L2 - 1) + 2 * S1 + 2 + 1            # 188  pool1-output slab length
    LP2 = 2 * (Hp2 - 1) * (S1 + 1) + 1        # 137  pool2 (dilated) length
    # every in-kernel read of the input stays inside the per-image block
    assert 3 * PHROWS + (S1 + 1) + (L1 - 1) < 4 * PHROWS

    # Phase-split layout: row = ph*256 + (y//2)*16 + (x//2), ph = (y&1)*2+(x&1)
    xpad = jnp.pad(x[:, 0].astype(jnp.float32), ((0, 0), (0, 4), (0, 4)))
    xph = xpad.reshape(N, PH, 2, PW, 2).transpose(0, 2, 4, 1, 3)
    x_in = xph.reshape(N * 4 * PHROWS, 1)     # narrow column: ~4 KB/image DMA

    kernel = functools.partial(
        _lenet_kernel, L1=L1, L2=L2, LP2=LP2, S1=S1, PHROWS=PHROWS, HP2=Hp2)

    cspec = lambda shape: pl.BlockSpec(shape, lambda n: (0,) * len(shape))
    out = pl.pallas_call(
        kernel,
        out_shape=jax.ShapeDtypeStruct((N, 1, C_PAD), jnp.float32),
        grid=(N,),
        in_specs=[
            pl.BlockSpec((4 * PHROWS, 1), lambda n: (n, 0)),   # per-image input
            cspec((16, 1, C_PAD)),                             # w1 (packed)
            cspec((1, C_PAD)),                                 # b1
            cspec((72, C_PAD)),                                # w2 (packed)
            cspec((1, C_PAD)),                                 # b2
            cspec((400, C_PAD)),                               # wf1
            cspec((1, C_PAD)),                                 # bf1
            cspec((C_PAD, C_PAD)),                             # wf2
            cspec((1, C_PAD)),                                 # bf2
            cspec((C_PAD, C_PAD)),                             # wf3
            cspec((1, C_PAD)),                                 # bf3
        ],
        out_specs=pl.BlockSpec((1, 1, C_PAD), lambda n: (n, 0, 0)),
        compiler_params=pltpu.CompilerParams(
            dimension_semantics=("parallel",),
            vmem_limit_bytes=12 * 1024 * 1024),
    )(x_in, prepped["w1"], prepped["b1"], prepped["w2"], prepped["b2"],
      prepped["wf1"], prepped["bf1"], prepped["wf2"], prepped["bf2"],
      prepped["wf3"], prepped["bf3"])
    return out[:, 0, :5]


# ---------------------------------------------------------------------------
# Deterministic parameter init (PyTorch-style uniform(-1/sqrt(fan_in), ...))
# ---------------------------------------------------------------------------
def init_params(key):
    def u(k, shape, fan_in):
        bound = 1.0 / (fan_in ** 0.5)
        return jax.random.uniform(k, shape, jnp.float32, -bound, bound)

    ks = jax.random.split(key, 10)
    return {
        "conv1_w": u(ks[0], (6, 1, 3, 3), 1 * 3 * 3),
        "conv1_b": u(ks[1], (6,), 1 * 3 * 3),
        "conv2_w": u(ks[2], (16, 6, 3, 3), 6 * 3 * 3),
        "conv2_b": u(ks[3], (16,), 6 * 3 * 3),
        "fc1_w": u(ks[4], (120, 400), 400),
        "fc1_b": u(ks[5], (120,), 400),
        "fc2_w": u(ks[6], (84, 120), 120),
        "fc2_b": u(ks[7], (84,), 120),
        "fc3_w": u(ks[8], (5, 84), 84),
        "fc3_b": u(ks[9], (5,), 84),
    }


# Pure-JAX reference for the correctness check.
def _reference_forward(x, p):
    def conv(x, w, b):
        y = lax.conv_general_dilated(
            x, w, window_strides=(1, 1), padding="VALID",
            dimension_numbers=("NCHW", "OIHW", "NCHW"))
        return jax.nn.relu(y + b.reshape(1, -1, 1, 1))

    def pool(x):
        n, c, h, w = x.shape
        x = x[:, :, : (h // 2) * 2, : (w // 2) * 2]
        return lax.reduce_window(x, -jnp.inf, lax.max,
                                 (1, 1, 2, 2), (1, 1, 2, 2), "VALID")

    x1 = pool(conv(x, p["conv1_w"], p["conv1_b"]))
    x2 = pool(conv(x1, p["conv2_w"], p["conv2_b"]))
    f = x2.reshape(x2.shape[0], -1)
    f1 = jax.nn.relu(f @ p["fc1_w"].T + p["fc1_b"])
    f2 = jax.nn.relu(f1 @ p["fc2_w"].T + p["fc2_b"])
    return jax.nn.relu(f2 @ p["fc3_w"].T + p["fc3_b"])


if __name__ == "__main__":
    key = jax.random.PRNGKey(0)
    k_x, k_p = jax.random.split(key)
    # fc1 expects 16*5*5 features -> 28x28 single-channel input.
    x = jax.random.normal(k_x, (2, 1, 28, 28), jnp.float32)
    params = init_params(k_p)
    prepped = prepare_params(params)        # one-time layout prep (outside jit)

    out = jax.block_until_ready(net_forward(x, prepped))
    assert out.shape == (2, 5), out.shape

    ref = _reference_forward(x, params)
    assert jnp.allclose(out, ref, atol=2e-4, rtol=2e-4), \
        float(jnp.max(jnp.abs(out - ref)))

    print("KERNEL_OK")
</pallas_src>

<mosaic_0001>
module attributes {stable_mosaic.version = 11 : i64} {
  func.func @_lenet_kernel(%arg0: i32, %arg1: memref<1024x1xf32, #tpu.memory_space<vmem>>, %arg2: memref<16x1x128xf32, #tpu.memory_space<vmem>>, %arg3: memref<1x128xf32, #tpu.memory_space<vmem>>, %arg4: memref<72x128xf32, #tpu.memory_space<vmem>>, %arg5: memref<1x128xf32, #tpu.memory_space<vmem>>, %arg6: memref<400x128xf32, #tpu.memory_space<vmem>>, %arg7: memref<1x128xf32, #tpu.memory_space<vmem>>, %arg8: memref<128x128xf32, #tpu.memory_space<vmem>>, %arg9: memref<1x128xf32, #tpu.memory_space<vmem>>, %arg10: memref<128x128xf32, #tpu.memory_space<vmem>>, %arg11: memref<1x128xf32, #tpu.memory_space<vmem>>, %arg12: memref<1x1x128xf32, #tpu.memory_space<vmem>>) attributes {dimension_semantics = [#tpu.dimension_semantics<parallel>], iteration_bounds = array<i64: 2>, scalar_prefetch = 0 : i64, scratch_operands = 0 : i64, tpu.core_type = #tpu.core_type<tc>, window_params = [{transform_indices = @transform_0, window_bounds = array<i64: 1024, 1>}, {pipeline_mode = #tpu.pipeline_mode<synchronous>, transform_indices = @transform_1, window_bounds = array<i64: 16, 1, 128>}, {pipeline_mode = #tpu.pipeline_mode<synchronous>, transform_indices = @transform_2, window_bounds = array<i64: 1, 128>}, {pipeline_mode = #tpu.pipeline_mode<synchronous>, transform_indices = @transform_3, window_bounds = array<i64: 72, 128>}, {pipeline_mode = #tpu.pipeline_mode<synchronous>, transform_indices = @transform_4, window_bounds = array<i64: 1, 128>}, {pipeline_mode = #tpu.pipeline_mode<synchronous>, transform_indices = @transform_5, window_bounds = array<i64: 400, 128>}, {pipeline_mode = #tpu.pipeline_mode<synchronous>, transform_indices = @transform_6, window_bounds = array<i64: 1, 128>}, {pipeline_mode = #tpu.pipeline_mode<synchronous>, transform_indices = @transform_7, window_bounds = array<i64: 128, 128>}, {pipeline_mode = #tpu.pipeline_mode<synchronous>, transform_indices = @transform_8, window_bounds = array<i64: 1, 128>}, {pipeline_mode = #tpu.pipeline_mode<synchronous>, transform_indices = @transform_9, window_bounds = array<i64: 128, 128>}, {pipeline_mode = #tpu.pipeline_mode<synchronous>, transform_indices = @transform_10, window_bounds = array<i64: 1, 128>}, {transform_indices = @transform_11, window_bounds = array<i64: 1, 1, 128>}]} {
    %c0 = arith.constant 0 : index
    %c0_0 = arith.constant 0 : index
    %0 = vector.load %arg1[%c0, %c0_0] : memref<1024x1xf32, #tpu.memory_space<vmem>>, vector<188x1xf32>
    %1 = vector.shape_cast %0 : vector<188x1xf32> to vector<188x1xf32>
    %2 = vector.broadcast %1 : vector<188x1xf32> to vector<188x128xf32>
    %c0_1 = arith.constant 0 : index
    %c0_2 = arith.constant 0 : index
    %c0_3 = arith.constant 0 : index
    %3 = vector.load %arg2[%c0_1, %c0_2, %c0_3] : memref<16x1x128xf32, #tpu.memory_space<vmem>>, vector<1x1x128xf32>
    %4 = vector.shape_cast %3 : vector<1x1x128xf32> to vector<1x128xf32>
    %5 = vector.broadcast %4 : vector<1x128xf32> to vector<188x128xf32>
    %6 = arith.mulf %2, %5 : vector<188x128xf32>
    %c256 = arith.constant 256 : index
    %c0_4 = arith.constant 0 : index
    %7 = vector.load %arg1[%c256, %c0_4] : memref<1024x1xf32, #tpu.memory_space<vmem>>, vector<188x1xf32>
    %8 = vector.shape_cast %7 : vector<188x1xf32> to vector<188x1xf32>
    %9 = vector.broadcast %8 : vector<188x1xf32> to vector<188x128xf32>
    %c1 = arith.constant 1 : index
    %c0_5 = arith.constant 0 : index
    %c0_6 = arith.constant 0 : index
    %10 = vector.load %arg2[%c1, %c0_5, %c0_6] : memref<16x1x128xf32, #tpu.memory_space<vmem>>, vector<1x1x128xf32>
    %11 = vector.shape_cast %10 : vector<1x1x128xf32> to vector<1x128xf32>
    %12 = vector.broadcast %11 : vector<1x128xf32> to vector<188x128xf32>
    %13 = arith.mulf %9, %12 : vector<188x128xf32>
    %14 = arith.addf %6, %13 : vector<188x128xf32>
    %c1_7 = arith.constant 1 : index
    %c0_8 = arith.constant 0 : index
    %15 = vector.load %arg1[%c1_7, %c0_8] : memref<1024x1xf32, #tpu.memory_space<vmem>>, vector<188x1xf32>
    %16 = vector.shape_cast %15 : vector<188x1xf32> to vector<188x1xf32>
    %17 = vector.broadcast %16 : vector<188x1xf32> to vector<188x128xf32>
    %c2 = arith.constant 2 : index
    %c0_9 = arith.constant 0 : index
    %c0_10 = arith.constant 0 : index
    %18 = vector.load %arg2[%c2, %c0_9, %c0_10] : memref<16x1x128xf32, #tpu.memory_space<vmem>>, vector<1x1x128xf32>
    %19 = vector.shape_cast %18 : vector<1x1x128xf32> to vector<1x128xf32>
    %20 = vector.broadcast %19 : vector<1x128xf32> to vector<188x128xf32>
    %21 = arith.mulf %17, %20 : vector<188x128xf32>
    %22 = arith.addf %14, %21 : vector<188x128xf32>
    %c257 = arith.constant 257 : index
    %c0_11 = arith.constant 0 : index
    %23 = vector.load %arg1[%c257, %c0_11] : memref<1024x1xf32, #tpu.memory_space<vmem>>, vector<188x1xf32>
    %24 = vector.shape_cast %23 : vector<188x1xf32> to vector<188x1xf32>
    %25 = vector.broadcast %24 : vector<188x1xf32> to vector<188x128xf32>
    %c3 = arith.constant 3 : index
    %c0_12 = arith.constant 0 : index
    %c0_13 = arith.constant 0 : index
    %26 = vector.load %arg2[%c3, %c0_12, %c0_13] : memref<16x1x128xf32, #tpu.memory_space<vmem>>, vector<1x1x128xf32>
    %27 = vector.shape_cast %26 : vector<1x1x128xf32> to vector<1x128xf32>
    %28 = vector.broadcast %27 : vector<1x128xf32> to vector<188x128xf32>
    %29 = arith.mulf %25, %28 : vector<188x128xf32>
    %30 = arith.addf %22, %29 : vector<188x128xf32>
    %c512 = arith.constant 512 : index
    %c0_14 = arith.constant 0 : index
    %31 = vector.load %arg1[%c512, %c0_14] : memref<1024x1xf32, #tpu.memory_space<vmem>>, vector<188x1xf32>
    %32 = vector.shape_cast %31 : vector<188x1xf32> to vector<188x1xf32>
    %33 = vector.broadcast %32 : vector<188x1xf32> to vector<188x128xf32>
    %c4 = arith.constant 4 : index
    %c0_15 = arith.constant 0 : index
    %c0_16 = arith.constant 0 : index
    %34 = vector.load %arg2[%c4, %c0_15, %c0_16] : memref<16x1x128xf32, #tpu.memory_space<vmem>>, vector<1x1x128xf32>
    %35 = vector.shape_cast %34 : vector<1x1x128xf32> to vector<1x128xf32>
    %36 = vector.broadcast %35 : vector<1x128xf32> to vector<188x128xf32>
    %37 = arith.mulf %33, %36 : vector<188x128xf32>
    %38 = arith.addf %30, %37 : vector<188x128xf32>
    %c768 = arith.constant 768 : index
    %c0_17 = arith.constant 0 : index
    %39 = vector.load %arg1[%c768, %c0_17] : memref<1024x1xf32, #tpu.memory_space<vmem>>, vector<188x1xf32>
    %40 = vector.shape_cast %39 : vector<188x1xf32> to vector<188x1xf32>
    %41 = vector.broadcast %40 : vector<188x1xf32> to vector<188x128xf32>
    %c5 = arith.constant 5 : index
    %c0_18 = arith.constant 0 : index
    %c0_19 = arith.constant 0 : index
    %42 = vector.load %arg2[%c5, %c0_18, %c0_19] : memref<16x1x128xf32, #tpu.memory_space<vmem>>, vector<1x1x128xf32>
    %43 = vector.shape_cast %42 : vector<1x1x128xf32> to vector<1x128xf32>
    %44 = vector.broadcast %43 : vector<1x128xf32> to vector<188x128xf32>
    %45 = arith.mulf %41, %44 : vector<188x128xf32>
    %46 = arith.addf %38, %45 : vector<188x128xf32>
    %c513 = arith.constant 513 : index
    %c0_20 = arith.constant 0 : index
    %47 = vector.load %arg1[%c513, %c0_20] : memref<1024x1xf32, #tpu.memory_space<vmem>>, vector<188x1xf32>
    %48 = vector.shape_cast %47 : vector<188x1xf32> to vector<188x1xf32>
    %49 = vector.broadcast %48 : vector<188x1xf32> to vector<188x128xf32>
    %c6 = arith.constant 6 : index
    %c0_21 = arith.constant 0 : index
    %c0_22 = arith.constant 0 : index
    %50 = vector.load %arg2[%c6, %c0_21, %c0_22] : memref<16x1x128xf32, #tpu.memory_space<vmem>>, vector<1x1x128xf32>
    %51 = vector.shape_cast %50 : vector<1x1x128xf32> to vector<1x128xf32>
    %52 = vector.broadcast %51 : vector<1x128xf32> to vector<188x128xf32>
    %53 = arith.mulf %49, %52 : vector<188x128xf32>
    %54 = arith.addf %46, %53 : vector<188x128xf32>
    %c769 = arith.constant 769 : index
    %c0_23 = arith.constant 0 : index
    %55 = vector.load %arg1[%c769, %c0_23] : memref<1024x1xf32, #tpu.memory_space<vmem>>, vector<188x1xf32>
    %56 = vector.shape_cast %55 : vector<188x1xf32> to vector<188x1xf32>
    %57 = vector.broadcast %56 : vector<188x1xf32> to vector<188x128xf32>
    %c7 = arith.constant 7 : index
    %c0_24 = arith.constant 0 : index
    %c0_25 = arith.constant 0 : index
    %58 = vector.load %arg2[%c7, %c0_24, %c0_25] : memref<16x1x128xf32, #tpu.memory_space<vmem>>, vector<1x1x128xf32>
    %59 = vector.shape_cast %58 : vector<1x1x128xf32> to vector<1x128xf32>
    %60 = vector.broadcast %59 : vector<1x128xf32> to vector<188x128xf32>
    %61 = arith.mulf %57, %60 : vector<188x128xf32>
    %62 = arith.addf %54, %61 : vector<188x128xf32>
    %c16 = arith.constant 16 : index
    %c0_26 = arith.constant 0 : index
    %63 = vector.load %arg1[%c16, %c0_26] : memref<1024x1xf32, #tpu.memory_space<vmem>>, vector<188x1xf32>
    %64 = vector.shape_cast %63 : vector<188x1xf32> to vector<188x1xf32>
    %65 = vector.broadcast %64 : vector<188x1xf32> to vector<188x128xf32>
    %c8 = arith.constant 8 : index
    %c0_27 = arith.constant 0 : index
    %c0_28 = arith.constant 0 : index
    %66 = vector.load %arg2[%c8, %c0_27, %c0_28] : memref<16x1x128xf32, #tpu.memory_space<vmem>>, vector<1x1x128xf32>
    %67 = vector.shape_cast %66 : vector<1x1x128xf32> to vector<1x128xf32>
    %68 = vector.broadcast %67 : vector<1x128xf32> to vector<188x128xf32>
    %69 = arith.mulf %65, %68 : vector<188x128xf32>
    %70 = arith.addf %62, %69 : vector<188x128xf32>
    %c272 = arith.constant 272 : index
    %c0_29 = arith.constant 0 : index
    %71 = vector.load %arg1[%c272, %c0_29] : memref<1024x1xf32, #tpu.memory_space<vmem>>, vector<188x1xf32>
    %72 = vector.shape_cast %71 : vector<188x1xf32> to vector<188x1xf32>
    %73 = vector.broadcast %72 : vector<188x1xf32> to vector<188x128xf32>
    %c9 = arith.constant 9 : index
    %c0_30 = arith.constant 0 : index
    %c0_31 = arith.constant 0 : index
    %74 = vector.load %arg2[%c9, %c0_30, %c0_31] : memref<16x1x128xf32, #tpu.memory_space<vmem>>, vector<1x1x128xf32>
    %75 = vector.shape_cast %74 : vector<1x1x128xf32> to vector<1x128xf32>
    %76 = vector.broadcast %75 : vector<1x128xf32> to vector<188x128xf32>
    %77 = arith.mulf %73, %76 : vector<188x128xf32>
    %78 = arith.addf %70, %77 : vector<188x128xf32>
    %c17 = arith.constant 17 : index
    %c0_32 = arith.constant 0 : index
    %79 = vector.load %arg1[%c17, %c0_32] : memref<1024x1xf32, #tpu.memory_space<vmem>>, vector<188x1xf32>
    %80 = vector.shape_cast %79 : vector<188x1xf32> to vector<188x1xf32>
    %81 = vector.broadcast %80 : vector<188x1xf32> to vector<188x128xf32>
    %c10 = arith.constant 10 : index
    %c0_33 = arith.constant 0 : index
    %c0_34 = arith.constant 0 : index
    %82 = vector.load %arg2[%c10, %c0_33, %c0_34] : memref<16x1x128xf32, #tpu.memory_space<vmem>>, vector<1x1x128xf32>
    %83 = vector.shape_cast %82 : vector<1x1x128xf32> to vector<1x128xf32>
    %84 = vector.broadcast %83 : vector<1x128xf32> to vector<188x128xf32>
    %85 = arith.mulf %81, %84 : vector<188x128xf32>
    %86 = arith.addf %78, %85 : vector<188x128xf32>
    %c273 = arith.constant 273 : index
    %c0_35 = arith.constant 0 : index
    %87 = vector.load %arg1[%c273, %c0_35] : memref<1024x1xf32, #tpu.memory_space<vmem>>, vector<188x1xf32>
    %88 = vector.shape_cast %87 : vector<188x1xf32> to vector<188x1xf32>
    %89 = vector.broadcast %88 : vector<188x1xf32> to vector<188x128xf32>
    %c11 = arith.constant 11 : index
    %c0_36 = arith.constant 0 : index
    %c0_37 = arith.constant 0 : index
    %90 = vector.load %arg2[%c11, %c0_36, %c0_37] : memref<16x1x128xf32, #tpu.memory_space<vmem>>, vector<1x1x128xf32>
    %91 = vector.shape_cast %90 : vector<1x1x128xf32> to vector<1x128xf32>
    %92 = vector.broadcast %91 : vector<1x128xf32> to vector<188x128xf32>
    %93 = arith.mulf %89, %92 : vector<188x128xf32>
    %94 = arith.addf %86, %93 : vector<188x128xf32>
    %c528 = arith.constant 528 : index
    %c0_38 = arith.constant 0 : index
    %95 = vector.load %arg1[%c528, %c0_38] : memref<1024x1xf32, #tpu.memory_space<vmem>>, vector<188x1xf32>
    %96 = vector.shape_cast %95 : vector<188x1xf32> to vector<188x1xf32>
    %97 = vector.broadcast %96 : vector<188x1xf32> to vector<188x128xf32>
    %c12 = arith.constant 12 : index
    %c0_39 = arith.constant 0 : index
    %c0_40 = arith.constant 0 : index
    %98 = vector.load %arg2[%c12, %c0_39, %c0_40] : memref<16x1x128xf32, #tpu.memory_space<vmem>>, vector<1x1x128xf32>
    %99 = vector.shape_cast %98 : vector<1x1x128xf32> to vector<1x128xf32>
    %100 = vector.broadcast %99 : vector<1x128xf32> to vector<188x128xf32>
    %101 = arith.mulf %97, %100 : vector<188x128xf32>
    %102 = arith.addf %94, %101 : vector<188x128xf32>
    %c784 = arith.constant 784 : index
    %c0_41 = arith.constant 0 : index
    %103 = vector.load %arg1[%c784, %c0_41] : memref<1024x1xf32, #tpu.memory_space<vmem>>, vector<188x1xf32>
    %104 = vector.shape_cast %103 : vector<188x1xf32> to vector<188x1xf32>
    %105 = vector.broadcast %104 : vector<188x1xf32> to vector<188x128xf32>
    %c13 = arith.constant 13 : index
    %c0_42 = arith.constant 0 : index
    %c0_43 = arith.constant 0 : index
    %106 = vector.load %arg2[%c13, %c0_42, %c0_43] : memref<16x1x128xf32, #tpu.memory_space<vmem>>, vector<1x1x128xf32>
    %107 = vector.shape_cast %106 : vector<1x1x128xf32> to vector<1x128xf32>
    %108 = vector.broadcast %107 : vector<1x128xf32> to vector<188x128xf32>
    %109 = arith.mulf %105, %108 : vector<188x128xf32>
    %110 = arith.addf %102, %109 : vector<188x128xf32>
    %c529 = arith.constant 529 : index
    %c0_44 = arith.constant 0 : index
    %111 = vector.load %arg1[%c529, %c0_44] : memref<1024x1xf32, #tpu.memory_space<vmem>>, vector<188x1xf32>
    %112 = vector.shape_cast %111 : vector<188x1xf32> to vector<188x1xf32>
    %113 = vector.broadcast %112 : vector<188x1xf32> to vector<188x128xf32>
    %c14 = arith.constant 14 : index
    %c0_45 = arith.constant 0 : index
    %c0_46 = arith.constant 0 : index
    %114 = vector.load %arg2[%c14, %c0_45, %c0_46] : memref<16x1x128xf32, #tpu.memory_space<vmem>>, vector<1x1x128xf32>
    %115 = vector.shape_cast %114 : vector<1x1x128xf32> to vector<1x128xf32>
    %116 = vector.broadcast %115 : vector<1x128xf32> to vector<188x128xf32>
    %117 = arith.mulf %113, %116 : vector<188x128xf32>
    %118 = arith.addf %110, %117 : vector<188x128xf32>
    %c785 = arith.constant 785 : index
    %c0_47 = arith.constant 0 : index
    %119 = vector.load %arg1[%c785, %c0_47] : memref<1024x1xf32, #tpu.memory_space<vmem>>, vector<188x1xf32>
    %120 = vector.shape_cast %119 : vector<188x1xf32> to vector<188x1xf32>
    %121 = vector.broadcast %120 : vector<188x1xf32> to vector<188x128xf32>
    %c15 = arith.constant 15 : index
    %c0_48 = arith.constant 0 : index
    %c0_49 = arith.constant 0 : index
    %122 = vector.load %arg2[%c15, %c0_48, %c0_49] : memref<16x1x128xf32, #tpu.memory_space<vmem>>, vector<1x1x128xf32>
    %123 = vector.shape_cast %122 : vector<1x1x128xf32> to vector<1x128xf32>
    %124 = vector.broadcast %123 : vector<1x128xf32> to vector<188x128xf32>
    %125 = arith.mulf %121, %124 : vector<188x128xf32>
    %126 = arith.addf %118, %125 : vector<188x128xf32>
    %c120_i32 = arith.constant 120 : i32
    %127 = tpu.dynamic_rotate %126 by %c120_i32 dim 1 : vector<188x128xf32>, i32 -> vector<188x128xf32>
    %128 = arith.maximumf %126, %127 : vector<188x128xf32>
    %c112_i32 = arith.constant 112 : i32
    %129 = tpu.dynamic_rotate %126 by %c112_i32 dim 1 : vector<188x128xf32>, i32 -> vector<188x128xf32>
    %c104_i32 = arith.constant 104 : i32
    %130 = tpu.dynamic_rotate %126 by %c104_i32 dim 1 : vector<188x128xf32>, i32 -> vector<188x128xf32>
    %131 = arith.maximumf %129, %130 : vector<188x128xf32>
    %132 = arith.maximumf %128, %131 : vector<188x128xf32>
    %c0_50 = arith.constant 0 : index
    %c0_51 = arith.constant 0 : index
    %133 = vector.load %arg3[%c0_50, %c0_51] : memref<1x128xf32, #tpu.memory_space<vmem>>, vector<1x128xf32>
    %134 = vector.broadcast %133 : vector<1x128xf32> to vector<188x128xf32>
    %135 = arith.addf %132, %134 : vector<188x128xf32>
    %cst = arith.constant 0.000000e+00 : f32
    %136 = vector.broadcast %cst : f32 to vector<188x128xf32>
    %137 = arith.maximumf %135, %136 : vector<188x128xf32>
    %138 = vector.extract_strided_slice %137 {offsets = [0, 0], sizes = [154, 8], strides = [1, 1]} : vector<188x128xf32> to vector<154x8xf32>
    %139 = vector.extract_strided_slice %137 {offsets = [1, 0], sizes = [154, 8], strides = [1, 1]} : vector<188x128xf32> to vector<154x8xf32>
    %140 = vector.extract_strided_slice %137 {offsets = [2, 0], sizes = [154, 8], strides = [1, 1]} : vector<188x128xf32> to vector<154x8xf32>
    %141 = vector.extract_strided_slice %137 {offsets = [16, 0], sizes = [154, 8], strides = [1, 1]} : vector<188x128xf32> to vector<154x8xf32>
    %142 = vector.extract_strided_slice %137 {offsets = [17, 0], sizes = [154, 8], strides = [1, 1]} : vector<188x128xf32> to vector<154x8xf32>
    %143 = vector.extract_strided_slice %137 {offsets = [18, 0], sizes = [154, 8], strides = [1, 1]} : vector<188x128xf32> to vector<154x8xf32>
    %144 = vector.extract_strided_slice %137 {offsets = [32, 0], sizes = [154, 8], strides = [1, 1]} : vector<188x128xf32> to vector<154x8xf32>
    %145 = vector.extract_strided_slice %137 {offsets = [33, 0], sizes = [154, 8], strides = [1, 1]} : vector<188x128xf32> to vector<154x8xf32>
    %146 = vector.extract_strided_slice %137 {offsets = [34, 0], sizes = [154, 8], strides = [1, 1]} : vector<188x128xf32> to vector<154x8xf32>
    %147 = tpu.concatenate %138, %139, %140, %141, %142, %143, %144, %145, %146 in 1 : vector<154x8xf32>, vector<154x8xf32>, vector<154x8xf32>, vector<154x8xf32>, vector<154x8xf32>, vector<154x8xf32>, vector<154x8xf32>, vector<154x8xf32>, vector<154x8xf32> -> vector<154x72xf32>
    %c0_52 = arith.constant 0 : index
    %c0_53 = arith.constant 0 : index
    %148 = vector.load %arg4[%c0_52, %c0_53] : memref<72x128xf32, #tpu.memory_space<vmem>>, vector<72x128xf32>
    %cst_54 = arith.constant dense<0.000000e+00> : vector<154x128xf32>
    %149 = tpu.matmul %147, %148, %cst_54 {dimension_numbers = #tpu.dot_dimension_numbers<[1], [0], [0], [1], [0, 0, 1, 1], [], []>} : vector<154x72xf32>, vector<72x128xf32>, vector<154x128xf32> -> vector<154x128xf32>
    %c0_55 = arith.constant 0 : index
    %c0_56 = arith.constant 0 : index
    %150 = vector.load %arg5[%c0_55, %c0_56] : memref<1x128xf32, #tpu.memory_space<vmem>>, vector<1x128xf32>
    %151 = vector.broadcast %150 : vector<1x128xf32> to vector<154x128xf32>
    %152 = arith.addf %149, %151 : vector<154x128xf32>
    %cst_57 = arith.constant 0.000000e+00 : f32
    %153 = vector.broadcast %cst_57 : f32 to vector<154x128xf32>
    %154 = arith.maximumf %152, %153 : vector<154x128xf32>
    %155 = vector.extract_strided_slice %154 {offsets = [0, 0], sizes = [137, 128], strides = [1, 1]} : vector<154x128xf32> to vector<137x128xf32>
    %156 = vector.extract_strided_slice %154 {offsets = [1, 0], sizes = [137, 128], strides = [1, 1]} : vector<154x128xf32> to vector<137x128xf32>
    %157 = arith.maximumf %155, %156 : vector<137x128xf32>
    %158 = vector.extract_strided_slice %154 {offsets = [16, 0], sizes = [137, 128], strides = [1, 1]} : vector<154x128xf32> to vector<137x128xf32>
    %159 = vector.extract_strided_slice %154 {offsets = [17, 0], sizes = [137, 128], strides = [1, 1]} : vector<154x128xf32> to vector<137x128xf32>
    %160 = arith.maximumf %158, %159 : vector<137x128xf32>
    %161 = arith.maximumf %157, %160 : vector<137x128xf32>
    %162 = vector.extract_strided_slice %161 {offsets = [0, 0], sizes = [1, 16], strides = [1, 1]} : vector<137x128xf32> to vector<1x16xf32>
    %163 = vector.extract_strided_slice %161 {offsets = [2, 0], sizes = [1, 16], strides = [1, 1]} : vector<137x128xf32> to vector<1x16xf32>
    %164 = vector.extract_strided_slice %161 {offsets = [4, 0], sizes = [1, 16], strides = [1, 1]} : vector<137x128xf32> to vector<1x16xf32>
    %165 = vector.extract_strided_slice %161 {offsets = [6, 0], sizes = [1, 16], strides = [1, 1]} : vector<137x128xf32> to vector<1x16xf32>
    %166 = vector.extract_strided_slice %161 {offsets = [8, 0], sizes = [1, 16], strides = [1, 1]} : vector<137x128xf32> to vector<1x16xf32>
    %167 = vector.extract_strided_slice %161 {offsets = [32, 0], sizes = [1, 16], strides = [1, 1]} : vector<137x128xf32> to vector<1x16xf32>
    %168 = vector.extract_strided_slice %161 {offsets = [34, 0], sizes = [1, 16], strides = [1, 1]} : vector<137x128xf32> to vector<1x16xf32>
    %169 = vector.extract_strided_slice %161 {offsets = [36, 0], sizes = [1, 16], strides = [1, 1]} : vector<137x128xf32> to vector<1x16xf32>
    %170 = vector.extract_strided_slice %161 {offsets = [38, 0], sizes = [1, 16], strides = [1, 1]} : vector<137x128xf32> to vector<1x16xf32>
    %171 = vector.extract_strided_slice %161 {offsets = [40, 0], sizes = [1, 16], strides = [1, 1]} : vector<137x128xf32> to vector<1x16xf32>
    %172 = vector.extract_strided_slice %161 {offsets = [64, 0], sizes = [1, 16], strides = [1, 1]} : vector<137x128xf32> to vector<1x16xf32>
    %173 = vector.extract_strided_slice %161 {offsets = [66, 0], sizes = [1, 16], strides = [1, 1]} : vector<137x128xf32> to vector<1x16xf32>
    %174 = vector.extract_strided_slice %161 {offsets = [68, 0], sizes = [1, 16], strides = [1, 1]} : vector<137x128xf32> to vector<1x16xf32>
    %175 = vector.extract_strided_slice %161 {offsets = [70, 0], sizes = [1, 16], strides = [1, 1]} : vector<137x128xf32> to vector<1x16xf32>
    %176 = vector.extract_strided_slice %161 {offsets = [72, 0], sizes = [1, 16], strides = [1, 1]} : vector<137x128xf32> to vector<1x16xf32>
    %177 = vector.extract_strided_slice %161 {offsets = [96, 0], sizes = [1, 16], strides = [1, 1]} : vector<137x128xf32> to vector<1x16xf32>
    %178 = vector.extract_strided_slice %161 {offsets = [98, 0], sizes = [1, 16], strides = [1, 1]} : vector<137x128xf32> to vector<1x16xf32>
    %179 = vector.extract_strided_slice %161 {offsets = [100, 0], sizes = [1, 16], strides = [1, 1]} : vector<137x128xf32> to vector<1x16xf32>
    %180 = vector.extract_strided_slice %161 {offsets = [102, 0], sizes = [1, 16], strides = [1, 1]} : vector<137x128xf32> to vector<1x16xf32>
    %181 = vector.extract_strided_slice %161 {offsets = [104, 0], sizes = [1, 16], strides = [1, 1]} : vector<137x128xf32> to vector<1x16xf32>
    %182 = vector.extract_strided_slice %161 {offsets = [128, 0], sizes = [1, 16], strides = [1, 1]} : vector<137x128xf32> to vector<1x16xf32>
    %183 = vector.extract_strided_slice %161 {offsets = [130, 0], sizes = [1, 16], strides = [1, 1]} : vector<137x128xf32> to vector<1x16xf32>
    %184 = vector.extract_strided_slice %161 {offsets = [132, 0], sizes = [1, 16], strides = [1, 1]} : vector<137x128xf32> to vector<1x16xf32>
    %185 = vector.extract_strided_slice %161 {offsets = [134, 0], sizes = [1, 16], strides = [1, 1]} : vector<137x128xf32> to vector<1x16xf32>
    %186 = vector.extract_strided_slice %161 {offsets = [136, 0], sizes = [1, 16], strides = [1, 1]} : vector<137x128xf32> to vector<1x16xf32>
    %187 = tpu.concatenate %162, %163, %164, %165, %166, %167, %168, %169, %170, %171, %172, %173, %174, %175, %176, %177 in 1 : vector<1x16xf32>, vector<1x16xf32>, vector<1x16xf32>, vector<1x16xf32>, vector<1x16xf32>, vector<1x16xf32>, vector<1x16xf32>, vector<1x16xf32>, vector<1x16xf32>, vector<1x16xf32>, vector<1x16xf32>, vector<1x16xf32>, vector<1x16xf32>, vector<1x16xf32>, vector<1x16xf32>, vector<1x16xf32> -> vector<1x256xf32>
    %188 = tpu.concatenate %178, %179, %180, %181, %182, %183, %184, %185, %186 in 1 : vector<1x16xf32>, vector<1x16xf32>, vector<1x16xf32>, vector<1x16xf32>, vector<1x16xf32>, vector<1x16xf32>, vector<1x16xf32>, vector<1x16xf32>, vector<1x16xf32> -> vector<1x144xf32>
    %189 = tpu.concatenate %187, %188 in 1 : vector<1x256xf32>, vector<1x144xf32> -> vector<1x400xf32>
    %c0_58 = arith.constant 0 : index
    %c0_59 = arith.constant 0 : index
    %190 = vector.load %arg6[%c0_58, %c0_59] : memref<400x128xf32, #tpu.memory_space<vmem>>, vector<400x128xf32>
    %cst_60 = arith.constant dense<0.000000e+00> : vector<1x128xf32>
    %191 = tpu.matmul %189, %190, %cst_60 {dimension_numbers = #tpu.dot_dimension_numbers<[1], [0], [0], [1], [0, 0, 1, 1], [], []>} : vector<1x400xf32>, vector<400x128xf32>, vector<1x128xf32> -> vector<1x128xf32>
    %c0_61 = arith.constant 0 : index
    %c0_62 = arith.constant 0 : index
    %192 = vector.load %arg7[%c0_61, %c0_62] : memref<1x128xf32, #tpu.memory_space<vmem>>, vector<1x128xf32>
    %193 = arith.addf %191, %192 : vector<1x128xf32>
    %cst_63 = arith.constant 0.000000e+00 : f32
    %194 = vector.broadcast %cst_63 : f32 to vector<1x128xf32>
    %195 = arith.maximumf %193, %194 : vector<1x128xf32>
    %c0_64 = arith.constant 0 : index
    %c0_65 = arith.constant 0 : index
    %196 = vector.load %arg8[%c0_64, %c0_65] : memref<128x128xf32, #tpu.memory_space<vmem>>, vector<128x128xf32>
    %cst_66 = arith.constant dense<0.000000e+00> : vector<1x128xf32>
    %197 = tpu.matmul %195, %196, %cst_66 {dimension_numbers = #tpu.dot_dimension_numbers<[1], [0], [0], [1], [0, 0, 1, 1], [], []>} : vector<1x128xf32>, vector<128x128xf32>, vector<1x128xf32> -> vector<1x128xf32>
    %c0_67 = arith.constant 0 : index
    %c0_68 = arith.constant 0 : index
    %198 = vector.load %arg9[%c0_67, %c0_68] : memref<1x128xf32, #tpu.memory_space<vmem>>, vector<1x128xf32>
    %199 = arith.addf %197, %198 : vector<1x128xf32>
    %cst_69 = arith.constant 0.000000e+00 : f32
    %200 = vector.broadcast %cst_69 : f32 to vector<1x128xf32>
    %201 = arith.maximumf %199, %200 : vector<1x128xf32>
    %c0_70 = arith.constant 0 : index
    %c0_71 = arith.constant 0 : index
    %202 = vector.load %arg10[%c0_70, %c0_71] : memref<128x128xf32, #tpu.memory_space<vmem>>, vector<128x128xf32>
    %cst_72 = arith.constant dense<0.000000e+00> : vector<1x128xf32>
    %203 = tpu.matmul %201, %202, %cst_72 {dimension_numbers = #tpu.dot_dimension_numbers<[1], [0], [0], [1], [0, 0, 1, 1], [], []>} : vector<1x128xf32>, vector<128x128xf32>, vector<1x128xf32> -> vector<1x128xf32>
    %c0_73 = arith.constant 0 : index
    %c0_74 = arith.constant 0 : index
    %204 = vector.load %arg11[%c0_73, %c0_74] : memref<1x128xf32, #tpu.memory_space<vmem>>, vector<1x128xf32>
    %205 = arith.addf %203, %204 : vector<1x128xf32>
    %cst_75 = arith.constant 0.000000e+00 : f32
    %206 = vector.broadcast %cst_75 : f32 to vector<1x128xf32>
    %207 = arith.maximumf %205, %206 : vector<1x128xf32>
    %208 = vector.shape_cast %207 : vector<1x128xf32> to vector<1x1x128xf32>
    %c0_76 = arith.constant 0 : index
    %c0_77 = arith.constant 0 : index
    %c0_78 = arith.constant 0 : index
    %209 = vector.load %arg12[%c0_76, %c0_77, %c0_78] : memref<1x1x128xf32, #tpu.memory_space<vmem>>, vector<1x1x128xf32>
    tpu.vector_store %arg12[%c0_76, %c0_77, %c0_78], %208 {strides = array<i32>} : memref<1x1x128xf32, #tpu.memory_space<vmem>>, vector<1x1x128xf32>,
    return
  }
  func.func @transform_0(%arg0: i32) -> (i32, i32) {
    %c0_i32 = arith.constant 0 : i32
    %c0_i32_0 = arith.constant 0 : i32
    return %arg0, %c0_i32 : i32, i32
  }
  func.func @transform_1(%arg0: i32) -> (i32, i32, i32) {
    %c0_i32 = arith.constant 0 : i32
    %c0_i32_0 = arith.constant 0 : i32
    %c0_i32_1 = arith.constant 0 : i32
    %c0_i32_2 = arith.constant 0 : i32
    return %c0_i32, %c0_i32_0, %c0_i32_1 : i32, i32, i32
  }
  func.func @transform_2(%arg0: i32) -> (i32, i32) {
    %c0_i32 = arith.constant 0 : i32
    %c0_i32_0 = arith.constant 0 : i32
    %c0_i32_1 = arith.constant 0 : i32
    return %c0_i32, %c0_i32_0 : i32, i32
  }
  func.func @transform_3(%arg0: i32) -> (i32, i32) {
    %c0_i32 = arith.constant 0 : i32
    %c0_i32_0 = arith.constant 0 : i32
    %c0_i32_1 = arith.constant 0 : i32
    return %c0_i32, %c0_i32_0 : i32, i32
  }
  func.func @transform_4(%arg0: i32) -> (i32, i32) {
    %c0_i32 = arith.constant 0 : i32
    %c0_i32_0 = arith.constant 0 : i32
    %c0_i32_1 = arith.constant 0 : i32
    return %c0_i32, %c0_i32_0 : i32, i32
  }
  func.func @transform_5(%arg0: i32) -> (i32, i32) {
    %c0_i32 = arith.constant 0 : i32
    %c0_i32_0 = arith.constant 0 : i32
    %c0_i32_1 = arith.constant 0 : i32
    return %c0_i32, %c0_i32_0 : i32, i32
  }
  func.func @transform_6(%arg0: i32) -> (i32, i32) {
    %c0_i32 = arith.constant 0 : i32
    %c0_i32_0 = arith.constant 0 : i32
    %c0_i32_1 = arith.constant 0 : i32
    return %c0_i32, %c0_i32_0 : i32, i32
  }
  func.func @transform_7(%arg0: i32) -> (i32, i32) {
    %c0_i32 = arith.constant 0 : i32
    %c0_i32_0 = arith.constant 0 : i32
    %c0_i32_1 = arith.constant 0 : i32
    return %c0_i32, %c0_i32_0 : i32, i32
  }
  func.func @transform_8(%arg0: i32) -> (i32, i32) {
    %c0_i32 = arith.constant 0 : i32
    %c0_i32_0 = arith.constant 0 : i32
    %c0_i32_1 = arith.constant 0 : i32
    return %c0_i32, %c0_i32_0 : i32, i32
  }
  func.func @transform_9(%arg0: i32) -> (i32, i32) {
    %c0_i32 = arith.constant 0 : i32
    %c0_i32_0 = arith.constant 0 : i32
    %c0_i32_1 = arith.constant 0 : i32
    return %c0_i32, %c0_i32_0 : i32, i32
  }
  func.func @transform_10(%arg0: i32) -> (i32, i32) {
    %c0_i32 = arith.constant 0 : i32
    %c0_i32_0 = arith.constant 0 : i32
    %c0_i32_1 = arith.constant 0 : i32
    return %c0_i32, %c0_i32_0 : i32, i32
  }
  func.func @transform_11(%arg0: i32) -> (i32, i32, i32) {
    %c0_i32 = arith.constant 0 : i32
    %c0_i32_0 = arith.constant 0 : i32
    %c0_i32_1 = arith.constant 0 : i32
    return %arg0, %c0_i32, %c0_i32_0 : i32, i32, i32
  }
}

</mosaic_0001>

<llo_original>
// kernel: net_forward.1
$region0: #{net_forward.1}
  #allocation0 [shape = 'u32[]', space=smem, size = 0x4, offset = 0x4, fixed_abs, tag = 'smem constant byte address 0x4 - core index']
  #allocation1 [shape = 'u32[144,128]{1,0:T(1,128)}', space=vmem, size = 0x12000, scoped, tag = 'internal scratch']
  %s0 = inlined_call_operand.vmem [shape: f32[2048,1], index: 0, kind: input, shape index: {}]
  %s1 = inlined_call_operand.vmem [shape: f32[16,1,128], index: 1, kind: input, shape index: {}]
  %s2 = inlined_call_operand.vmem [shape: f32[1,128], index: 2, kind: input, shape index: {}]
  %s3 = inlined_call_operand.vmem [shape: f32[72,128], index: 3, kind: input, shape index: {}]
  %s4 = inlined_call_operand.vmem [shape: f32[1,128], index: 4, kind: input, shape index: {}]
  %s5 = inlined_call_operand.vmem [shape: f32[400,128], index: 5, kind: input, shape index: {}]
  %s6 = inlined_call_operand.vmem [shape: f32[1,128], index: 6, kind: input, shape index: {}]
  %s7 = inlined_call_operand.vmem [shape: f32[128,128], index: 7, kind: input, shape index: {}]
  %s8 = inlined_call_operand.vmem [shape: f32[1,128], index: 8, kind: input, shape index: {}]
  %s9 = inlined_call_operand.vmem [shape: f32[128,128], index: 9, kind: input, shape index: {}]
  %s10 = inlined_call_operand.vmem [shape: f32[1,128], index: 10, kind: input, shape index: {}]
  %s11 = inlined_call_operand.hbm [shape: f32[2,1,128], index: 11, kind: output, shape index: {}]
  %s12 = sld [smem:[#allocation0]]
  $region77: #{net_forward.1} parent=0
    _
  %s14 = ssub.s32 1, %s12
  %s15 = scalar_select 0, %s14, %s12
  $region1: #{net_forward.1} parent=0
    #allocation2 [shape = 'u8[1024]{0}', space=vmem, size = 0x400, scoped, tag = 'output window, operand 0']
    #allocation3 [shape = 's32[2]{0}', space=sflag, size = 0x8, scoped, tag = 'scoped memory for net_forward.1']
    %16 = vsyncpa [#allocation3], 0
    %s17 = scalar_lea.sflag [#allocation3], 1
    %18 = vsyncpa %s17, 0
    loop: start=0, step=1, limit=4
    $region2: #{net_forward.1} parent=1 // loop_pre_header
      _
    $region3: #{net_forward.1} parent=1 // loop_header
      %s20 = sphi 0, %s24
      %p21 = scmp.ge.s32.totalorder %s20, 4
      %s30 = sphi 0, %s32
      %s33 = sphi 0, %s30
      %s34 = sphi 0, %s33
      %s50 = sphi 0, %s34
      %s54 = sphi 0, %s54
      %s56 = sphi 0, %s54
      %s57 = sphi 0, %s56
      %s71 = sphi 0, %s57
      %s75 = sphi 0, %s75
      %s77 = sphi 0, %s75
      %s78 = sphi 0, %s77
      %s92 = sphi 0, %s78
      %s96 = sphi 0, %s96
      %s98 = sphi 0, %s96
      %s99 = sphi 0, %s98
      %s113 = sphi 0, %s99
      %s117 = sphi 0, %s117
      %s119 = sphi 0, %s117
      %s120 = sphi 0, %s119
      %s134 = sphi 0, %s120
      %s138 = sphi 0, %s138
      %s140 = sphi 0, %s138
      %s141 = sphi 0, %s140
      %s155 = sphi 0, %s141
      %s159 = sphi 0, %s159
      %s161 = sphi 0, %s159
      %s162 = sphi 0, %s161
      %s176 = sphi 0, %s162
      %s180 = sphi 0, %s180
      %s182 = sphi 0, %s180
      %s183 = sphi 0, %s182
      %s197 = sphi 0, %s183
      %s201 = sphi 0, %s201
      %s203 = sphi 0, %s201
      %s204 = sphi 0, %s203
      %s218 = sphi 0, %s204
      %s222 = sphi 0, %s222
      %s224 = sphi 0, %s222
      %s225 = sphi 0, %s224
      %s239 = sphi 0, %s225
      %s243 = sphi 0, %s243
      %s245 = sphi 0, %s243
      %s246 = sphi 0, %s245
      %s260 = sphi 0, %s246
      %s266 = sphi 0, %s268
      %s269 = sphi 0, %s266
      %s270 = sphi 0, %s269
      %s286 = sphi 0, %s270
    $region4: #{net_forward.1} parent=1 // loop_header_branch
      %23 = sbr.rel (%p21) target = $region8
    $region5: #{net_forward.1} parent=1 // loop_body
      %s25 = ssub.s32 %s20, 1
      %s26 = ssub.s32 %s20, 2
      %s27 = sadd.s32 %s20, 1
      %s28 = ssub.s32 %s20, %s27
      %p29 = scmp.eq.s32.totalorder %s28, 0
      %s31 = sadd.s32 %s30, 1
      %s32 = scalar_select %p29, %s30, %s31
      %p35 = pneg %p29
      %p36 = scmp.eq.s32.totalorder %s20, 1
      %p37 = por %p35, %p36
      %p38 = scmp.ne.s32.totalorder %s30, %s33
      %p39 = scmp.eq.s32.totalorder %s20, 0
      %p40 = por %p38, %p39
      %p41 = scmp.ne.s32.totalorder %s30, %s33
      %p42 = scmp.eq.s32.totalorder %s25, 1
      %p43 = por %p41, %p42
      %p44 = scmp.ne.s32.totalorder %s33, %s34
      %p45 = scmp.eq.s32.totalorder %s25, 0
      %p46 = por %p44, %p45
      %p47 = scmp.ne.s32.totalorder %s33, %s34
      %p48 = scmp.eq.s32.totalorder %s26, 1
      %p49 = por %p47, %p48
      %p51 = scmp.ne.s32.totalorder %s34, %s50
      %p52 = scmp.eq.s32.totalorder %s26, 0
      %p53 = por %p51, %p52
      %s55 = sadd.s32 %s54, 1
      %p58 = scmp.eq.s32.totalorder %s20, 1
      %p59 = scmp.ne.s32.totalorder %s54, %s56
      %p60 = scmp.eq.s32.totalorder %s20, 0
      %p61 = por %p59, %p60
      %p62 = scmp.ne.s32.totalorder %s54, %s56
      %p63 = scmp.eq.s32.totalorder %s25, 1
      %p64 = por %p62, %p63
      %p65 = scmp.ne.s32.totalorder %s56, %s57
      %p66 = scmp.eq.s32.totalorder %s25, 0
      %p67 = por %p65, %p66
      %p68 = scmp.ne.s32.totalorder %s56, %s57
      %p69 = scmp.eq.s32.totalorder %s26, 1
      %p70 = por %p68, %p69
      %p72 = scmp.ne.s32.totalorder %s57, %s71
      %p73 = scmp.eq.s32.totalorder %s26, 0
      %p74 = por %p72, %p73
      %s76 = sadd.s32 %s75, 1
      %p79 = scmp.eq.s32.totalorder %s20, 1
      %p80 = scmp.ne.s32.totalorder %s75, %s77
      %p81 = scmp.eq.s32.totalorder %s20, 0
      %p82 = por %p80, %p81
      %p83 = scmp.ne.s32.totalorder %s75, %s77
      %p84 = scmp.eq.s32.totalorder %s25, 1
      %p85 = por %p83, %p84
      %p86 = scmp.ne.s32.totalorder %s77, %s78
      %p87 = scmp.eq.s32.totalorder %s25, 0
      %p88 = por %p86, %p87
      %p89 = scmp.ne.s32.totalorder %s77, %s78
      %p90 = scmp.eq.s32.totalorder %s26, 1
      %p91 = por %p89, %p90
      %p93 = scmp.ne.s32.totalorder %s78, %s92
      %p94 = scmp.eq.s32.totalorder %s26, 0
      %p95 = por %p93, %p94
      %s97 = sadd.s32 %s96, 1
      %p100 = scmp.eq.s32.totalorder %s20, 1
      %p101 = scmp.ne.s32.totalorder %s96, %s98
      %p102 = scmp.eq.s32.totalorder %s20, 0
      %p103 = por %p101, %p102
      %p104 = scmp.ne.s32.totalorder %s96, %s98
      %p105 = scmp.eq.s32.totalorder %s25, 1
      %p106 = por %p104, %p105
      %p107 = scmp.ne.s32.totalorder %s98, %s99
      %p108 = scmp.eq.s32.totalorder %s25, 0
      %p109 = por %p107, %p108
      %p110 = scmp.ne.s32.totalorder %s98, %s99
      %p111 = scmp.eq.s32.totalorder %s26, 1
      %p112 = por %p110, %p111
      %p114 = scmp.ne.s32.totalorder %s99, %s113
      %p115 = scmp.eq.s32.totalorder %s26, 0
      %p116 = por %p114, %p115
      %s118 = sadd.s32 %s117, 1
      %p121 = scmp.eq.s32.totalorder %s20, 1
      %p122 = scmp.ne.s32.totalorder %s117, %s119
      %p123 = scmp.eq.s32.totalorder %s20, 0
      %p124 = por %p122, %p123
      %p125 = scmp.ne.s32.totalorder %s117, %s119
      %p126 = scmp.eq.s32.totalorder %s25, 1
      %p127 = por %p125, %p126
      %p128 = scmp.ne.s32.totalorder %s119, %s120
      %p129 = scmp.eq.s32.totalorder %s25, 0
      %p130 = por %p128, %p129
      %p131 = scmp.ne.s32.totalorder %s119, %s120
      %p132 = scmp.eq.s32.totalorder %s26, 1
      %p133 = por %p131, %p132
      %p135 = scmp.ne.s32.totalorder %s120, %s134
      %p136 = scmp.eq.s32.totalorder %s26, 0
      %p137 = por %p135, %p136
      %s139 = sadd.s32 %s138, 1
      %p142 = scmp.eq.s32.totalorder %s20, 1
      %p143 = scmp.ne.s32.totalorder %s138, %s140
      %p144 = scmp.eq.s32.totalorder %s20, 0
      %p145 = por %p143, %p144
      %p146 = scmp.ne.s32.totalorder %s138, %s140
      %p147 = scmp.eq.s32.totalorder %s25, 1
      %p148 = por %p146, %p147
      %p149 = scmp.ne.s32.totalorder %s140, %s141
      %p150 = scmp.eq.s32.totalorder %s25, 0
      %p151 = por %p149, %p150
      %p152 = scmp.ne.s32.totalorder %s140, %s141
      %p153 = scmp.eq.s32.totalorder %s26, 1
      %p154 = por %p152, %p153
      %p156 = scmp.ne.s32.totalorder %s141, %s155
      %p157 = scmp.eq.s32.totalorder %s26, 0
      %p158 = por %p156, %p157
      %s160 = sadd.s32 %s159, 1
      %p163 = scmp.eq.s32.totalorder %s20, 1
      %p164 = scmp.ne.s32.totalorder %s159, %s161
      %p165 = scmp.eq.s32.totalorder %s20, 0
      %p166 = por %p164, %p165
      %p167 = scmp.ne.s32.totalorder %s159, %s161
      %p168 = scmp.eq.s32.totalorder %s25, 1
      %p169 = por %p167, %p168
      %p170 = scmp.ne.s32.totalorder %s161, %s162
      %p171 = scmp.eq.s32.totalorder %s25, 0
      %p172 = por %p170, %p171
      %p173 = scmp.ne.s32.totalorder %s161, %s162
      %p174 = scmp.eq.s32.totalorder %s26, 1
      %p175 = por %p173, %p174
      %p177 = scmp.ne.s32.totalorder %s162, %s176
      %p178 = scmp.eq.s32.totalorder %s26, 0
      %p179 = por %p177, %p178
      %s181 = sadd.s32 %s180, 1
      %p184 = scmp.eq.s32.totalorder %s20, 1
      %p185 = scmp.ne.s32.totalorder %s180, %s182
      %p186 = scmp.eq.s32.totalorder %s20, 0
      %p187 = por %p185, %p186
      %p188 = scmp.ne.s32.totalorder %s180, %s182
      %p189 = scmp.eq.s32.totalorder %s25, 1
      %p190 = por %p188, %p189
      %p191 = scmp.ne.s32.totalorder %s182, %s183
      %p192 = scmp.eq.s32.totalorder %s25, 0
      %p193 = por %p191, %p192
      %p194 = scmp.ne.s32.totalorder %s182, %s183
      %p195 = scmp.eq.s32.totalorder %s26, 1
      %p196 = por %p194, %p195
      %p198 = scmp.ne.s32.totalorder %s183, %s197
      %p199 = scmp.eq.s32.totalorder %s26, 0
      %p200 = por %p198, %p199
      %s202 = sadd.s32 %s201, 1
      %p205 = scmp.eq.s32.totalorder %s20, 1
      %p206 = scmp.ne.s32.totalorder %s201, %s203
      %p207 = scmp.eq.s32.totalorder %s20, 0
      %p208 = por %p206, %p207
      %p209 = scmp.ne.s32.totalorder %s201, %s203
      %p210 = scmp.eq.s32.totalorder %s25, 1
      %p211 = por %p209, %p210
      %p212 = scmp.ne.s32.totalorder %s203, %s204
      %p213 = scmp.eq.s32.totalorder %s25, 0
      %p214 = por %p212, %p213
      %p215 = scmp.ne.s32.totalorder %s203, %s204
      %p216 = scmp.eq.s32.totalorder %s26, 1
      %p217 = por %p215, %p216
      %p219 = scmp.ne.s32.totalorder %s204, %s218
      %p220 = scmp.eq.s32.totalorder %s26, 0
      %p221 = por %p219, %p220
      %s223 = sadd.s32 %s222, 1
      %p226 = scmp.eq.s32.totalorder %s20, 1
      %p227 = scmp.ne.s32.totalorder %s222, %s224
      %p228 = scmp.eq.s32.totalorder %s20, 0
      %p229 = por %p227, %p228
      %p230 = scmp.ne.s32.totalorder %s222, %s224
      %p231 = scmp.eq.s32.totalorder %s25, 1
      %p232 = por %p230, %p231
      %p233 = scmp.ne.s32.totalorder %s224, %s225
      %p234 = scmp.eq.s32.totalorder %s25, 0
      %p235 = por %p233, %p234
      %p236 = scmp.ne.s32.totalorder %s224, %s225
      %p237 = scmp.eq.s32.totalorder %s26, 1
      %p238 = por %p236, %p237
      %p240 = scmp.ne.s32.totalorder %s225, %s239
      %p241 = scmp.eq.s32.totalorder %s26, 0
      %p242 = por %p240, %p241
      %s244 = sadd.s32 %s243, 1
      %p247 = scmp.eq.s32.totalorder %s20, 1
      %p248 = scmp.ne.s32.totalorder %s243, %s245
      %p249 = scmp.eq.s32.totalorder %s20, 0
      %p250 = por %p248, %p249
      %p251 = scmp.ne.s32.totalorder %s243, %s245
      %p252 = scmp.eq.s32.totalorder %s25, 1
      %p253 = por %p251, %p252
      %p254 = scmp.ne.s32.totalorder %s245, %s246
      %p255 = scmp.eq.s32.totalorder %s25, 0
      %p256 = por %p254, %p255
      %p257 = scmp.ne.s32.totalorder %s245, %s246
      %p258 = scmp.eq.s32.totalorder %s26, 1
      %p259 = por %p257, %p258
      %p261 = scmp.ne.s32.totalorder %s246, %s260
      %p262 = scmp.eq.s32.totalorder %s26, 0
      %p263 = por %p261, %p262
      %s264 = ssub.s32 %s20, %s27
      %p265 = scmp.eq.s32.totalorder %s264, 0
      %s267 = sadd.s32 %s266, 1
      %s268 = scalar_select %p265, %s266, %s267
      %p271 = pneg %p265
      %p272 = scmp.eq.s32.totalorder %s20, 1
      %p273 = por %p271, %p272
      %p274 = scmp.ne.s32.totalorder %s266, %s269
      %p275 = scmp.eq.s32.totalorder %s20, 0
      %p276 = por %p274, %p275
      %p277 = scmp.ne.s32.totalorder %s266, %s269
      %p278 = scmp.eq.s32.totalorder %s25, 1
      %p279 = por %p277, %p278
      %p280 = scmp.ne.s32.totalorder %s269, %s270
      %p281 = scmp.eq.s32.totalorder %s25, 0
      %p282 = por %p280, %p281
      %p283 = scmp.ne.s32.totalorder %s269, %s270
      %p284 = scmp.eq.s32.totalorder %s26, 1
      %p285 = por %p283, %p284
      %p287 = scmp.ne.s32.totalorder %s270, %s286
      %p288 = scmp.eq.s32.totalorder %s26, 0
      %p289 = por %p287, %p288
      %p290 = scmp.le.s32.totalorder 1, %s20
      %p291 = scmp.lt.s32.totalorder %s20, 3
      %p292 = pnand %p290, %p291
      %p293 = pneg %p292
      // Predicated region
      $region9: #{net_forward.1} parent=5 // pred_check
        _
      $region10: #{net_forward.1} parent=5 // pred_check_branch
        %295 = sbr.rel (%p292) target = $region12
      $region11: #{net_forward.1} parent=5 // pred_region
        %s296 = ssub.s32 %s20, 1
        // Predicated region
        $region13: #{net_forward.1} parent=11 // pred_check
          %p297 = pneg %p67
        $region14: #{net_forward.1} parent=11 // pred_check_branch
          %299 = sbr.rel (%p297) target = $region16
        $region15: #{net_forward.1} parent=11 // pred_region
          _
        $region16: #{net_forward.1} parent=11 // pred_fallthru
          _
        // Predicated region
        $region17: #{net_forward.1} parent=11 // pred_check
          %p300 = pneg %p88
        $region18: #{net_forward.1} parent=11 // pred_check_branch
          %302 = sbr.rel (%p300) target = $region20
        $region19: #{net_forward.1} parent=11 // pred_region
          _
        $region20: #{net_forward.1} parent=11 // pred_fallthru
          _
        // Predicated region
        $region21: #{net_forward.1} parent=11 // pred_check
          %p303 = pneg %p109
        $region22: #{net_forward.1} parent=11 // pred_check_branch
          %305 = sbr.rel (%p303) target = $region24
        $region23: #{net_forward.1} parent=11 // pred_region
          _
        $region24: #{net_forward.1} parent=11 // pred_fallthru
          _
        // Predicated region
        $region25: #{net_forward.1} parent=11 // pred_check
          %p306 = pneg %p130
        $region26: #{net_forward.1} parent=11 // pred_check_branch
          %308 = sbr.rel (%p306) target = $region28
        $region27: #{net_forward.1} parent=11 // pred_region
          _
        $region28: #{net_forward.1} parent=11 // pred_fallthru
          _
        // Predicated region
        $region29: #{net_forward.1} parent=11 // pred_check
          %p309 = pneg %p151
        $region30: #{net_forward.1} parent=11 // pred_check_branch
          %311 = sbr.rel (%p309) target = $region32
        $region31: #{net_forward.1} parent=11 // pred_region
          _
        $region32: #{net_forward.1} parent=11 // pred_fallthru
          _
        // Predicated region
        $region33: #{net_forward.1} parent=11 // pred_check
          %p312 = pneg %p172
        $region34: #{net_forward.1} parent=11 // pred_check_branch
          %314 = sbr.rel (%p312) target = $region36
        $region35: #{net_forward.1} parent=11 // pred_region
          _
        $region36: #{net_forward.1} parent=11 // pred_fallthru
          _
        // Predicated region
        $region37: #{net_forward.1} parent=11 // pred_check
          %p315 = pneg %p193
        $region38: #{net_forward.1} parent=11 // pred_check_branch
          %317 = sbr.rel (%p315) target = $region40
        $region39: #{net_forward.1} parent=11 // pred_region
          _
        $region40: #{net_forward.1} parent=11 // pred_fallthru
          _
        // Predicated region
        $region41: #{net_forward.1} parent=11 // pred_check
          %p318 = pneg %p214
        $region42: #{net_forward.1} parent=11 // pred_check_branch
          %320 = sbr.rel (%p318) target = $region44
        $region43: #{net_forward.1} parent=11 // pred_region
          _
        $region44: #{net_forward.1} parent=11 // pred_fallthru
          _
        // Predicated region
        $region45: #{net_forward.1} parent=11 // pred_check
          %p321 = pneg %p235
        $region46: #{net_forward.1} parent=11 // pred_check_branch
          %323 = sbr.rel (%p321) target = $region48
        $region47: #{net_forward.1} parent=11 // pred_region
          _
        $region48: #{net_forward.1} parent=11 // pred_fallthru
          _
        // Predicated region
        $region49: #{net_forward.1} parent=11 // pred_check
          %p324 = pneg %p256
        $region50: #{net_forward.1} parent=11 // pred_check_branch
          %326 = sbr.rel (%p324) target = $region52
        $region51: #{net_forward.1} parent=11 // pred_region
          _
        $region52: #{net_forward.1} parent=11 // pred_fallthru
          _
      $region12: #{net_forward.1} parent=5 // pred_fallthru
        _
      %p327 = scmp.lt.s32.totalorder %s20, 2
      // Predicated region
      $region53: #{net_forward.1} parent=5 // pred_check
        %p328 = pneg %p327
      $region54: #{net_forward.1} parent=5 // pred_check_branch
        %330 = sbr.rel (%p328) target = $region56
      $region55: #{net_forward.1} parent=5 // pred_region
        // Predicated region
        $region57: #{net_forward.1} parent=55 // pred_check
          %p331 = pneg %p40
        $region58: #{net_forward.1} parent=55 // pred_check_branch
          %333 = sbr.rel (%p331) target = $region60
        $region59: #{net_forward.1} parent=55 // pred_region
          %s334 = smul.u32 128, %s20
          %p335 = scmp.lt.s32.totalorder %s334, 255
          %s336 = scalar_select %p335, %s334, 255
          %s337 = smul.addr %s336, 8
          %s338 = scalar_lea.vmem %s0, %s337
          %s339 = smul.u32 128, %s20
        $region60: #{net_forward.1} parent=55 // pred_fallthru
          _
      $region56: #{net_forward.1} parent=5 // pred_fallthru
        _
      %p340 = scmp.le.s32.totalorder 1, %s20
      %p341 = scmp.lt.s32.totalorder %s20, 3
      %p342 = pnand %p340, %p341
      %p343 = pneg %p342
      // Predicated region
      $region61: #{net_forward.1} parent=5 // pred_check
        _
      $region62: #{net_forward.1} parent=5 // pred_check_branch
        %345 = sbr.rel (%p342) target = $region64
      $region63: #{net_forward.1} parent=5 // pred_region
        %s346 = ssub.s32 %s20, 1
        %s347 = smul.u32 128, %s25
        %p348 = scmp.lt.s32.totalorder %s347, 255
        %s349 = scalar_select %p348, %s347, 255
        %s350 = smul.addr %s349, 8
        %s351 = scalar_lea.vmem %s0, %s350
        %p352 = pneg %p46
        %p353 = pneg %p43
        %p354 = pneg %p67
        %p355 = pneg %p64
        %p356 = pneg %p88
        %p357 = pneg %p85
        %p358 = pneg %p109
        %p359 = pneg %p106
        %p360 = pneg %p130
        %p361 = pneg %p127
        %p362 = pneg %p151
        %p363 = pneg %p148
        %p364 = pneg %p172
        %p365 = pneg %p169
        %p366 = pneg %p193
        %p367 = pneg %p190
        %p368 = pneg %p214
        %p369 = pneg %p211
        %p370 = pneg %p235
        %p371 = pneg %p232
        %p372 = pneg %p256
        %p373 = pneg %p253
        %p374 = pneg %p282
        %p375 = pneg %p279
        %s376 = sand.u32 %s269, 1
        %s377 = scalar_lea.sflag [#allocation3], %s376
        %s378 = sand.u32 %s269, 1
        %s379 = scalar_lea.vmem [#allocation2], %s378
        %s380 = smul.u32 128, %s25
        %p381 = scmp.lt.s32.totalorder %s380, 255
        %s382 = scalar_select %p381, %s380, 255
        %s383 = smul.addr %s382, 8
        %s384 = scalar_lea.vmem %s0, %s383
        %s385 = smul.u32 128, %s25
        %v386 = vld [vmem:[%s384] sm:$0xff]
        %v387 = vld [vmem:[%s384 + $0x8] sm:$0xff]
        %v388 = vld [vmem:[%s384 + $0x10] sm:$0xff]
        %v389 = vld [vmem:[%s384 + $0x18] sm:$0xff]
        %v390 = vld [vmem:[%s384 + $0x20] sm:$0xff]
        %v391 = vld [vmem:[%s384 + $0x28] sm:$0xff]
        %v392 = vld [vmem:[%s384 + $0x30] sm:$0xff]
        %v393 = vld [vmem:[%s384 + $0x38] sm:$0xff]
        %v394 = vld [vmem:[%s384 + $0x40] sm:$0xff]
        %v395 = vld [vmem:[%s384 + $0x48] sm:$0xff]
        %v396 = vld [vmem:[%s384 + $0x50] sm:$0xff]
        %v397 = vld [vmem:[%s384 + $0x58] sm:$0xff]
        %v398 = vld [vmem:[%s384 + $0x60] sm:$0xff]
        %v399 = vld [vmem:[%s384 + $0x68] sm:$0xff]
        %v400 = vld [vmem:[%s384 + $0x70] sm:$0xff]
        %v401 = vld [vmem:[%s384 + $0x78] sm:$0xff]
        %v402 = vld [vmem:[%s384 + $0x80] sm:$0xff]
        %v403 = vld [vmem:[%s384 + $0x88] sm:$0xff]
        %v404 = vld [vmem:[%s384 + $0x90] sm:$0xff]
        %v405 = vld [vmem:[%s384 + $0x98] sm:$0xff]
        %v406 = vld [vmem:[%s384 + $0xa0] sm:$0xff]
        %v407 = vld [vmem:[%s384 + $0xa8] sm:$0xff]
        %v408 = vld [vmem:[%s384 + $0xb0] sm:$0xff]
        %v409 = vld [vmem:[%s384 + $0xb8] sm:$0xf]
        %411 = vset.pattern.permute.xlu0 0
        %412 = vperm.xlu0 %411, %v386
        %v413 = vpop.permute.xlu0 %412
        %416 = vset.pattern.permute.xlu0 0
        %417 = vperm.xlu0 %416, %v387
        %v418 = vpop.permute.xlu0 %417
        %421 = vset.pattern.permute.xlu0 0
        %422 = vperm.xlu0 %421, %v388
        %v423 = vpop.permute.xlu0 %422
        %426 = vset.pattern.permute.xlu0 0
        %427 = vperm.xlu0 %426, %v389
        %v428 = vpop.permute.xlu0 %427
        %431 = vset.pattern.permute.xlu0 0
        %432 = vperm.xlu0 %431, %v390
        %v433 = vpop.permute.xlu0 %432
        %436 = vset.pattern.permute.xlu0 0
        %437 = vperm.xlu0 %436, %v391
        %v438 = vpop.permute.xlu0 %437
        %441 = vset.pattern.permute.xlu0 0
        %442 = vperm.xlu0 %441, %v392
        %v443 = vpop.permute.xlu0 %442
        %446 = vset.pattern.permute.xlu0 0
        %447 = vperm.xlu0 %446, %v393
        %v448 = vpop.permute.xlu0 %447
        %451 = vset.pattern.permute.xlu0 0
        %452 = vperm.xlu0 %451, %v394
        %v453 = vpop.permute.xlu0 %452
        %456 = vset.pattern.permute.xlu0 0
        %457 = vperm.xlu0 %456, %v395
        %v458 = vpop.permute.xlu0 %457
        %461 = vset.pattern.permute.xlu0 0
        %462 = vperm.xlu0 %461, %v396
        %v463 = vpop.permute.xlu0 %462
        %466 = vset.pattern.permute.xlu0 0
        %467 = vperm.xlu0 %466, %v397
        %v468 = vpop.permute.xlu0 %467
        %471 = vset.pattern.permute.xlu0 0
        %472 = vperm.xlu0 %471, %v398
        %v473 = vpop.permute.xlu0 %472
        %476 = vset.pattern.permute.xlu0 0
        %477 = vperm.xlu0 %476, %v399
        %v478 = vpop.permute.xlu0 %477
        %481 = vset.pattern.permute.xlu0 0
        %482 = vperm.xlu0 %481, %v400
        %v483 = vpop.permute.xlu0 %482
        %486 = vset.pattern.permute.xlu0 0
        %487 = vperm.xlu0 %486, %v401
        %v488 = vpop.permute.xlu0 %487
        %491 = vset.pattern.permute.xlu0 0
        %492 = vperm.xlu0 %491, %v402
        %v493 = vpop.permute.xlu0 %492
        %496 = vset.pattern.permute.xlu0 0
        %497 = vperm.xlu0 %496, %v403
        %v498 = vpop.permute.xlu0 %497
        %501 = vset.pattern.permute.xlu0 0
        %502 = vperm.xlu0 %501, %v404
        %v503 = vpop.permute.xlu0 %502
        %506 = vset.pattern.permute.xlu0 0
        %507 = vperm.xlu0 %506, %v405
        %v508 = vpop.permute.xlu0 %507
        %511 = vset.pattern.permute.xlu0 0
        %512 = vperm.xlu0 %511, %v406
        %v513 = vpop.permute.xlu0 %512
        %516 = vset.pattern.permute.xlu0 0
        %517 = vperm.xlu0 %516, %v407
        %v518 = vpop.permute.xlu0 %517
        %521 = vset.pattern.permute.xlu0 0
        %522 = vperm.xlu0 %521, %v408
        %v523 = vpop.permute.xlu0 %522
        %526 = vset.pattern.permute.xlu0 0
        %527 = vperm.xlu0 %526, %v409
        %v528 = vpop.permute.xlu0 %527
        %v530 = vld [vmem:[%s1] sm:$0x1]
        %v532 = vlaneseq
        %v533 = vshrl.u32 %v532, 7
        %v534 = vsub.s32 0, %v533
        %v535 = vrot.slane %v530, %v534
        %v537 = vmul.f32 %v413, %v535
        %v538 = vmul.f32 %v418, %v535
        %v539 = vmul.f32 %v423, %v535
        %v540 = vmul.f32 %v428, %v535
        %v541 = vmul.f32 %v433, %v535
        %v542 = vmul.f32 %v438, %v535
        %v543 = vmul.f32 %v443, %v535
        %v544 = vmul.f32 %v448, %v535
        %v545 = vmul.f32 %v453, %v535
        %v546 = vmul.f32 %v458, %v535
        %v547 = vmul.f32 %v463, %v535
        %v548 = vmul.f32 %v468, %v535
        %v549 = vmul.f32 %v473, %v535
        %v550 = vmul.f32 %v478, %v535
        %v551 = vmul.f32 %v483, %v535
        %v552 = vmul.f32 %v488, %v535
        %v553 = vmul.f32 %v493, %v535
        %v554 = vmul.f32 %v498, %v535
        %v555 = vmul.f32 %v503, %v535
        %v556 = vmul.f32 %v508, %v535
        %v557 = vmul.f32 %v513, %v535
        %v558 = vmul.f32 %v518, %v535
        %v559 = vmul.f32 %v523, %v535
        %v560 = vmul.f32 %v528, %v535
        %v561 = vld [vmem:[%s384 + $0x100] sm:$0xff]
        %v562 = vld [vmem:[%s384 + $0x108] sm:$0xff]
        %v563 = vld [vmem:[%s384 + $0x110] sm:$0xff]
        %v564 = vld [vmem:[%s384 + $0x118] sm:$0xff]
        %v565 = vld [vmem:[%s384 + $0x120] sm:$0xff]
        %v566 = vld [vmem:[%s384 + $0x128] sm:$0xff]
        %v567 = vld [vmem:[%s384 + $0x130] sm:$0xff]
        %v568 = vld [vmem:[%s384 + $0x138] sm:$0xff]
        %v569 = vld [vmem:[%s384 + $0x140] sm:$0xff]
        %v570 = vld [vmem:[%s384 + $0x148] sm:$0xff]
        %v571 = vld [vmem:[%s384 + $0x150] sm:$0xff]
        %v572 = vld [vmem:[%s384 + $0x158] sm:$0xff]
        %v573 = vld [vmem:[%s384 + $0x160] sm:$0xff]
        %v574 = vld [vmem:[%s384 + $0x168] sm:$0xff]
        %v575 = vld [vmem:[%s384 + $0x170] sm:$0xff]
        %v576 = vld [vmem:[%s384 + $0x178] sm:$0xff]
        %v577 = vld [vmem:[%s384 + $0x180] sm:$0xff]
        %v578 = vld [vmem:[%s384 + $0x188] sm:$0xff]
        %v579 = vld [vmem:[%s384 + $0x190] sm:$0xff]
        %v580 = vld [vmem:[%s384 + $0x198] sm:$0xff]
        %v581 = vld [vmem:[%s384 + $0x1a0] sm:$0xff]
        %v582 = vld [vmem:[%s384 + $0x1a8] sm:$0xff]
        %v583 = vld [vmem:[%s384 + $0x1b0] sm:$0xff]
        %v584 = vld [vmem:[%s384 + $0x1b8] sm:$0xf]
        %586 = vset.pattern.permute.xlu0 0
        %587 = vperm.xlu0 %586, %v561
        %v588 = vpop.permute.xlu0 %587
        %591 = vset.pattern.permute.xlu0 0
        %592 = vperm.xlu0 %591, %v562
        %v593 = vpop.permute.xlu0 %592
        %596 = vset.pattern.permute.xlu0 0
        %597 = vperm.xlu0 %596, %v563
        %v598 = vpop.permute.xlu0 %597
        %601 = vset.pattern.permute.xlu0 0
        %602 = vperm.xlu0 %601, %v564
        %v603 = vpop.permute.xlu0 %602
        %606 = vset.pattern.permute.xlu0 0
        %607 = vperm.xlu0 %606, %v565
        %v608 = vpop.permute.xlu0 %607
        %611 = vset.pattern.permute.xlu0 0
        %612 = vperm.xlu0 %611, %v566
        %v613 = vpop.permute.xlu0 %612
        %616 = vset.pattern.permute.xlu0 0
        %617 = vperm.xlu0 %616, %v567
        %v618 = vpop.permute.xlu0 %617
        %621 = vset.pattern.permute.xlu0 0
        %622 = vperm.xlu0 %621, %v568
        %v623 = vpop.permute.xlu0 %622
        %626 = vset.pattern.permute.xlu0 0
        %627 = vperm.xlu0 %626, %v569
        %v628 = vpop.permute.xlu0 %627
        %631 = vset.pattern.permute.xlu0 0
        %632 = vperm.xlu0 %631, %v570
        %v633 = vpop.permute.xlu0 %632
        %636 = vset.pattern.permute.xlu0 0
        %637 = vperm.xlu0 %636, %v571
        %v638 = vpop.permute.xlu0 %637
        %641 = vset.pattern.permute.xlu0 0
        %642 = vperm.xlu0 %641, %v572
        %v643 = vpop.permute.xlu0 %642
        %646 = vset.pattern.permute.xlu0 0
        %647 = vperm.xlu0 %646, %v573
        %v648 = vpop.permute.xlu0 %647
        %651 = vset.pattern.permute.xlu0 0
        %652 = vperm.xlu0 %651, %v574
        %v653 = vpop.permute.xlu0 %652
        %656 = vset.pattern.permute.xlu0 0
        %657 = vperm.xlu0 %656, %v575
        %v658 = vpop.permute.xlu0 %657
        %661 = vset.pattern.permute.xlu0 0
        %662 = vperm.xlu0 %661, %v576
        %v663 = vpop.permute.xlu0 %662
        %666 = vset.pattern.permute.xlu0 0
        %667 = vperm.xlu0 %666, %v577
        %v668 = vpop.permute.xlu0 %667
        %671 = vset.pattern.permute.xlu0 0
        %672 = vperm.xlu0 %671, %v578
        %v673 = vpop.permute.xlu0 %672
        %676 = vset.pattern.permute.xlu0 0
        %677 = vperm.xlu0 %676, %v579
        %v678 = vpop.permute.xlu0 %677
        %681 = vset.pattern.permute.xlu0 0
        %682 = vperm.xlu0 %681, %v580
        %v683 = vpop.permute.xlu0 %682
        %686 = vset.pattern.permute.xlu0 0
        %687 = vperm.xlu0 %686, %v581
        %v688 = vpop.permute.xlu0 %687
        %691 = vset.pattern.permute.xlu0 0
        %692 = vperm.xlu0 %691, %v582
        %v693 = vpop.permute.xlu0 %692
        %696 = vset.pattern.permute.xlu0 0
        %697 = vperm.xlu0 %696, %v583
        %v698 = vpop.permute.xlu0 %697
        %701 = vset.pattern.permute.xlu0 0
        %702 = vperm.xlu0 %701, %v584
        %v703 = vpop.permute.xlu0 %702
        %s705 = scalar_lea.vmem %s1, 1
        %v706 = vld [vmem:[%s705] sm:$0x1]
        %v708 = vlaneseq
        %v709 = vshrl.u32 %v708, 7
        %v710 = vsub.s32 0, %v709
        %v711 = vrot.slane %v706, %v710
        %v713 = vmul.f32 %v588, %v711
        %v714 = vmul.f32 %v593, %v711
        %v715 = vmul.f32 %v598, %v711
        %v716 = vmul.f32 %v603, %v711
        %v717 = vmul.f32 %v608, %v711
        %v718 = vmul.f32 %v613, %v711
        %v719 = vmul.f32 %v618, %v711
        %v720 = vmul.f32 %v623, %v711
        %v721 = vmul.f32 %v628, %v711
        %v722 = vmul.f32 %v633, %v711
        %v723 = vmul.f32 %v638, %v711
        %v724 = vmul.f32 %v643, %v711
        %v725 = vmul.f32 %v648, %v711
        %v726 = vmul.f32 %v653, %v711
        %v727 = vmul.f32 %v658, %v711
        %v728 = vmul.f32 %v663, %v711
        %v729 = vmul.f32 %v668, %v711
        %v730 = vmul.f32 %v673, %v711
        %v731 = vmul.f32 %v678, %v711
        %v732 = vmul.f32 %v683, %v711
        %v733 = vmul.f32 %v688, %v711
        %v734 = vmul.f32 %v693, %v711
        %v735 = vmul.f32 %v698, %v711
        %v736 = vmul.f32 %v703, %v711
        %v737 = vadd.f32 %v537, %v713
        %v738 = vadd.f32 %v538, %v714
        %v739 = vadd.f32 %v539, %v715
        %v740 = vadd.f32 %v540, %v716
        %v741 = vadd.f32 %v541, %v717
        %v742 = vadd.f32 %v542, %v718
        %v743 = vadd.f32 %v543, %v719
        %v744 = vadd.f32 %v544, %v720
        %v745 = vadd.f32 %v545, %v721
        %v746 = vadd.f32 %v546, %v722
        %v747 = vadd.f32 %v547, %v723
        %v748 = vadd.f32 %v548, %v724
        %v749 = vadd.f32 %v549, %v725
        %v750 = vadd.f32 %v550, %v726
        %v751 = vadd.f32 %v551, %v727
        %v752 = vadd.f32 %v552, %v728
        %v753 = vadd.f32 %v553, %v729
        %v754 = vadd.f32 %v554, %v730
        %v755 = vadd.f32 %v555, %v731
        %v756 = vadd.f32 %v556, %v732
        %v757 = vadd.f32 %v557, %v733
        %v758 = vadd.f32 %v558, %v734
        %v759 = vadd.f32 %v559, %v735
        %v760 = vadd.f32 %v560, %v736
        %v761 = vld [vmem:[%s384 + $0x1] sm:$0xff]
        %v762 = vld [vmem:[%s384 + $0x9] sm:$0xff]
        %v763 = vld [vmem:[%s384 + $0x11] sm:$0xff]
        %v764 = vld [vmem:[%s384 + $0x19] sm:$0xff]
        %v765 = vld [vmem:[%s384 + $0x21] sm:$0xff]
        %v766 = vld [vmem:[%s384 + $0x29] sm:$0xff]
        %v767 = vld [vmem:[%s384 + $0x31] sm:$0xff]
        %v768 = vld [vmem:[%s384 + $0x39] sm:$0xff]
        %v769 = vld [vmem:[%s384 + $0x41] sm:$0xff]
        %v770 = vld [vmem:[%s384 + $0x49] sm:$0xff]
        %v771 = vld [vmem:[%s384 + $0x51] sm:$0xff]
        %v772 = vld [vmem:[%s384 + $0x59] sm:$0xff]
        %v773 = vld [vmem:[%s384 + $0x61] sm:$0xff]
        %v774 = vld [vmem:[%s384 + $0x69] sm:$0xff]
        %v775 = vld [vmem:[%s384 + $0x71] sm:$0xff]
        %v776 = vld [vmem:[%s384 + $0x79] sm:$0xff]
        %v777 = vld [vmem:[%s384 + $0x81] sm:$0xff]
        %v778 = vld [vmem:[%s384 + $0x89] sm:$0xff]
        %v779 = vld [vmem:[%s384 + $0x91] sm:$0xff]
        %v780 = vld [vmem:[%s384 + $0x99] sm:$0xff]
        %v781 = vld [vmem:[%s384 + $0xa1] sm:$0xff]
        %v782 = vld [vmem:[%s384 + $0xa9] sm:$0xff]
        %v783 = vld [vmem:[%s384 + $0xb1] sm:$0xff]
        %v784 = vld [vmem:[%s384 + $0xb9] sm:$0xf]
        %786 = vset.pattern.permute.xlu0 0
        %787 = vperm.xlu0 %786, %v761
        %v788 = vpop.permute.xlu0 %787
        %791 = vset.pattern.permute.xlu0 0
        %792 = vperm.xlu0 %791, %v762
        %v793 = vpop.permute.xlu0 %792
        %796 = vset.pattern.permute.xlu0 0
        %797 = vperm.xlu0 %796, %v763
        %v798 = vpop.permute.xlu0 %797
        %801 = vset.pattern.permute.xlu0 0
        %802 = vperm.xlu0 %801, %v764
        %v803 = vpop.permute.xlu0 %802
        %806 = vset.pattern.permute.xlu0 0
        %807 = vperm.xlu0 %806, %v765
        %v808 = vpop.permute.xlu0 %807
        %811 = vset.pattern.permute.xlu0 0
        %812 = vperm.xlu0 %811, %v766
        %v813 = vpop.permute.xlu0 %812
        %816 = vset.pattern.permute.xlu0 0
        %817 = vperm.xlu0 %816, %v767
        %v818 = vpop.permute.xlu0 %817
        %821 = vset.pattern.permute.xlu0 0
        %822 = vperm.xlu0 %821, %v768
        %v823 = vpop.permute.xlu0 %822
        %826 = vset.pattern.permute.xlu0 0
        %827 = vperm.xlu0 %826, %v769
        %v828 = vpop.permute.xlu0 %827
        %831 = vset.pattern.permute.xlu0 0
        %832 = vperm.xlu0 %831, %v770
        %v833 = vpop.permute.xlu0 %832
        %836 = vset.pattern.permute.xlu0 0
        %837 = vperm.xlu0 %836, %v771
        %v838 = vpop.permute.xlu0 %837
        %841 = vset.pattern.permute.xlu0 0
        %842 = vperm.xlu0 %841, %v772
        %v843 = vpop.permute.xlu0 %842
        %846 = vset.pattern.permute.xlu0 0
        %847 = vperm.xlu0 %846, %v773
        %v848 = vpop.permute.xlu0 %847
        %851 = vset.pattern.permute.xlu0 0
        %852 = vperm.xlu0 %851, %v774
        %v853 = vpop.permute.xlu0 %852
        %856 = vset.pattern.permute.xlu0 0
        %857 = vperm.xlu0 %856, %v775
        %v858 = vpop.permute.xlu0 %857
        %861 = vset.pattern.permute.xlu0 0
        %862 = vperm.xlu0 %861, %v776
        %v863 = vpop.permute.xlu0 %862
        %866 = vset.pattern.permute.xlu0 0
        %867 = vperm.xlu0 %866, %v777
        %v868 = vpop.permute.xlu0 %867
        %871 = vset.pattern.permute.xlu0 0
        %872 = vperm.xlu0 %871, %v778
        %v873 = vpop.permute.xlu0 %872
        %876 = vset.pattern.permute.xlu0 0
        %877 = vperm.xlu0 %876, %v779
        %v878 = vpop.permute.xlu0 %877
        %881 = vset.pattern.permute.xlu0 0
        %882 = vperm.xlu0 %881, %v780
        %v883 = vpop.permute.xlu0 %882
        %886 = vset.pattern.permute.xlu0 0
        %887 = vperm.xlu0 %886, %v781
        %v888 = vpop.permute.xlu0 %887
        %891 = vset.pattern.permute.xlu0 0
        %892 = vperm.xlu0 %891, %v782
        %v893 = vpop.permute.xlu0 %892
        %896 = vset.pattern.permute.xlu0 0
        %897 = vperm.xlu0 %896, %v783
        %v898 = vpop.permute.xlu0 %897
        %901 = vset.pattern.permute.xlu0 0
        %902 = vperm.xlu0 %901, %v784
        %v903 = vpop.permute.xlu0 %902
        %s905 = scalar_lea.vmem %s1, 2
        %v906 = vld [vmem:[%s905] sm:$0x1]
        %v908 = vlaneseq
        %v909 = vshrl.u32 %v908, 7
        %v910 = vsub.s32 0, %v909
        %v911 = vrot.slane %v906, %v910
        %v913 = vmul.f32 %v788, %v911
        %v914 = vmul.f32 %v793, %v911
        %v915 = vmul.f32 %v798, %v911
        %v916 = vmul.f32 %v803, %v911
        %v917 = vmul.f32 %v808, %v911
        %v918 = vmul.f32 %v813, %v911
        %v919 = vmul.f32 %v818, %v911
        %v920 = vmul.f32 %v823, %v911
        %v921 = vmul.f32 %v828, %v911
        %v922 = vmul.f32 %v833, %v911
        %v923 = vmul.f32 %v838, %v911
        %v924 = vmul.f32 %v843, %v911
        %v925 = vmul.f32 %v848, %v911
        %v926 = vmul.f32 %v853, %v911
        %v927 = vmul.f32 %v858, %v911
        %v928 = vmul.f32 %v863, %v911
        %v929 = vmul.f32 %v868, %v911
        %v930 = vmul.f32 %v873, %v911
        %v931 = vmul.f32 %v878, %v911
        %v932 = vmul.f32 %v883, %v911
        %v933 = vmul.f32 %v888, %v911
        %v934 = vmul.f32 %v893, %v911
        %v935 = vmul.f32 %v898, %v911
        %v936 = vmul.f32 %v903, %v911
        %v937 = vadd.f32 %v737, %v913
        %v938 = vadd.f32 %v738, %v914
        %v939 = vadd.f32 %v739, %v915
        %v940 = vadd.f32 %v740, %v916
        %v941 = vadd.f32 %v741, %v917
        %v942 = vadd.f32 %v742, %v918
        %v943 = vadd.f32 %v743, %v919
        %v944 = vadd.f32 %v744, %v920
        %v945 = vadd.f32 %v745, %v921
        %v946 = vadd.f32 %v746, %v922
        %v947 = vadd.f32 %v747, %v923
        %v948 = vadd.f32 %v748, %v924
        %v949 = vadd.f32 %v749, %v925
        %v950 = vadd.f32 %v750, %v926
        %v951 = vadd.f32 %v751, %v927
        %v952 = vadd.f32 %v752, %v928
        %v953 = vadd.f32 %v753, %v929
        %v954 = vadd.f32 %v754, %v930
        %v955 = vadd.f32 %v755, %v931
        %v956 = vadd.f32 %v756, %v932
        %v957 = vadd.f32 %v757, %v933
        %v958 = vadd.f32 %v758, %v934
        %v959 = vadd.f32 %v759, %v935
        %v960 = vadd.f32 %v760, %v936
        %v961 = vld [vmem:[%s384 + $0x101] sm:$0xff]
        %v962 = vld [vmem:[%s384 + $0x109] sm:$0xff]
        %v963 = vld [vmem:[%s384 + $0x111] sm:$0xff]
        %v964 = vld [vmem:[%s384 + $0x119] sm:$0xff]
        %v965 = vld [vmem:[%s384 + $0x121] sm:$0xff]
        %v966 = vld [vmem:[%s384 + $0x129] sm:$0xff]
        %v967 = vld [vmem:[%s384 + $0x131] sm:$0xff]
        %v968 = vld [vmem:[%s384 + $0x139] sm:$0xff]
        %v969 = vld [vmem:[%s384 + $0x141] sm:$0xff]
        %v970 = vld [vmem:[%s384 + $0x149] sm:$0xff]
        %v971 = vld [vmem:[%s384 + $0x151] sm:$0xff]
        %v972 = vld [vmem:[%s384 + $0x159] sm:$0xff]
        %v973 = vld [vmem:[%s384 + $0x161] sm:$0xff]
        %v974 = vld [vmem:[%s384 + $0x169] sm:$0xff]
        %v975 = vld [vmem:[%s384 + $0x171] sm:$0xff]
        %v976 = vld [vmem:[%s384 + $0x179] sm:$0xff]
        %v977 = vld [vmem:[%s384 + $0x181] sm:$0xff]
        %v978 = vld [vmem:[%s384 + $0x189] sm:$0xff]
        %v979 = vld [vmem:[%s384 + $0x191] sm:$0xff]
        %v980 = vld [vmem:[%s384 + $0x199] sm:$0xff]
        %v981 = vld [vmem:[%s384 + $0x1a1] sm:$0xff]
        %v982 = vld [vmem:[%s384 + $0x1a9] sm:$0xff]
        %v983 = vld [vmem:[%s384 + $0x1b1] sm:$0xff]
        %v984 = vld [vmem:[%s384 + $0x1b9] sm:$0xf]
        %986 = vset.pattern.permute.xlu0 0
        %987 = vperm.xlu0 %986, %v961
        %v988 = vpop.permute.xlu0 %987
        %991 = vset.pattern.permute.xlu0 0
        %992 = vperm.xlu0 %991, %v962
        %v993 = vpop.permute.xlu0 %992
        %996 = vset.pattern.permute.xlu0 0
        %997 = vperm.xlu0 %996, %v963
        %v998 = vpop.permute.xlu0 %997
        %1001 = vset.pattern.permute.xlu0 0
        %1002 = vperm.xlu0 %1001, %v964
        %v1003 = vpop.permute.xlu0 %1002
        %1006 = vset.pattern.permute.xlu0 0
        %1007 = vperm.xlu0 %1006, %v965
        %v1008 = vpop.permute.xlu0 %1007
        %1011 = vset.pattern.permute.xlu0 0
        %1012 = vperm.xlu0 %1011, %v966
        %v1013 = vpop.permute.xlu0 %1012
        %1016 = vset.pattern.permute.xlu0 0
        %1017 = vperm.xlu0 %1016, %v967
        %v1018 = vpop.permute.xlu0 %1017
        %1021 = vset.pattern.permute.xlu0 0
        %1022 = vperm.xlu0 %1021, %v968
        %v1023 = vpop.permute.xlu0 %1022
        %1026 = vset.pattern.permute.xlu0 0
        %1027 = vperm.xlu0 %1026, %v969
        %v1028 = vpop.permute.xlu0 %1027
        %1031 = vset.pattern.permute.xlu0 0
        %1032 = vperm.xlu0 %1031, %v970
        %v1033 = vpop.permute.xlu0 %1032
        %1036 = vset.pattern.permute.xlu0 0
        %1037 = vperm.xlu0 %1036, %v971
        %v1038 = vpop.permute.xlu0 %1037
        %1041 = vset.pattern.permute.xlu0 0
        %1042 = vperm.xlu0 %1041, %v972
        %v1043 = vpop.permute.xlu0 %1042
        %1046 = vset.pattern.permute.xlu0 0
        %1047 = vperm.xlu0 %1046, %v973
        %v1048 = vpop.permute.xlu0 %1047
        %1051 = vset.pattern.permute.xlu0 0
        %1052 = vperm.xlu0 %1051, %v974
        %v1053 = vpop.permute.xlu0 %1052
        %1056 = vset.pattern.permute.xlu0 0
        %1057 = vperm.xlu0 %1056, %v975
        %v1058 = vpop.permute.xlu0 %1057
        %1061 = vset.pattern.permute.xlu0 0
        %1062 = vperm.xlu0 %1061, %v976
        %v1063 = vpop.permute.xlu0 %1062
        %1066 = vset.pattern.permute.xlu0 0
        %1067 = vperm.xlu0 %1066, %v977
        %v1068 = vpop.permute.xlu0 %1067
        %1071 = vset.pattern.permute.xlu0 0
        %1072 = vperm.xlu0 %1071, %v978
        %v1073 = vpop.permute.xlu0 %1072
        %1076 = vset.pattern.permute.xlu0 0
        %1077 = vperm.xlu0 %1076, %v979
        %v1078 = vpop.permute.xlu0 %1077
        %1081 = vset.pattern.permute.xlu0 0
        %1082 = vperm.xlu0 %1081, %v980
        %v1083 = vpop.permute.xlu0 %1082
        %1086 = vset.pattern.permute.xlu0 0
        %1087 = vperm.xlu0 %1086, %v981
        %v1088 = vpop.permute.xlu0 %1087
        %1091 = vset.pattern.permute.xlu0 0
        %1092 = vperm.xlu0 %1091, %v982
        %v1093 = vpop.permute.xlu0 %1092
        %1096 = vset.pattern.permute.xlu0 0
        %1097 = vperm.xlu0 %1096, %v983
        %v1098 = vpop.permute.xlu0 %1097
        %1101 = vset.pattern.permute.xlu0 0
        %1102 = vperm.xlu0 %1101, %v984
        %v1103 = vpop.permute.xlu0 %1102
        %s1105 = scalar_lea.vmem %s1, 3
        %v1106 = vld [vmem:[%s1105] sm:$0x1]
        %v1108 = vlaneseq
        %v1109 = vshrl.u32 %v1108, 7
        %v1110 = vsub.s32 0, %v1109
        %v1111 = vrot.slane %v1106, %v1110
        %v1113 = vmul.f32 %v988, %v1111
        %v1114 = vmul.f32 %v993, %v1111
        %v1115 = vmul.f32 %v998, %v1111
        %v1116 = vmul.f32 %v1003, %v1111
        %v1117 = vmul.f32 %v1008, %v1111
        %v1118 = vmul.f32 %v1013, %v1111
        %v1119 = vmul.f32 %v1018, %v1111
        %v1120 = vmul.f32 %v1023, %v1111
        %v1121 = vmul.f32 %v1028, %v1111
        %v1122 = vmul.f32 %v1033, %v1111
        %v1123 = vmul.f32 %v1038, %v1111
        %v1124 = vmul.f32 %v1043, %v1111
        %v1125 = vmul.f32 %v1048, %v1111
        %v1126 = vmul.f32 %v1053, %v1111
        %v1127 = vmul.f32 %v1058, %v1111
        %v1128 = vmul.f32 %v1063, %v1111
        %v1129 = vmul.f32 %v1068, %v1111
        %v1130 = vmul.f32 %v1073, %v1111
        %v1131 = vmul.f32 %v1078, %v1111
        %v1132 = vmul.f32 %v1083, %v1111
        %v1133 = vmul.f32 %v1088, %v1111
        %v1134 = vmul.f32 %v1093, %v1111
        %v1135 = vmul.f32 %v1098, %v1111
        %v1136 = vmul.f32 %v1103, %v1111
        %v1137 = vadd.f32 %v937, %v1113
        %v1138 = vadd.f32 %v938, %v1114
        %v1139 = vadd.f32 %v939, %v1115
        %v1140 = vadd.f32 %v940, %v1116
        %v1141 = vadd.f32 %v941, %v1117
        %v1142 = vadd.f32 %v942, %v1118
        %v1143 = vadd.f32 %v943, %v1119
        %v1144 = vadd.f32 %v944, %v1120
        %v1145 = vadd.f32 %v945, %v1121
        %v1146 = vadd.f32 %v946, %v1122
        %v1147 = vadd.f32 %v947, %v1123
        %v1148 = vadd.f32 %v948, %v1124
        %v1149 = vadd.f32 %v949, %v1125
        %v1150 = vadd.f32 %v950, %v1126
        %v1151 = vadd.f32 %v951, %v1127
        %v1152 = vadd.f32 %v952, %v1128
        %v1153 = vadd.f32 %v953, %v1129
        %v1154 = vadd.f32 %v954, %v1130
        %v1155 = vadd.f32 %v955, %v1131
        %v1156 = vadd.f32 %v956, %v1132
        %v1157 = vadd.f32 %v957, %v1133
        %v1158 = vadd.f32 %v958, %v1134
        %v1159 = vadd.f32 %v959, %v1135
        %v1160 = vadd.f32 %v960, %v1136
        %v1161 = vld [vmem:[%s384 + $0x200] sm:$0xff]
        %v1162 = vld [vmem:[%s384 + $0x208] sm:$0xff]
        %v1163 = vld [vmem:[%s384 + $0x210] sm:$0xff]
        %v1164 = vld [vmem:[%s384 + $0x218] sm:$0xff]
        %v1165 = vld [vmem:[%s384 + $0x220] sm:$0xff]
        %v1166 = vld [vmem:[%s384 + $0x228] sm:$0xff]
        %v1167 = vld [vmem:[%s384 + $0x230] sm:$0xff]
        %v1168 = vld [vmem:[%s384 + $0x238] sm:$0xff]
        %v1169 = vld [vmem:[%s384 + $0x240] sm:$0xff]
        %v1170 = vld [vmem:[%s384 + $0x248] sm:$0xff]
        %v1171 = vld [vmem:[%s384 + $0x250] sm:$0xff]
        %v1172 = vld [vmem:[%s384 + $0x258] sm:$0xff]
        %v1173 = vld [vmem:[%s384 + $0x260] sm:$0xff]
        %v1174 = vld [vmem:[%s384 + $0x268] sm:$0xff]
        %v1175 = vld [vmem:[%s384 + $0x270] sm:$0xff]
        %v1176 = vld [vmem:[%s384 + $0x278] sm:$0xff]
        %v1177 = vld [vmem:[%s384 + $0x280] sm:$0xff]
        %v1178 = vld [vmem:[%s384 + $0x288] sm:$0xff]
        %v1179 = vld [vmem:[%s384 + $0x290] sm:$0xff]
        %v1180 = vld [vmem:[%s384 + $0x298] sm:$0xff]
        %v1181 = vld [vmem:[%s384 + $0x2a0] sm:$0xff]
        %v1182 = vld [vmem:[%s384 + $0x2a8] sm:$0xff]
        %v1183 = vld [vmem:[%s384 + $0x2b0] sm:$0xff]
        %v1184 = vld [vmem:[%s384 + $0x2b8] sm:$0xf]
        %1186 = vset.pattern.permute.xlu0 0
        %1187 = vperm.xlu0 %1186, %v1161
        %v1188 = vpop.permute.xlu0 %1187
        %1191 = vset.pattern.permute.xlu0 0
        %1192 = vperm.xlu0 %1191, %v1162
        %v1193 = vpop.permute.xlu0 %1192
        %1196 = vset.pattern.permute.xlu0 0
        %1197 = vperm.xlu0 %1196, %v1163
        %v1198 = vpop.permute.xlu0 %1197
        %1201 = vset.pattern.permute.xlu0 0
        %1202 = vperm.xlu0 %1201, %v1164
        %v1203 = vpop.permute.xlu0 %1202
        %1206 = vset.pattern.permute.xlu0 0
        %1207 = vperm.xlu0 %1206, %v1165
        %v1208 = vpop.permute.xlu0 %1207
        %1211 = vset.pattern.permute.xlu0 0
        %1212 = vperm.xlu0 %1211, %v1166
        %v1213 = vpop.permute.xlu0 %1212
        %1216 = vset.pattern.permute.xlu0 0
        %1217 = vperm.xlu0 %1216, %v1167
        %v1218 = vpop.permute.xlu0 %1217
        %1221 = vset.pattern.permute.xlu0 0
        %1222 = vperm.xlu0 %1221, %v1168
        %v1223 = vpop.permute.xlu0 %1222
        %1226 = vset.pattern.permute.xlu0 0
        %1227 = vperm.xlu0 %1226, %v1169
        %v1228 = vpop.permute.xlu0 %1227
        %1231 = vset.pattern.permute.xlu0 0
        %1232 = vperm.xlu0 %1231, %v1170
        %v1233 = vpop.permute.xlu0 %1232
        %1236 = vset.pattern.permute.xlu0 0
        %1237 = vperm.xlu0 %1236, %v1171
        %v1238 = vpop.permute.xlu0 %1237
        %1241 = vset.pattern.permute.xlu0 0
        %1242 = vperm.xlu0 %1241, %v1172
        %v1243 = vpop.permute.xlu0 %1242
        %1246 = vset.pattern.permute.xlu0 0
        %1247 = vperm.xlu0 %1246, %v1173
        %v1248 = vpop.permute.xlu0 %1247
        %1251 = vset.pattern.permute.xlu0 0
        %1252 = vperm.xlu0 %1251, %v1174
        %v1253 = vpop.permute.xlu0 %1252
        %1256 = vset.pattern.permute.xlu0 0
        %1257 = vperm.xlu0 %1256, %v1175
        %v1258 = vpop.permute.xlu0 %1257
        %1261 = vset.pattern.permute.xlu0 0
        %1262 = vperm.xlu0 %1261, %v1176
        %v1263 = vpop.permute.xlu0 %1262
        %1266 = vset.pattern.permute.xlu0 0
        %1267 = vperm.xlu0 %1266, %v1177
        %v1268 = vpop.permute.xlu0 %1267
        %1271 = vset.pattern.permute.xlu0 0
        %1272 = vperm.xlu0 %1271, %v1178
        %v1273 = vpop.permute.xlu0 %1272
        %1276 = vset.pattern.permute.xlu0 0
        %1277 = vperm.xlu0 %1276, %v1179
        %v1278 = vpop.permute.xlu0 %1277
        %1281 = vset.pattern.permute.xlu0 0
        %1282 = vperm.xlu0 %1281, %v1180
        %v1283 = vpop.permute.xlu0 %1282
        %1286 = vset.pattern.permute.xlu0 0
        %1287 = vperm.xlu0 %1286, %v1181
        %v1288 = vpop.permute.xlu0 %1287
        %1291 = vset.pattern.permute.xlu0 0
        %1292 = vperm.xlu0 %1291, %v1182
        %v1293 = vpop.permute.xlu0 %1292
        %1296 = vset.pattern.permute.xlu0 0
        %1297 = vperm.xlu0 %1296, %v1183
        %v1298 = vpop.permute.xlu0 %1297
        %1301 = vset.pattern.permute.xlu0 0
        %1302 = vperm.xlu0 %1301, %v1184
        %v1303 = vpop.permute.xlu0 %1302
        %s1305 = scalar_lea.vmem %s1, 4
        %v1306 = vld [vmem:[%s1305] sm:$0x1]
        %v1308 = vlaneseq
        %v1309 = vshrl.u32 %v1308, 7
        %v1310 = vsub.s32 0, %v1309
        %v1311 = vrot.slane %v1306, %v1310
        %v1313 = vmul.f32 %v1188, %v1311
        %v1314 = vmul.f32 %v1193, %v1311
        %v1315 = vmul.f32 %v1198, %v1311
        %v1316 = vmul.f32 %v1203, %v1311
        %v1317 = vmul.f32 %v1208, %v1311
        %v1318 = vmul.f32 %v1213, %v1311
        %v1319 = vmul.f32 %v1218, %v1311
        %v1320 = vmul.f32 %v1223, %v1311
        %v1321 = vmul.f32 %v1228, %v1311
        %v1322 = vmul.f32 %v1233, %v1311
        %v1323 = vmul.f32 %v1238, %v1311
        %v1324 = vmul.f32 %v1243, %v1311
        %v1325 = vmul.f32 %v1248, %v1311
        %v1326 = vmul.f32 %v1253, %v1311
        %v1327 = vmul.f32 %v1258, %v1311
        %v1328 = vmul.f32 %v1263, %v1311
        %v1329 = vmul.f32 %v1268, %v1311
        %v1330 = vmul.f32 %v1273, %v1311
        %v1331 = vmul.f32 %v1278, %v1311
        %v1332 = vmul.f32 %v1283, %v1311
        %v1333 = vmul.f32 %v1288, %v1311
        %v1334 = vmul.f32 %v1293, %v1311
        %v1335 = vmul.f32 %v1298, %v1311
        %v1336 = vmul.f32 %v1303, %v1311
        %v1337 = vadd.f32 %v1137, %v1313
        %v1338 = vadd.f32 %v1138, %v1314
        %v1339 = vadd.f32 %v1139, %v1315
        %v1340 = vadd.f32 %v1140, %v1316
        %v1341 = vadd.f32 %v1141, %v1317
        %v1342 = vadd.f32 %v1142, %v1318
        %v1343 = vadd.f32 %v1143, %v1319
        %v1344 = vadd.f32 %v1144, %v1320
        %v1345 = vadd.f32 %v1145, %v1321
        %v1346 = vadd.f32 %v1146, %v1322
        %v1347 = vadd.f32 %v1147, %v1323
        %v1348 = vadd.f32 %v1148, %v1324
        %v1349 = vadd.f32 %v1149, %v1325
        %v1350 = vadd.f32 %v1150, %v1326
        %v1351 = vadd.f32 %v1151, %v1327
        %v1352 = vadd.f32 %v1152, %v1328
        %v1353 = vadd.f32 %v1153, %v1329
        %v1354 = vadd.f32 %v1154, %v1330
        %v1355 = vadd.f32 %v1155, %v1331
        %v1356 = vadd.f32 %v1156, %v1332
        %v1357 = vadd.f32 %v1157, %v1333
        %v1358 = vadd.f32 %v1158, %v1334
        %v1359 = vadd.f32 %v1159, %v1335
        %v1360 = vadd.f32 %v1160, %v1336
        %v1361 = vld [vmem:[%s384 + $0x300] sm:$0xff]
        %v1362 = vld [vmem:[%s384 + $0x308] sm:$0xff]
        %v1363 = vld [vmem:[%s384 + $0x310] sm:$0xff]
        %v1364 = vld [vmem:[%s384 + $0x318] sm:$0xff]
        %v1365 = vld [vmem:[%s384 + $0x320] sm:$0xff]
        %v1366 = vld [vmem:[%s384 + $0x328] sm:$0xff]
        %v1367 = vld [vmem:[%s384 + $0x330] sm:$0xff]
        %v1368 = vld [vmem:[%s384 + $0x338] sm:$0xff]
        %v1369 = vld [vmem:[%s384 + $0x340] sm:$0xff]
        %v1370 = vld [vmem:[%s384 + $0x348] sm:$0xff]
        %v1371 = vld [vmem:[%s384 + $0x350] sm:$0xff]
        %v1372 = vld [vmem:[%s384 + $0x358] sm:$0xff]
        %v1373 = vld [vmem:[%s384 + $0x360] sm:$0xff]
        %v1374 = vld [vmem:[%s384 + $0x368] sm:$0xff]
        %v1375 = vld [vmem:[%s384 + $0x370] sm:$0xff]
        %v1376 = vld [vmem:[%s384 + $0x378] sm:$0xff]
        %v1377 = vld [vmem:[%s384 + $0x380] sm:$0xff]
        %v1378 = vld [vmem:[%s384 + $0x388] sm:$0xff]
        %v1379 = vld [vmem:[%s384 + $0x390] sm:$0xff]
        %v1380 = vld [vmem:[%s384 + $0x398] sm:$0xff]
        %v1381 = vld [vmem:[%s384 + $0x3a0] sm:$0xff]
        %v1382 = vld [vmem:[%s384 + $0x3a8] sm:$0xff]
        %v1383 = vld [vmem:[%s384 + $0x3b0] sm:$0xff]
        %v1384 = vld [vmem:[%s384 + $0x3b8] sm:$0xf]
        %1386 = vset.pattern.permute.xlu0 0
        %1387 = vperm.xlu0 %1386, %v1361
        %v1388 = vpop.permute.xlu0 %1387
        %1391 = vset.pattern.permute.xlu0 0
        %1392 = vperm.xlu0 %1391, %v1362
        %v1393 = vpop.permute.xlu0 %1392
        %1396 = vset.pattern.permute.xlu0 0
        %1397 = vperm.xlu0 %1396, %v1363
        %v1398 = vpop.permute.xlu0 %1397
        %1401 = vset.pattern.permute.xlu0 0
        %1402 = vperm.xlu0 %1401, %v1364
        %v1403 = vpop.permute.xlu0 %1402
        %1406 = vset.pattern.permute.xlu0 0
        %1407 = vperm.xlu0 %1406, %v1365
        %v1408 = vpop.permute.xlu0 %1407
        %1411 = vset.pattern.permute.xlu0 0
        %1412 = vperm.xlu0 %1411, %v1366
        %v1413 = vpop.permute.xlu0 %1412
        %1416 = vset.pattern.permute.xlu0 0
        %1417 = vperm.xlu0 %1416, %v1367
        %v1418 = vpop.permute.xlu0 %1417
        %1421 = vset.pattern.permute.xlu0 0
        %1422 = vperm.xlu0 %1421, %v1368
        %v1423 = vpop.permute.xlu0 %1422
        %1426 = vset.pattern.permute.xlu0 0
        %1427 = vperm.xlu0 %1426, %v1369
        %v1428 = vpop.permute.xlu0 %1427
        %1431 = vset.pattern.permute.xlu0 0
        %1432 = vperm.xlu0 %1431, %v1370
        %v1433 = vpop.permute.xlu0 %1432
        %1436 = vset.pattern.permute.xlu0 0
        %1437 = vperm.xlu0 %1436, %v1371
        %v1438 = vpop.permute.xlu0 %1437
        %1441 = vset.pattern.permute.xlu0 0
        %1442 = vperm.xlu0 %1441, %v1372
        %v1443 = vpop.permute.xlu0 %1442
        %1446 = vset.pattern.permute.xlu0 0
        %1447 = vperm.xlu0 %1446, %v1373
        %v1448 = vpop.permute.xlu0 %1447
        %1451 = vset.pattern.permute.xlu0 0
        %1452 = vperm.xlu0 %1451, %v1374
        %v1453 = vpop.permute.xlu0 %1452
        %1456 = vset.pattern.permute.xlu0 0
        %1457 = vperm.xlu0 %1456, %v1375
        %v1458 = vpop.permute.xlu0 %1457
        %1461 = vset.pattern.permute.xlu0 0
        %1462 = vperm.xlu0 %1461, %v1376
        %v1463 = vpop.permute.xlu0 %1462
        %1466 = vset.pattern.permute.xlu0 0
        %1467 = vperm.xlu0 %1466, %v1377
        %v1468 = vpop.permute.xlu0 %1467
        %1471 = vset.pattern.permute.xlu0 0
        %1472 = vperm.xlu0 %1471, %v1378
        %v1473 = vpop.permute.xlu0 %1472
        %1476 = vset.pattern.permute.xlu0 0
        %1477 = vperm.xlu0 %1476, %v1379
        %v1478 = vpop.permute.xlu0 %1477
        %1481 = vset.pattern.permute.xlu0 0
        %1482 = vperm.xlu0 %1481, %v1380
        %v1483 = vpop.permute.xlu0 %1482
        %1486 = vset.pattern.permute.xlu0 0
        %1487 = vperm.xlu0 %1486, %v1381
        %v1488 = vpop.permute.xlu0 %1487
        %1491 = vset.pattern.permute.xlu0 0
        %1492 = vperm.xlu0 %1491, %v1382
        %v1493 = vpop.permute.xlu0 %1492
        %1496 = vset.pattern.permute.xlu0 0
        %1497 = vperm.xlu0 %1496, %v1383
        %v1498 = vpop.permute.xlu0 %1497
        %1501 = vset.pattern.permute.xlu0 0
        %1502 = vperm.xlu0 %1501, %v1384
        %v1503 = vpop.permute.xlu0 %1502
        %s1505 = scalar_lea.vmem %s1, 5
        %v1506 = vld [vmem:[%s1505] sm:$0x1]
        %v1508 = vlaneseq
        %v1509 = vshrl.u32 %v1508, 7
        %v1510 = vsub.s32 0, %v1509
        %v1511 = vrot.slane %v1506, %v1510
        %v1513 = vmul.f32 %v1388, %v1511
        %v1514 = vmul.f32 %v1393, %v1511
        %v1515 = vmul.f32 %v1398, %v1511
        %v1516 = vmul.f32 %v1403, %v1511
        %v1517 = vmul.f32 %v1408, %v1511
        %v1518 = vmul.f32 %v1413, %v1511
        %v1519 = vmul.f32 %v1418, %v1511
        %v1520 = vmul.f32 %v1423, %v1511
        %v1521 = vmul.f32 %v1428, %v1511
        %v1522 = vmul.f32 %v1433, %v1511
        %v1523 = vmul.f32 %v1438, %v1511
        %v1524 = vmul.f32 %v1443, %v1511
        %v1525 = vmul.f32 %v1448, %v1511
        %v1526 = vmul.f32 %v1453, %v1511
        %v1527 = vmul.f32 %v1458, %v1511
        %v1528 = vmul.f32 %v1463, %v1511
        %v1529 = vmul.f32 %v1468, %v1511
        %v1530 = vmul.f32 %v1473, %v1511
        %v1531 = vmul.f32 %v1478, %v1511
        %v1532 = vmul.f32 %v1483, %v1511
        %v1533 = vmul.f32 %v1488, %v1511
        %v1534 = vmul.f32 %v1493, %v1511
        %v1535 = vmul.f32 %v1498, %v1511
        %v1536 = vmul.f32 %v1503, %v1511
        %v1537 = vadd.f32 %v1337, %v1513
        %v1538 = vadd.f32 %v1338, %v1514
        %v1539 = vadd.f32 %v1339, %v1515
        %v1540 = vadd.f32 %v1340, %v1516
        %v1541 = vadd.f32 %v1341, %v1517
        %v1542 = vadd.f32 %v1342, %v1518
        %v1543 = vadd.f32 %v1343, %v1519
        %v1544 = vadd.f32 %v1344, %v1520
        %v1545 = vadd.f32 %v1345, %v1521
        %v1546 = vadd.f32 %v1346, %v1522
        %v1547 = vadd.f32 %v1347, %v1523
        %v1548 = vadd.f32 %v1348, %v1524
        %v1549 = vadd.f32 %v1349, %v1525
        %v1550 = vadd.f32 %v1350, %v1526
        %v1551 = vadd.f32 %v1351, %v1527
        %v1552 = vadd.f32 %v1352, %v1528
        %v1553 = vadd.f32 %v1353, %v1529
        %v1554 = vadd.f32 %v1354, %v1530
        %v1555 = vadd.f32 %v1355, %v1531
        %v1556 = vadd.f32 %v1356, %v1532
        %v1557 = vadd.f32 %v1357, %v1533
        %v1558 = vadd.f32 %v1358, %v1534
        %v1559 = vadd.f32 %v1359, %v1535
        %v1560 = vadd.f32 %v1360, %v1536
        %v1561 = vld [vmem:[%s384 + $0x201] sm:$0xff]
        %v1562 = vld [vmem:[%s384 + $0x209] sm:$0xff]
        %v1563 = vld [vmem:[%s384 + $0x211] sm:$0xff]
        %v1564 = vld [vmem:[%s384 + $0x219] sm:$0xff]
        %v1565 = vld [vmem:[%s384 + $0x221] sm:$0xff]
        %v1566 = vld [vmem:[%s384 + $0x229] sm:$0xff]
        %v1567 = vld [vmem:[%s384 + $0x231] sm:$0xff]
        %v1568 = vld [vmem:[%s384 + $0x239] sm:$0xff]
        %v1569 = vld [vmem:[%s384 + $0x241] sm:$0xff]
        %v1570 = vld [vmem:[%s384 + $0x249] sm:$0xff]
        %v1571 = vld [vmem:[%s384 + $0x251] sm:$0xff]
        %v1572 = vld [vmem:[%s384 + $0x259] sm:$0xff]
        %v1573 = vld [vmem:[%s384 + $0x261] sm:$0xff]
        %v1574 = vld [vmem:[%s384 + $0x269] sm:$0xff]
        %v1575 = vld [vmem:[%s384 + $0x271] sm:$0xff]
        %v1576 = vld [vmem:[%s384 + $0x279] sm:$0xff]
        %v1577 = vld [vmem:[%s384 + $0x281] sm:$0xff]
        %v1578 = vld [vmem:[%s384 + $0x289] sm:$0xff]
        %v1579 = vld [vmem:[%s384 + $0x291] sm:$0xff]
        %v1580 = vld [vmem:[%s384 + $0x299] sm:$0xff]
        %v1581 = vld [vmem:[%s384 + $0x2a1] sm:$0xff]
        %v1582 = vld [vmem:[%s384 + $0x2a9] sm:$0xff]
        %v1583 = vld [vmem:[%s384 + $0x2b1] sm:$0xff]
        %v1584 = vld [vmem:[%s384 + $0x2b9] sm:$0xf]
        %1586 = vset.pattern.permute.xlu0 0
        %1587 = vperm.xlu0 %1586, %v1561
        %v1588 = vpop.permute.xlu0 %1587
        %1591 = vset.pattern.permute.xlu0 0
        %1592 = vperm.xlu0 %1591, %v1562
        %v1593 = vpop.permute.xlu0 %1592
        %1596 = vset.pattern.permute.xlu0 0
        %1597 = vperm.xlu0 %1596, %v1563
        %v1598 = vpop.permute.xlu0 %1597
        %1601 = vset.pattern.permute.xlu0 0
        %1602 = vperm.xlu0 %1601, %v1564
        %v1603 = vpop.permute.xlu0 %1602
        %1606 = vset.pattern.permute.xlu0 0
        %1607 = vperm.xlu0 %1606, %v1565
        %v1608 = vpop.permute.xlu0 %1607
        %1611 = vset.pattern.permute.xlu0 0
        %1612 = vperm.xlu0 %1611, %v1566
        %v1613 = vpop.permute.xlu0 %1612
        %1616 = vset.pattern.permute.xlu0 0
        %1617 = vperm.xlu0 %1616, %v1567
        %v1618 = vpop.permute.xlu0 %1617
        %1621 = vset.pattern.permute.xlu0 0
        %1622 = vperm.xlu0 %1621, %v1568
        %v1623 = vpop.permute.xlu0 %1622
        %1626 = vset.pattern.permute.xlu0 0
        %1627 = vperm.xlu0 %1626, %v1569
        %v1628 = vpop.permute.xlu0 %1627
        %1631 = vset.pattern.permute.xlu0 0
        %1632 = vperm.xlu0 %1631, %v1570
        %v1633 = vpop.permute.xlu0 %1632
        %1636 = vset.pattern.permute.xlu0 0
        %1637 = vperm.xlu0 %1636, %v1571
        %v1638 = vpop.permute.xlu0 %1637
        %1641 = vset.pattern.permute.xlu0 0
        %1642 = vperm.xlu0 %1641, %v1572
        %v1643 = vpop.permute.xlu0 %1642
        %1646 = vset.pattern.permute.xlu0 0
        %1647 = vperm.xlu0 %1646, %v1573
        %v1648 = vpop.permute.xlu0 %1647
        %1651 = vset.pattern.permute.xlu0 0
        %1652 = vperm.xlu0 %1651, %v1574
        %v1653 = vpop.permute.xlu0 %1652
        %1656 = vset.pattern.permute.xlu0 0
        %1657 = vperm.xlu0 %1656, %v1575
        %v1658 = vpop.permute.xlu0 %1657
        %1661 = vset.pattern.permute.xlu0 0
        %1662 = vperm.xlu0 %1661, %v1576
        %v1663 = vpop.permute.xlu0 %1662
        %1666 = vset.pattern.permute.xlu0 0
        %1667 = vperm.xlu0 %1666, %v1577
        %v1668 = vpop.permute.xlu0 %1667
        %1671 = vset.pattern.permute.xlu0 0
        %1672 = vperm.xlu0 %1671, %v1578
        %v1673 = vpop.permute.xlu0 %1672
        %1676 = vset.pattern.permute.xlu0 0
        %1677 = vperm.xlu0 %1676, %v1579
        %v1678 = vpop.permute.xlu0 %1677
        %1681 = vset.pattern.permute.xlu0 0
        %1682 = vperm.xlu0 %1681, %v1580
        %v1683 = vpop.permute.xlu0 %1682
        %1686 = vset.pattern.permute.xlu0 0
        %1687 = vperm.xlu0 %1686, %v1581
        %v1688 = vpop.permute.xlu0 %1687
        %1691 = vset.pattern.permute.xlu0 0
        %1692 = vperm.xlu0 %1691, %v1582
        %v1693 = vpop.permute.xlu0 %1692
        %1696 = vset.pattern.permute.xlu0 0
        %1697 = vperm.xlu0 %1696, %v1583
        %v1698 = vpop.permute.xlu0 %1697
        %1701 = vset.pattern.permute.xlu0 0
        %1702 = vperm.xlu0 %1701, %v1584
        %v1703 = vpop.permute.xlu0 %1702
        %s1705 = scalar_lea.vmem %s1, 6
        %v1706 = vld [vmem:[%s1705] sm:$0x1]
        %v1708 = vlaneseq
        %v1709 = vshrl.u32 %v1708, 7
        %v1710 = vsub.s32 0, %v1709
        %v1711 = vrot.slane %v1706, %v1710
        %v1713 = vmul.f32 %v1588, %v1711
        %v1714 = vmul.f32 %v1593, %v1711
        %v1715 = vmul.f32 %v1598, %v1711
        %v1716 = vmul.f32 %v1603, %v1711
        %v1717 = vmul.f32 %v1608, %v1711
        %v1718 = vmul.f32 %v1613, %v1711
        %v1719 = vmul.f32 %v1618, %v1711
        %v1720 = vmul.f32 %v1623, %v1711
        %v1721 = vmul.f32 %v1628, %v1711
        %v1722 = vmul.f32 %v1633, %v1711
        %v1723 = vmul.f32 %v1638, %v1711
        %v1724 = vmul.f32 %v1643, %v1711
        %v1725 = vmul.f32 %v1648, %v1711
        %v1726 = vmul.f32 %v1653, %v1711
        %v1727 = vmul.f32 %v1658, %v1711
        %v1728 = vmul.f32 %v1663, %v1711
        %v1729 = vmul.f32 %v1668, %v1711
        %v1730 = vmul.f32 %v1673, %v1711
        %v1731 = vmul.f32 %v1678, %v1711
        %v1732 = vmul.f32 %v1683, %v1711
        %v1733 = vmul.f32 %v1688, %v1711
        %v1734 = vmul.f32 %v1693, %v1711
        %v1735 = vmul.f32 %v1698, %v1711
        %v1736 = vmul.f32 %v1703, %v1711
        %v1737 = vadd.f32 %v1537, %v1713
        %v1738 = vadd.f32 %v1538, %v1714
        %v1739 = vadd.f32 %v1539, %v1715
        %v1740 = vadd.f32 %v1540, %v1716
        %v1741 = vadd.f32 %v1541, %v1717
        %v1742 = vadd.f32 %v1542, %v1718
        %v1743 = vadd.f32 %v1543, %v1719
        %v1744 = vadd.f32 %v1544, %v1720
        %v1745 = vadd.f32 %v1545, %v1721
        %v1746 = vadd.f32 %v1546, %v1722
        %v1747 = vadd.f32 %v1547, %v1723
        %v1748 = vadd.f32 %v1548, %v1724
        %v1749 = vadd.f32 %v1549, %v1725
        %v1750 = vadd.f32 %v1550, %v1726
        %v1751 = vadd.f32 %v1551, %v1727
        %v1752 = vadd.f32 %v1552, %v1728
        %v1753 = vadd.f32 %v1553, %v1729
        %v1754 = vadd.f32 %v1554, %v1730
        %v1755 = vadd.f32 %v1555, %v1731
        %v1756 = vadd.f32 %v1556, %v1732
        %v1757 = vadd.f32 %v1557, %v1733
        %v1758 = vadd.f32 %v1558, %v1734
        %v1759 = vadd.f32 %v1559, %v1735
        %v1760 = vadd.f32 %v1560, %v1736
        %v1761 = vld [vmem:[%s384 + $0x301] sm:$0xff]
        %v1762 = vld [vmem:[%s384 + $0x309] sm:$0xff]
        %v1763 = vld [vmem:[%s384 + $0x311] sm:$0xff]
        %v1764 = vld [vmem:[%s384 + $0x319] sm:$0xff]
        %v1765 = vld [vmem:[%s384 + $0x321] sm:$0xff]
        %v1766 = vld [vmem:[%s384 + $0x329] sm:$0xff]
        %v1767 = vld [vmem:[%s384 + $0x331] sm:$0xff]
        %v1768 = vld [vmem:[%s384 + $0x339] sm:$0xff]
        %v1769 = vld [vmem:[%s384 + $0x341] sm:$0xff]
        %v1770 = vld [vmem:[%s384 + $0x349] sm:$0xff]
        %v1771 = vld [vmem:[%s384 + $0x351] sm:$0xff]
        %v1772 = vld [vmem:[%s384 + $0x359] sm:$0xff]
        %v1773 = vld [vmem:[%s384 + $0x361] sm:$0xff]
        %v1774 = vld [vmem:[%s384 + $0x369] sm:$0xff]
        %v1775 = vld [vmem:[%s384 + $0x371] sm:$0xff]
        %v1776 = vld [vmem:[%s384 + $0x379] sm:$0xff]
        %v1777 = vld [vmem:[%s384 + $0x381] sm:$0xff]
        %v1778 = vld [vmem:[%s384 + $0x389] sm:$0xff]
        %v1779 = vld [vmem:[%s384 + $0x391] sm:$0xff]
        %v1780 = vld [vmem:[%s384 + $0x399] sm:$0xff]
        %v1781 = vld [vmem:[%s384 + $0x3a1] sm:$0xff]
        %v1782 = vld [vmem:[%s384 + $0x3a9] sm:$0xff]
        %v1783 = vld [vmem:[%s384 + $0x3b1] sm:$0xff]
        %v1784 = vld [vmem:[%s384 + $0x3b9] sm:$0xf]
        %1786 = vset.pattern.permute.xlu0 0
        %1787 = vperm.xlu0 %1786, %v1761
        %v1788 = vpop.permute.xlu0 %1787
        %1791 = vset.pattern.permute.xlu0 0
        %1792 = vperm.xlu0 %1791, %v1762
        %v1793 = vpop.permute.xlu0 %1792
        %1796 = vset.pattern.permute.xlu0 0
        %1797 = vperm.xlu0 %1796, %v1763
        %v1798 = vpop.permute.xlu0 %1797
        %1801 = vset.pattern.permute.xlu0 0
        %1802 = vperm.xlu0 %1801, %v1764
        %v1803 = vpop.permute.xlu0 %1802
        %1806 = vset.pattern.permute.xlu0 0
        %1807 = vperm.xlu0 %1806, %v1765
        %v1808 = vpop.permute.xlu0 %1807
        %1811 = vset.pattern.permute.xlu0 0
        %1812 = vperm.xlu0 %1811, %v1766
        %v1813 = vpop.permute.xlu0 %1812
        %1816 = vset.pattern.permute.xlu0 0
        %1817 = vperm.xlu0 %1816, %v1767
        %v1818 = vpop.permute.xlu0 %1817
        %1821 = vset.pattern.permute.xlu0 0
        %1822 = vperm.xlu0 %1821, %v1768
        %v1823 = vpop.permute.xlu0 %1822
        %1826 = vset.pattern.permute.xlu0 0
        %1827 = vperm.xlu0 %1826, %v1769
        %v1828 = vpop.permute.xlu0 %1827
        %1831 = vset.pattern.permute.xlu0 0
        %1832 = vperm.xlu0 %1831, %v1770
        %v1833 = vpop.permute.xlu0 %1832
        %1836 = vset.pattern.permute.xlu0 0
        %1837 = vperm.xlu0 %1836, %v1771
        %v1838 = vpop.permute.xlu0 %1837
        %1841 = vset.pattern.permute.xlu0 0
        %1842 = vperm.xlu0 %1841, %v1772
        %v1843 = vpop.permute.xlu0 %1842
        %1846 = vset.pattern.permute.xlu0 0
        %1847 = vperm.xlu0 %1846, %v1773
        %v1848 = vpop.permute.xlu0 %1847
        %1851 = vset.pattern.permute.xlu0 0
        %1852 = vperm.xlu0 %1851, %v1774
        %v1853 = vpop.permute.xlu0 %1852
        %1856 = vset.pattern.permute.xlu0 0
        %1857 = vperm.xlu0 %1856, %v1775
        %v1858 = vpop.permute.xlu0 %1857
        %1861 = vset.pattern.permute.xlu0 0
        %1862 = vperm.xlu0 %1861, %v1776
        %v1863 = vpop.permute.xlu0 %1862
        %1866 = vset.pattern.permute.xlu0 0
        %1867 = vperm.xlu0 %1866, %v1777
        %v1868 = vpop.permute.xlu0 %1867
        %1871 = vset.pattern.permute.xlu0 0
        %1872 = vperm.xlu0 %1871, %v1778
        %v1873 = vpop.permute.xlu0 %1872
        %1876 = vset.pattern.permute.xlu0 0
        %1877 = vperm.xlu0 %1876, %v1779
        %v1878 = vpop.permute.xlu0 %1877
        %1881 = vset.pattern.permute.xlu0 0
        %1882 = vperm.xlu0 %1881, %v1780
        %v1883 = vpop.permute.xlu0 %1882
        %1886 = vset.pattern.permute.xlu0 0
        %1887 = vperm.xlu0 %1886, %v1781
        %v1888 = vpop.permute.xlu0 %1887
        %1891 = vset.pattern.permute.xlu0 0
        %1892 = vperm.xlu0 %1891, %v1782
        %v1893 = vpop.permute.xlu0 %1892
        %1896 = vset.pattern.permute.xlu0 0
        %1897 = vperm.xlu0 %1896, %v1783
        %v1898 = vpop.permute.xlu0 %1897
        %1901 = vset.pattern.permute.xlu0 0
        %1902 = vperm.xlu0 %1901, %v1784
        %v1903 = vpop.permute.xlu0 %1902
        %s1905 = scalar_lea.vmem %s1, 7
        %v1906 = vld [vmem:[%s1905] sm:$0x1]
        %v1908 = vlaneseq
        %v1909 = vshrl.u32 %v1908, 7
        %v1910 = vsub.s32 0, %v1909
        %v1911 = vrot.slane %v1906, %v1910
        %v1913 = vmul.f32 %v1788, %v1911
        %v1914 = vmul.f32 %v1793, %v1911
        %v1915 = vmul.f32 %v1798, %v1911
        %v1916 = vmul.f32 %v1803, %v1911
        %v1917 = vmul.f32 %v1808, %v1911
        %v1918 = vmul.f32 %v1813, %v1911
        %v1919 = vmul.f32 %v1818, %v1911
        %v1920 = vmul.f32 %v1823, %v1911
        %v1921 = vmul.f32 %v1828, %v1911
        %v1922 = vmul.f32 %v1833, %v1911
        %v1923 = vmul.f32 %v1838, %v1911
        %v1924 = vmul.f32 %v1843, %v1911
        %v1925 = vmul.f32 %v1848, %v1911
        %v1926 = vmul.f32 %v1853, %v1911
        %v1927 = vmul.f32 %v1858, %v1911
        %v1928 = vmul.f32 %v1863, %v1911
        %v1929 = vmul.f32 %v1868, %v1911
        %v1930 = vmul.f32 %v1873, %v1911
        %v1931 = vmul.f32 %v1878, %v1911
        %v1932 = vmul.f32 %v1883, %v1911
        %v1933 = vmul.f32 %v1888, %v1911
        %v1934 = vmul.f32 %v1893, %v1911
        %v1935 = vmul.f32 %v1898, %v1911
        %v1936 = vmul.f32 %v1903, %v1911
        %v1937 = vadd.f32 %v1737, %v1913
        %v1938 = vadd.f32 %v1738, %v1914
        %v1939 = vadd.f32 %v1739, %v1915
        %v1940 = vadd.f32 %v1740, %v1916
        %v1941 = vadd.f32 %v1741, %v1917
        %v1942 = vadd.f32 %v1742, %v1918
        %v1943 = vadd.f32 %v1743, %v1919
        %v1944 = vadd.f32 %v1744, %v1920
        %v1945 = vadd.f32 %v1745, %v1921
        %v1946 = vadd.f32 %v1746, %v1922
        %v1947 = vadd.f32 %v1747, %v1923
        %v1948 = vadd.f32 %v1748, %v1924
        %v1949 = vadd.f32 %v1749, %v1925
        %v1950 = vadd.f32 %v1750, %v1926
        %v1951 = vadd.f32 %v1751, %v1927
        %v1952 = vadd.f32 %v1752, %v1928
        %v1953 = vadd.f32 %v1753, %v1929
        %v1954 = vadd.f32 %v1754, %v1930
        %v1955 = vadd.f32 %v1755, %v1931
        %v1956 = vadd.f32 %v1756, %v1932
        %v1957 = vadd.f32 %v1757, %v1933
        %v1958 = vadd.f32 %v1758, %v1934
        %v1959 = vadd.f32 %v1759, %v1935
        %v1960 = vadd.f32 %v1760, %v1936
        %v1961 = vld [vmem:[%s384 + $0x10] sm:$0xff]
        %v1962 = vld [vmem:[%s384 + $0x18] sm:$0xff]
        %v1963 = vld [vmem:[%s384 + $0x20] sm:$0xff]
        %v1964 = vld [vmem:[%s384 + $0x28] sm:$0xff]
        %v1965 = vld [vmem:[%s384 + $0x30] sm:$0xff]
        %v1966 = vld [vmem:[%s384 + $0x38] sm:$0xff]
        %v1967 = vld [vmem:[%s384 + $0x40] sm:$0xff]
        %v1968 = vld [vmem:[%s384 + $0x48] sm:$0xff]
        %v1969 = vld [vmem:[%s384 + $0x50] sm:$0xff]
        %v1970 = vld [vmem:[%s384 + $0x58] sm:$0xff]
        %v1971 = vld [vmem:[%s384 + $0x60] sm:$0xff]
        %v1972 = vld [vmem:[%s384 + $0x68] sm:$0xff]
        %v1973 = vld [vmem:[%s384 + $0x70] sm:$0xff]
        %v1974 = vld [vmem:[%s384 + $0x78] sm:$0xff]
        %v1975 = vld [vmem:[%s384 + $0x80] sm:$0xff]
        %v1976 = vld [vmem:[%s384 + $0x88] sm:$0xff]
        %v1977 = vld [vmem:[%s384 + $0x90] sm:$0xff]
        %v1978 = vld [vmem:[%s384 + $0x98] sm:$0xff]
        %v1979 = vld [vmem:[%s384 + $0xa0] sm:$0xff]
        %v1980 = vld [vmem:[%s384 + $0xa8] sm:$0xff]
        %v1981 = vld [vmem:[%s384 + $0xb0] sm:$0xff]
        %v1982 = vld [vmem:[%s384 + $0xb8] sm:$0xff]
        %v1983 = vld [vmem:[%s384 + $0xc0] sm:$0xff]
        %v1984 = vld [vmem:[%s384 + $0xc8] sm:$0xf]
        %1986 = vset.pattern.permute.xlu0 0
        %1987 = vperm.xlu0 %1986, %v1961
        %v1988 = vpop.permute.xlu0 %1987
        %1991 = vset.pattern.permute.xlu0 0
        %1992 = vperm.xlu0 %1991, %v1962
        %v1993 = vpop.permute.xlu0 %1992
        %1996 = vset.pattern.permute.xlu0 0
        %1997 = vperm.xlu0 %1996, %v1963
        %v1998 = vpop.permute.xlu0 %1997
        %2001 = vset.pattern.permute.xlu0 0
        %2002 = vperm.xlu0 %2001, %v1964
        %v2003 = vpop.permute.xlu0 %2002
        %2006 = vset.pattern.permute.xlu0 0
        %2007 = vperm.xlu0 %2006, %v1965
        %v2008 = vpop.permute.xlu0 %2007
        %2011 = vset.pattern.permute.xlu0 0
        %2012 = vperm.xlu0 %2011, %v1966
        %v2013 = vpop.permute.xlu0 %2012
        %2016 = vset.pattern.permute.xlu0 0
        %2017 = vperm.xlu0 %2016, %v1967
        %v2018 = vpop.permute.xlu0 %2017
        %2021 = vset.pattern.permute.xlu0 0
        %2022 = vperm.xlu0 %2021, %v1968
        %v2023 = vpop.permute.xlu0 %2022
        %2026 = vset.pattern.permute.xlu0 0
        %2027 = vperm.xlu0 %2026, %v1969
        %v2028 = vpop.permute.xlu0 %2027
        %2031 = vset.pattern.permute.xlu0 0
        %2032 = vperm.xlu0 %2031, %v1970
        %v2033 = vpop.permute.xlu0 %2032
        %2036 = vset.pattern.permute.xlu0 0
        %2037 = vperm.xlu0 %2036, %v1971
        %v2038 = vpop.permute.xlu0 %2037
        %2041 = vset.pattern.permute.xlu0 0
        %2042 = vperm.xlu0 %2041, %v1972
        %v2043 = vpop.permute.xlu0 %2042
        %2046 = vset.pattern.permute.xlu0 0
        %2047 = vperm.xlu0 %2046, %v1973
        %v2048 = vpop.permute.xlu0 %2047
        %2051 = vset.pattern.permute.xlu0 0
        %2052 = vperm.xlu0 %2051, %v1974
        %v2053 = vpop.permute.xlu0 %2052
        %2056 = vset.pattern.permute.xlu0 0
        %2057 = vperm.xlu0 %2056, %v1975
        %v2058 = vpop.permute.xlu0 %2057
        %2061 = vset.pattern.permute.xlu0 0
        %2062 = vperm.xlu0 %2061, %v1976
        %v2063 = vpop.permute.xlu0 %2062
        %2066 = vset.pattern.permute.xlu0 0
        %2067 = vperm.xlu0 %2066, %v1977
        %v2068 = vpop.permute.xlu0 %2067
        %2071 = vset.pattern.permute.xlu0 0
        %2072 = vperm.xlu0 %2071, %v1978
        %v2073 = vpop.permute.xlu0 %2072
        %2076 = vset.pattern.permute.xlu0 0
        %2077 = vperm.xlu0 %2076, %v1979
        %v2078 = vpop.permute.xlu0 %2077
        %2081 = vset.pattern.permute.xlu0 0
        %2082 = vperm.xlu0 %2081, %v1980
        %v2083 = vpop.permute.xlu0 %2082
        %2086 = vset.pattern.permute.xlu0 0
        %2087 = vperm.xlu0 %2086, %v1981
        %v2088 = vpop.permute.xlu0 %2087
        %2091 = vset.pattern.permute.xlu0 0
        %2092 = vperm.xlu0 %2091, %v1982
        %v2093 = vpop.permute.xlu0 %2092
        %2096 = vset.pattern.permute.xlu0 0
        %2097 = vperm.xlu0 %2096, %v1983
        %v2098 = vpop.permute.xlu0 %2097
        %2101 = vset.pattern.permute.xlu0 0
        %2102 = vperm.xlu0 %2101, %v1984
        %v2103 = vpop.permute.xlu0 %2102
        %s2105 = scalar_lea.vmem %s1, 8
        %v2106 = vld [vmem:[%s2105] sm:$0x1]
        %v2108 = vlaneseq
        %v2109 = vshrl.u32 %v2108, 7
        %v2110 = vsub.s32 0, %v2109
        %v2111 = vrot.slane %v2106, %v2110
        %v2113 = vmul.f32 %v1988, %v2111
        %v2114 = vmul.f32 %v1993, %v2111
        %v2115 = vmul.f32 %v1998, %v2111
        %v2116 = vmul.f32 %v2003, %v2111
        %v2117 = vmul.f32 %v2008, %v2111
        %v2118 = vmul.f32 %v2013, %v2111
        %v2119 = vmul.f32 %v2018, %v2111
        %v2120 = vmul.f32 %v2023, %v2111
        %v2121 = vmul.f32 %v2028, %v2111
        %v2122 = vmul.f32 %v2033, %v2111
        %v2123 = vmul.f32 %v2038, %v2111
        %v2124 = vmul.f32 %v2043, %v2111
        %v2125 = vmul.f32 %v2048, %v2111
        %v2126 = vmul.f32 %v2053, %v2111
        %v2127 = vmul.f32 %v2058, %v2111
        %v2128 = vmul.f32 %v2063, %v2111
        %v2129 = vmul.f32 %v2068, %v2111
        %v2130 = vmul.f32 %v2073, %v2111
        %v2131 = vmul.f32 %v2078, %v2111
        %v2132 = vmul.f32 %v2083, %v2111
        %v2133 = vmul.f32 %v2088, %v2111
        %v2134 = vmul.f32 %v2093, %v2111
        %v2135 = vmul.f32 %v2098, %v2111
        %v2136 = vmul.f32 %v2103, %v2111
        %v2137 = vadd.f32 %v1937, %v2113
        %v2138 = vadd.f32 %v1938, %v2114
        %v2139 = vadd.f32 %v1939, %v2115
        %v2140 = vadd.f32 %v1940, %v2116
        %v2141 = vadd.f32 %v1941, %v2117
        %v2142 = vadd.f32 %v1942, %v2118
        %v2143 = vadd.f32 %v1943, %v2119
        %v2144 = vadd.f32 %v1944, %v2120
        %v2145 = vadd.f32 %v1945, %v2121
        %v2146 = vadd.f32 %v1946, %v2122
        %v2147 = vadd.f32 %v1947, %v2123
        %v2148 = vadd.f32 %v1948, %v2124
        %v2149 = vadd.f32 %v1949, %v2125
        %v2150 = vadd.f32 %v1950, %v2126
        %v2151 = vadd.f32 %v1951, %v2127
        %v2152 = vadd.f32 %v1952, %v2128
        %v2153 = vadd.f32 %v1953, %v2129
        %v2154 = vadd.f32 %v1954, %v2130
        %v2155 = vadd.f32 %v1955, %v2131
        %v2156 = vadd.f32 %v1956, %v2132
        %v2157 = vadd.f32 %v1957, %v2133
        %v2158 = vadd.f32 %v1958, %v2134
        %v2159 = vadd.f32 %v1959, %v2135
        %v2160 = vadd.f32 %v1960, %v2136
        %v2161 = vld [vmem:[%s384 + $0x110] sm:$0xff]
        %v2162 = vld [vmem:[%s384 + $0x118] sm:$0xff]
        %v2163 = vld [vmem:[%s384 + $0x120] sm:$0xff]
        %v2164 = vld [vmem:[%s384 + $0x128] sm:$0xff]
        %v2165 = vld [vmem:[%s384 + $0x130] sm:$0xff]
        %v2166 = vld [vmem:[%s384 + $0x138] sm:$0xff]
        %v2167 = vld [vmem:[%s384 + $0x140] sm:$0xff]
        %v2168 = vld [vmem:[%s384 + $0x148] sm:$0xff]
        %v2169 = vld [vmem:[%s384 + $0x150] sm:$0xff]
        %v2170 = vld [vmem:[%s384 + $0x158] sm:$0xff]
        %v2171 = vld [vmem:[%s384 + $0x160] sm:$0xff]
        %v2172 = vld [vmem:[%s384 + $0x168] sm:$0xff]
        %v2173 = vld [vmem:[%s384 + $0x170] sm:$0xff]
        %v2174 = vld [vmem:[%s384 + $0x178] sm:$0xff]
        %v2175 = vld [vmem:[%s384 + $0x180] sm:$0xff]
        %v2176 = vld [vmem:[%s384 + $0x188] sm:$0xff]
        %v2177 = vld [vmem:[%s384 + $0x190] sm:$0xff]
        %v2178 = vld [vmem:[%s384 + $0x198] sm:$0xff]
        %v2179 = vld [vmem:[%s384 + $0x1a0] sm:$0xff]
        %v2180 = vld [vmem:[%s384 + $0x1a8] sm:$0xff]
        %v2181 = vld [vmem:[%s384 + $0x1b0] sm:$0xff]
        %v2182 = vld [vmem:[%s384 + $0x1b8] sm:$0xff]
        %v2183 = vld [vmem:[%s384 + $0x1c0] sm:$0xff]
        %v2184 = vld [vmem:[%s384 + $0x1c8] sm:$0xf]
        %2186 = vset.pattern.permute.xlu0 0
        %2187 = vperm.xlu0 %2186, %v2161
        %v2188 = vpop.permute.xlu0 %2187
        %2191 = vset.pattern.permute.xlu0 0
        %2192 = vperm.xlu0 %2191, %v2162
        %v2193 = vpop.permute.xlu0 %2192
        %2196 = vset.pattern.permute.xlu0 0
        %2197 = vperm.xlu0 %2196, %v2163
        %v2198 = vpop.permute.xlu0 %2197
        %2201 = vset.pattern.permute.xlu0 0
        %2202 = vperm.xlu0 %2201, %v2164
        %v2203 = vpop.permute.xlu0 %2202
        %2206 = vset.pattern.permute.xlu0 0
        %2207 = vperm.xlu0 %2206, %v2165
        %v2208 = vpop.permute.xlu0 %2207
        %2211 = vset.pattern.permute.xlu0 0
        %2212 = vperm.xlu0 %2211, %v2166
        %v2213 = vpop.permute.xlu0 %2212
        %2216 = vset.pattern.permute.xlu0 0
        %2217 = vperm.xlu0 %2216, %v2167
        %v2218 = vpop.permute.xlu0 %2217
        %2221 = vset.pattern.permute.xlu0 0
        %2222 = vperm.xlu0 %2221, %v2168
        %v2223 = vpop.permute.xlu0 %2222
        %2226 = vset.pattern.permute.xlu0 0
        %2227 = vperm.xlu0 %2226, %v2169
        %v2228 = vpop.permute.xlu0 %2227
        %2231 = vset.pattern.permute.xlu0 0
        %2232 = vperm.xlu0 %2231, %v2170
        %v2233 = vpop.permute.xlu0 %2232
        %2236 = vset.pattern.permute.xlu0 0
        %2237 = vperm.xlu0 %2236, %v2171
        %v2238 = vpop.permute.xlu0 %2237
        %2241 = vset.pattern.permute.xlu0 0
        %2242 = vperm.xlu0 %2241, %v2172
        %v2243 = vpop.permute.xlu0 %2242
        %2246 = vset.pattern.permute.xlu0 0
        %2247 = vperm.xlu0 %2246, %v2173
        %v2248 = vpop.permute.xlu0 %2247
        %2251 = vset.pattern.permute.xlu0 0
        %2252 = vperm.xlu0 %2251, %v2174
        %v2253 = vpop.permute.xlu0 %2252
        %2256 = vset.pattern.permute.xlu0 0
        %2257 = vperm.xlu0 %2256, %v2175
        %v2258 = vpop.permute.xlu0 %2257
        %2261 = vset.pattern.permute.xlu0 0
        %2262 = vperm.xlu0 %2261, %v2176
        %v2263 = vpop.permute.xlu0 %2262
        %2266 = vset.pattern.permute.xlu0 0
        %2267 = vperm.xlu0 %2266, %v2177
        %v2268 = vpop.permute.xlu0 %2267
        %2271 = vset.pattern.permute.xlu0 0
        %2272 = vperm.xlu0 %2271, %v2178
        %v2273 = vpop.permute.xlu0 %2272
        %2276 = vset.pattern.permute.xlu0 0
        %2277 = vperm.xlu0 %2276, %v2179
        %v2278 = vpop.permute.xlu0 %2277
        %2281 = vset.pattern.permute.xlu0 0
        %2282 = vperm.xlu0 %2281, %v2180
        %v2283 = vpop.permute.xlu0 %2282
        %2286 = vset.pattern.permute.xlu0 0
        %2287 = vperm.xlu0 %2286, %v2181
        %v2288 = vpop.permute.xlu0 %2287
        %2291 = vset.pattern.permute.xlu0 0
        %2292 = vperm.xlu0 %2291, %v2182
        %v2293 = vpop.permute.xlu0 %2292
        %2296 = vset.pattern.permute.xlu0 0
        %2297 = vperm.xlu0 %2296, %v2183
        %v2298 = vpop.permute.xlu0 %2297
        %2301 = vset.pattern.permute.xlu0 0
        %2302 = vperm.xlu0 %2301, %v2184
        %v2303 = vpop.permute.xlu0 %2302
        %s2305 = scalar_lea.vmem %s1, 9
        %v2306 = vld [vmem:[%s2305] sm:$0x1]
        %v2308 = vlaneseq
        %v2309 = vshrl.u32 %v2308, 7
        %v2310 = vsub.s32 0, %v2309
        %v2311 = vrot.slane %v2306, %v2310
        %v2313 = vmul.f32 %v2188, %v2311
        %v2314 = vmul.f32 %v2193, %v2311
        %v2315 = vmul.f32 %v2198, %v2311
        %v2316 = vmul.f32 %v2203, %v2311
        %v2317 = vmul.f32 %v2208, %v2311
        %v2318 = vmul.f32 %v2213, %v2311
        %v2319 = vmul.f32 %v2218, %v2311
        %v2320 = vmul.f32 %v2223, %v2311
        %v2321 = vmul.f32 %v2228, %v2311
        %v2322 = vmul.f32 %v2233, %v2311
        %v2323 = vmul.f32 %v2238, %v2311
        %v2324 = vmul.f32 %v2243, %v2311
        %v2325 = vmul.f32 %v2248, %v2311
        %v2326 = vmul.f32 %v2253, %v2311
        %v2327 = vmul.f32 %v2258, %v2311
        %v2328 = vmul.f32 %v2263, %v2311
        %v2329 = vmul.f32 %v2268, %v2311
        %v2330 = vmul.f32 %v2273, %v2311
        %v2331 = vmul.f32 %v2278, %v2311
        %v2332 = vmul.f32 %v2283, %v2311
        %v2333 = vmul.f32 %v2288, %v2311
        %v2334 = vmul.f32 %v2293, %v2311
        %v2335 = vmul.f32 %v2298, %v2311
        %v2336 = vmul.f32 %v2303, %v2311
        %v2337 = vadd.f32 %v2137, %v2313
        %v2338 = vadd.f32 %v2138, %v2314
        %v2339 = vadd.f32 %v2139, %v2315
        %v2340 = vadd.f32 %v2140, %v2316
        %v2341 = vadd.f32 %v2141, %v2317
        %v2342 = vadd.f32 %v2142, %v2318
        %v2343 = vadd.f32 %v2143, %v2319
        %v2344 = vadd.f32 %v2144, %v2320
        %v2345 = vadd.f32 %v2145, %v2321
        %v2346 = vadd.f32 %v2146, %v2322
        %v2347 = vadd.f32 %v2147, %v2323
        %v2348 = vadd.f32 %v2148, %v2324
        %v2349 = vadd.f32 %v2149, %v2325
        %v2350 = vadd.f32 %v2150, %v2326
        %v2351 = vadd.f32 %v2151, %v2327
        %v2352 = vadd.f32 %v2152, %v2328
        %v2353 = vadd.f32 %v2153, %v2329
        %v2354 = vadd.f32 %v2154, %v2330
        %v2355 = vadd.f32 %v2155, %v2331
        %v2356 = vadd.f32 %v2156, %v2332
        %v2357 = vadd.f32 %v2157, %v2333
        %v2358 = vadd.f32 %v2158, %v2334
        %v2359 = vadd.f32 %v2159, %v2335
        %v2360 = vadd.f32 %v2160, %v2336
        %v2361 = vld [vmem:[%s384 + $0x11] sm:$0xff]
        %v2362 = vld [vmem:[%s384 + $0x19] sm:$0xff]
        %v2363 = vld [vmem:[%s384 + $0x21] sm:$0xff]
        %v2364 = vld [vmem:[%s384 + $0x29] sm:$0xff]
        %v2365 = vld [vmem:[%s384 + $0x31] sm:$0xff]
        %v2366 = vld [vmem:[%s384 + $0x39] sm:$0xff]
        %v2367 = vld [vmem:[%s384 + $0x41] sm:$0xff]
        %v2368 = vld [vmem:[%s384 + $0x49] sm:$0xff]
        %v2369 = vld [vmem:[%s384 + $0x51] sm:$0xff]
        %v2370 = vld [vmem:[%s384 + $0x59] sm:$0xff]
        %v2371 = vld [vmem:[%s384 + $0x61] sm:$0xff]
        %v2372 = vld [vmem:[%s384 + $0x69] sm:$0xff]
        %v2373 = vld [vmem:[%s384 + $0x71] sm:$0xff]
        %v2374 = vld [vmem:[%s384 + $0x79] sm:$0xff]
        %v2375 = vld [vmem:[%s384 + $0x81] sm:$0xff]
        %v2376 = vld [vmem:[%s384 + $0x89] sm:$0xff]
        %v2377 = vld [vmem:[%s384 + $0x91] sm:$0xff]
        %v2378 = vld [vmem:[%s384 + $0x99] sm:$0xff]
        %v2379 = vld [vmem:[%s384 + $0xa1] sm:$0xff]
        %v2380 = vld [vmem:[%s384 + $0xa9] sm:$0xff]
        %v2381 = vld [vmem:[%s384 + $0xb1] sm:$0xff]
        %v2382 = vld [vmem:[%s384 + $0xb9] sm:$0xff]
        %v2383 = vld [vmem:[%s384 + $0xc1] sm:$0xff]
        %v2384 = vld [vmem:[%s384 + $0xc9] sm:$0xf]
        %2386 = vset.pattern.permute.xlu0 0
        %2387 = vperm.xlu0 %2386, %v2361
        %v2388 = vpop.permute.xlu0 %2387
        %2391 = vset.pattern.permute.xlu0 0
        %2392 = vperm.xlu0 %2391, %v2362
        %v2393 = vpop.permute.xlu0 %2392
        %2396 = vset.pattern.permute.xlu0 0
        %2397 = vperm.xlu0 %2396, %v2363
        %v2398 = vpop.permute.xlu0 %2397
        %2401 = vset.pattern.permute.xlu0 0
        %2402 = vperm.xlu0 %2401, %v2364
        %v2403 = vpop.permute.xlu0 %2402
        %2406 = vset.pattern.permute.xlu0 0
        %2407 = vperm.xlu0 %2406, %v2365
        %v2408 = vpop.permute.xlu0 %2407
        %2411 = vset.pattern.permute.xlu0 0
        %2412 = vperm.xlu0 %2411, %v2366
        %v2413 = vpop.permute.xlu0 %2412
        %2416 = vset.pattern.permute.xlu0 0
        %2417 = vperm.xlu0 %2416, %v2367
        %v2418 = vpop.permute.xlu0 %2417
        %2421 = vset.pattern.permute.xlu0 0
        %2422 = vperm.xlu0 %2421, %v2368
        %v2423 = vpop.permute.xlu0 %2422
        %2426 = vset.pattern.permute.xlu0 0
        %2427 = vperm.xlu0 %2426, %v2369
        %v2428 = vpop.permute.xlu0 %2427
        %2431 = vset.pattern.permute.xlu0 0
        %2432 = vperm.xlu0 %2431, %v2370
        %v2433 = vpop.permute.xlu0 %2432
        %2436 = vset.pattern.permute.xlu0 0
        %2437 = vperm.xlu0 %2436, %v2371
        %v2438 = vpop.permute.xlu0 %2437
        %2441 = vset.pattern.permute.xlu0 0
        %2442 = vperm.xlu0 %2441, %v2372
        %v2443 = vpop.permute.xlu0 %2442
        %2446 = vset.pattern.permute.xlu0 0
        %2447 = vperm.xlu0 %2446, %v2373
        %v2448 = vpop.permute.xlu0 %2447
        %2451 = vset.pattern.permute.xlu0 0
        %2452 = vperm.xlu0 %2451, %v2374
        %v2453 = vpop.permute.xlu0 %2452
        %2456 = vset.pattern.permute.xlu0 0
        %2457 = vperm.xlu0 %2456, %v2375
        %v2458 = vpop.permute.xlu0 %2457
        %2461 = vset.pattern.permute.xlu0 0
        %2462 = vperm.xlu0 %2461, %v2376
        %v2463 = vpop.permute.xlu0 %2462
        %2466 = vset.pattern.permute.xlu0 0
        %2467 = vperm.xlu0 %2466, %v2377
        %v2468 = vpop.permute.xlu0 %2467
        %2471 = vset.pattern.permute.xlu0 0
        %2472 = vperm.xlu0 %2471, %v2378
        %v2473 = vpop.permute.xlu0 %2472
        %2476 = vset.pattern.permute.xlu0 0
        %2477 = vperm.xlu0 %2476, %v2379
        %v2478 = vpop.permute.xlu0 %2477
        %2481 = vset.pattern.permute.xlu0 0
        %2482 = vperm.xlu0 %2481, %v2380
        %v2483 = vpop.permute.xlu0 %2482
        %2486 = vset.pattern.permute.xlu0 0
        %2487 = vperm.xlu0 %2486, %v2381
        %v2488 = vpop.permute.xlu0 %2487
        %2491 = vset.pattern.permute.xlu0 0
        %2492 = vperm.xlu0 %2491, %v2382
        %v2493 = vpop.permute.xlu0 %2492
        %2496 = vset.pattern.permute.xlu0 0
        %2497 = vperm.xlu0 %2496, %v2383
        %v2498 = vpop.permute.xlu0 %2497
        %2501 = vset.pattern.permute.xlu0 0
        %2502 = vperm.xlu0 %2501, %v2384
        %v2503 = vpop.permute.xlu0 %2502
        %s2505 = scalar_lea.vmem %s1, 10
        %v2506 = vld [vmem:[%s2505] sm:$0x1]
        %v2508 = vlaneseq
        %v2509 = vshrl.u32 %v2508, 7
        %v2510 = vsub.s32 0, %v2509
        %v2511 = vrot.slane %v2506, %v2510
        %v2513 = vmul.f32 %v2388, %v2511
        %v2514 = vmul.f32 %v2393, %v2511
        %v2515 = vmul.f32 %v2398, %v2511
        %v2516 = vmul.f32 %v2403, %v2511
        %v2517 = vmul.f32 %v2408, %v2511
        %v2518 = vmul.f32 %v2413, %v2511
        %v2519 = vmul.f32 %v2418, %v2511
        %v2520 = vmul.f32 %v2423, %v2511
        %v2521 = vmul.f32 %v2428, %v2511
        %v2522 = vmul.f32 %v2433, %v2511
        %v2523 = vmul.f32 %v2438, %v2511
        %v2524 = vmul.f32 %v2443, %v2511
        %v2525 = vmul.f32 %v2448, %v2511
        %v2526 = vmul.f32 %v2453, %v2511
        %v2527 = vmul.f32 %v2458, %v2511
        %v2528 = vmul.f32 %v2463, %v2511
        %v2529 = vmul.f32 %v2468, %v2511
        %v2530 = vmul.f32 %v2473, %v2511
        %v2531 = vmul.f32 %v2478, %v2511
        %v2532 = vmul.f32 %v2483, %v2511
        %v2533 = vmul.f32 %v2488, %v2511
        %v2534 = vmul.f32 %v2493, %v2511
        %v2535 = vmul.f32 %v2498, %v2511
        %v2536 = vmul.f32 %v2503, %v2511
        %v2537 = vadd.f32 %v2337, %v2513
        %v2538 = vadd.f32 %v2338, %v2514
        %v2539 = vadd.f32 %v2339, %v2515
        %v2540 = vadd.f32 %v2340, %v2516
        %v2541 = vadd.f32 %v2341, %v2517
        %v2542 = vadd.f32 %v2342, %v2518
        %v2543 = vadd.f32 %v2343, %v2519
        %v2544 = vadd.f32 %v2344, %v2520
        %v2545 = vadd.f32 %v2345, %v2521
        %v2546 = vadd.f32 %v2346, %v2522
        %v2547 = vadd.f32 %v2347, %v2523
        %v2548 = vadd.f32 %v2348, %v2524
        %v2549 = vadd.f32 %v2349, %v2525
        %v2550 = vadd.f32 %v2350, %v2526
        %v2551 = vadd.f32 %v2351, %v2527
        %v2552 = vadd.f32 %v2352, %v2528
        %v2553 = vadd.f32 %v2353, %v2529
        %v2554 = vadd.f32 %v2354, %v2530
        %v2555 = vadd.f32 %v2355, %v2531
        %v2556 = vadd.f32 %v2356, %v2532
        %v2557 = vadd.f32 %v2357, %v2533
        %v2558 = vadd.f32 %v2358, %v2534
        %v2559 = vadd.f32 %v2359, %v2535
        %v2560 = vadd.f32 %v2360, %v2536
        %v2561 = vld [vmem:[%s384 + $0x111] sm:$0xff]
        %v2562 = vld [vmem:[%s384 + $0x119] sm:$0xff]
        %v2563 = vld [vmem:[%s384 + $0x121] sm:$0xff]
        %v2564 = vld [vmem:[%s384 + $0x129] sm:$0xff]
        %v2565 = vld [vmem:[%s384 + $0x131] sm:$0xff]
        %v2566 = vld [vmem:[%s384 + $0x139] sm:$0xff]
        %v2567 = vld [vmem:[%s384 + $0x141] sm:$0xff]
        %v2568 = vld [vmem:[%s384 + $0x149] sm:$0xff]
        %v2569 = vld [vmem:[%s384 + $0x151] sm:$0xff]
        %v2570 = vld [vmem:[%s384 + $0x159] sm:$0xff]
        %v2571 = vld [vmem:[%s384 + $0x161] sm:$0xff]
        %v2572 = vld [vmem:[%s384 + $0x169] sm:$0xff]
        %v2573 = vld [vmem:[%s384 + $0x171] sm:$0xff]
        %v2574 = vld [vmem:[%s384 + $0x179] sm:$0xff]
        %v2575 = vld [vmem:[%s384 + $0x181] sm:$0xff]
        %v2576 = vld [vmem:[%s384 + $0x189] sm:$0xff]
        %v2577 = vld [vmem:[%s384 + $0x191] sm:$0xff]
        %v2578 = vld [vmem:[%s384 + $0x199] sm:$0xff]
        %v2579 = vld [vmem:[%s384 + $0x1a1] sm:$0xff]
        %v2580 = vld [vmem:[%s384 + $0x1a9] sm:$0xff]
        %v2581 = vld [vmem:[%s384 + $0x1b1] sm:$0xff]
        %v2582 = vld [vmem:[%s384 + $0x1b9] sm:$0xff]
        %v2583 = vld [vmem:[%s384 + $0x1c1] sm:$0xff]
        %v2584 = vld [vmem:[%s384 + $0x1c9] sm:$0xf]
        %2586 = vset.pattern.permute.xlu0 0
        %2587 = vperm.xlu0 %2586, %v2561
        %v2588 = vpop.permute.xlu0 %2587
        %2591 = vset.pattern.permute.xlu0 0
        %2592 = vperm.xlu0 %2591, %v2562
        %v2593 = vpop.permute.xlu0 %2592
        %2596 = vset.pattern.permute.xlu0 0
        %2597 = vperm.xlu0 %2596, %v2563
        %v2598 = vpop.permute.xlu0 %2597
        %2601 = vset.pattern.permute.xlu0 0
        %2602 = vperm.xlu0 %2601, %v2564
        %v2603 = vpop.permute.xlu0 %2602
        %2606 = vset.pattern.permute.xlu0 0
        %2607 = vperm.xlu0 %2606, %v2565
        %v2608 = vpop.permute.xlu0 %2607
        %2611 = vset.pattern.permute.xlu0 0
        %2612 = vperm.xlu0 %2611, %v2566
        %v2613 = vpop.permute.xlu0 %2612
        %2616 = vset.pattern.permute.xlu0 0
        %2617 = vperm.xlu0 %2616, %v2567
        %v2618 = vpop.permute.xlu0 %2617
        %2621 = vset.pattern.permute.xlu0 0
        %2622 = vperm.xlu0 %2621, %v2568
        %v2623 = vpop.permute.xlu0 %2622
        %2626 = vset.pattern.permute.xlu0 0
        %2627 = vperm.xlu0 %2626, %v2569
        %v2628 = vpop.permute.xlu0 %2627
        %2631 = vset.pattern.permute.xlu0 0
        %2632 = vperm.xlu0 %2631, %v2570
        %v2633 = vpop.permute.xlu0 %2632
        %2636 = vset.pattern.permute.xlu0 0
        %2637 = vperm.xlu0 %2636, %v2571
        %v2638 = vpop.permute.xlu0 %2637
        %2641 = vset.pattern.permute.xlu0 0
        %2642 = vperm.xlu0 %2641, %v2572
        %v2643 = vpop.permute.xlu0 %2642
        %2646 = vset.pattern.permute.xlu0 0
        %2647 = vperm.xlu0 %2646, %v2573
        %v2648 = vpop.permute.xlu0 %2647
        %2651 = vset.pattern.permute.xlu0 0
        %2652 = vperm.xlu0 %2651, %v2574
        %v2653 = vpop.permute.xlu0 %2652
        %2656 = vset.pattern.permute.xlu0 0
        %2657 = vperm.xlu0 %2656, %v2575
        %v2658 = vpop.permute.xlu0 %2657
        %2661 = vset.pattern.permute.xlu0 0
        %2662 = vperm.xlu0 %2661, %v2576
        %v2663 = vpop.permute.xlu0 %2662
        %2666 = vset.pattern.permute.xlu0 0
        %2667 = vperm.xlu0 %2666, %v2577
        %v2668 = vpop.permute.xlu0 %2667
        %2671 = vset.pattern.permute.xlu0 0
        %2672 = vperm.xlu0 %2671, %v2578
        %v2673 = vpop.permute.xlu0 %2672
        %2676 = vset.pattern.permute.xlu0 0
        %2677 = vperm.xlu0 %2676, %v2579
        %v2678 = vpop.permute.xlu0 %2677
        %2681 = vset.pattern.permute.xlu0 0
        %2682 = vperm.xlu0 %2681, %v2580
        %v2683 = vpop.permute.xlu0 %2682
        %2686 = vset.pattern.permute.xlu0 0
        %2687 = vperm.xlu0 %2686, %v2581
        %v2688 = vpop.permute.xlu0 %2687
        %2691 = vset.pattern.permute.xlu0 0
        %2692 = vperm.xlu0 %2691, %v2582
        %v2693 = vpop.permute.xlu0 %2692
        %2696 = vset.pattern.permute.xlu0 0
        %2697 = vperm.xlu0 %2696, %v2583
        %v2698 = vpop.permute.xlu0 %2697
        %2701 = vset.pattern.permute.xlu0 0
        %2702 = vperm.xlu0 %2701, %v2584
        %v2703 = vpop.permute.xlu0 %2702
        %s2705 = scalar_lea.vmem %s1, 11
        %v2706 = vld [vmem:[%s2705] sm:$0x1]
        %v2708 = vlaneseq
        %v2709 = vshrl.u32 %v2708, 7
        %v2710 = vsub.s32 0, %v2709
        %v2711 = vrot.slane %v2706, %v2710
        %v2713 = vmul.f32 %v2588, %v2711
        %v2714 = vmul.f32 %v2593, %v2711
        %v2715 = vmul.f32 %v2598, %v2711
        %v2716 = vmul.f32 %v2603, %v2711
        %v2717 = vmul.f32 %v2608, %v2711
        %v2718 = vmul.f32 %v2613, %v2711
        %v2719 = vmul.f32 %v2618, %v2711
        %v2720 = vmul.f32 %v2623, %v2711
        %v2721 = vmul.f32 %v2628, %v2711
        %v2722 = vmul.f32 %v2633, %v2711
        %v2723 = vmul.f32 %v2638, %v2711
        %v2724 = vmul.f32 %v2643, %v2711
        %v2725 = vmul.f32 %v2648, %v2711
        %v2726 = vmul.f32 %v2653, %v2711
        %v2727 = vmul.f32 %v2658, %v2711
        %v2728 = vmul.f32 %v2663, %v2711
        %v2729 = vmul.f32 %v2668, %v2711
        %v2730 = vmul.f32 %v2673, %v2711
        %v2731 = vmul.f32 %v2678, %v2711
        %v2732 = vmul.f32 %v2683, %v2711
        %v2733 = vmul.f32 %v2688, %v2711
        %v2734 = vmul.f32 %v2693, %v2711
        %v2735 = vmul.f32 %v2698, %v2711
        %v2736 = vmul.f32 %v2703, %v2711
        %v2737 = vadd.f32 %v2537, %v2713
        %v2738 = vadd.f32 %v2538, %v2714
        %v2739 = vadd.f32 %v2539, %v2715
        %v2740 = vadd.f32 %v2540, %v2716
        %v2741 = vadd.f32 %v2541, %v2717
        %v2742 = vadd.f32 %v2542, %v2718
        %v2743 = vadd.f32 %v2543, %v2719
        %v2744 = vadd.f32 %v2544, %v2720
        %v2745 = vadd.f32 %v2545, %v2721
        %v2746 = vadd.f32 %v2546, %v2722
        %v2747 = vadd.f32 %v2547, %v2723
        %v2748 = vadd.f32 %v2548, %v2724
        %v2749 = vadd.f32 %v2549, %v2725
        %v2750 = vadd.f32 %v2550, %v2726
        %v2751 = vadd.f32 %v2551, %v2727
        %v2752 = vadd.f32 %v2552, %v2728
        %v2753 = vadd.f32 %v2553, %v2729
        %v2754 = vadd.f32 %v2554, %v2730
        %v2755 = vadd.f32 %v2555, %v2731
        %v2756 = vadd.f32 %v2556, %v2732
        %v2757 = vadd.f32 %v2557, %v2733
        %v2758 = vadd.f32 %v2558, %v2734
        %v2759 = vadd.f32 %v2559, %v2735
        %v2760 = vadd.f32 %v2560, %v2736
        %v2761 = vld [vmem:[%s384 + $0x210] sm:$0xff]
        %v2762 = vld [vmem:[%s384 + $0x218] sm:$0xff]
        %v2763 = vld [vmem:[%s384 + $0x220] sm:$0xff]
        %v2764 = vld [vmem:[%s384 + $0x228] sm:$0xff]
        %v2765 = vld [vmem:[%s384 + $0x230] sm:$0xff]
        %v2766 = vld [vmem:[%s384 + $0x238] sm:$0xff]
        %v2767 = vld [vmem:[%s384 + $0x240] sm:$0xff]
        %v2768 = vld [vmem:[%s384 + $0x248] sm:$0xff]
        %v2769 = vld [vmem:[%s384 + $0x250] sm:$0xff]
        %v2770 = vld [vmem:[%s384 + $0x258] sm:$0xff]
        %v2771 = vld [vmem:[%s384 + $0x260] sm:$0xff]
        %v2772 = vld [vmem:[%s384 + $0x268] sm:$0xff]
        %v2773 = vld [vmem:[%s384 + $0x270] sm:$0xff]
        %v2774 = vld [vmem:[%s384 + $0x278] sm:$0xff]
        %v2775 = vld [vmem:[%s384 + $0x280] sm:$0xff]
        %v2776 = vld [vmem:[%s384 + $0x288] sm:$0xff]
        %v2777 = vld [vmem:[%s384 + $0x290] sm:$0xff]
        %v2778 = vld [vmem:[%s384 + $0x298] sm:$0xff]
        %v2779 = vld [vmem:[%s384 + $0x2a0] sm:$0xff]
        %v2780 = vld [vmem:[%s384 + $0x2a8] sm:$0xff]
        %v2781 = vld [vmem:[%s384 + $0x2b0] sm:$0xff]
        %v2782 = vld [vmem:[%s384 + $0x2b8] sm:$0xff]
        %v2783 = vld [vmem:[%s384 + $0x2c0] sm:$0xff]
        %v2784 = vld [vmem:[%s384 + $0x2c8] sm:$0xf]
        %2786 = vset.pattern.permute.xlu0 0
        %2787 = vperm.xlu0 %2786, %v2761
        %v2788 = vpop.permute.xlu0 %2787
        %2791 = vset.pattern.permute.xlu0 0
        %2792 = vperm.xlu0 %2791, %v2762
        %v2793 = vpop.permute.xlu0 %2792
        %2796 = vset.pattern.permute.xlu0 0
        %2797 = vperm.xlu0 %2796, %v2763
        %v2798 = vpop.permute.xlu0 %2797
        %2801 = vset.pattern.permute.xlu0 0
        %2802 = vperm.xlu0 %2801, %v2764
        %v2803 = vpop.permute.xlu0 %2802
        %2806 = vset.pattern.permute.xlu0 0
        %2807 = vperm.xlu0 %2806, %v2765
        %v2808 = vpop.permute.xlu0 %2807
        %2811 = vset.pattern.permute.xlu0 0
        %2812 = vperm.xlu0 %2811, %v2766
        %v2813 = vpop.permute.xlu0 %2812
        %2816 = vset.pattern.permute.xlu0 0
        %2817 = vperm.xlu0 %2816, %v2767
        %v2818 = vpop.permute.xlu0 %2817
        %2821 = vset.pattern.permute.xlu0 0
        %2822 = vperm.xlu0 %2821, %v2768
        %v2823 = vpop.permute.xlu0 %2822
        %2826 = vset.pattern.permute.xlu0 0
        %2827 = vperm.xlu0 %2826, %v2769
        %v2828 = vpop.permute.xlu0 %2827
        %2831 = vset.pattern.permute.xlu0 0
        %2832 = vperm.xlu0 %2831, %v2770
        %v2833 = vpop.permute.xlu0 %2832
        %2836 = vset.pattern.permute.xlu0 0
        %2837 = vperm.xlu0 %2836, %v2771
        %v2838 = vpop.permute.xlu0 %2837
        %2841 = vset.pattern.permute.xlu0 0
        %2842 = vperm.xlu0 %2841, %v2772
        %v2843 = vpop.permute.xlu0 %2842
        %2846 = vset.pattern.permute.xlu0 0
        %2847 = vperm.xlu0 %2846, %v2773
        %v2848 = vpop.permute.xlu0 %2847
        %2851 = vset.pattern.permute.xlu0 0
        %2852 = vperm.xlu0 %2851, %v2774
        %v2853 = vpop.permute.xlu0 %2852
        %2856 = vset.pattern.permute.xlu0 0
        %2857 = vperm.xlu0 %2856, %v2775
        %v2858 = vpop.permute.xlu0 %2857
        %2861 = vset.pattern.permute.xlu0 0
        %2862 = vperm.xlu0 %2861, %v2776
        %v2863 = vpop.permute.xlu0 %2862
        %2866 = vset.pattern.permute.xlu0 0
        %2867 = vperm.xlu0 %2866, %v2777
        %v2868 = vpop.permute.xlu0 %2867
        %2871 = vset.pattern.permute.xlu0 0
        %2872 = vperm.xlu0 %2871, %v2778
        %v2873 = vpop.permute.xlu0 %2872
        %2876 = vset.pattern.permute.xlu0 0
        %2877 = vperm.xlu0 %2876, %v2779
        %v2878 = vpop.permute.xlu0 %2877
        %2881 = vset.pattern.permute.xlu0 0
        %2882 = vperm.xlu0 %2881, %v2780
        %v2883 = vpop.permute.xlu0 %2882
        %2886 = vset.pattern.permute.xlu0 0
        %2887 = vperm.xlu0 %2886, %v2781
        %v2888 = vpop.permute.xlu0 %2887
        %2891 = vset.pattern.permute.xlu0 0
        %2892 = vperm.xlu0 %2891, %v2782
        %v2893 = vpop.permute.xlu0 %2892
        %2896 = vset.pattern.permute.xlu0 0
        %2897 = vperm.xlu0 %2896, %v2783
        %v2898 = vpop.permute.xlu0 %2897
        %2901 = vset.pattern.permute.xlu0 0
        %2902 = vperm.xlu0 %2901, %v2784
        %v2903 = vpop.permute.xlu0 %2902
        %s2905 = scalar_lea.vmem %s1, 12
        %v2906 = vld [vmem:[%s2905] sm:$0x1]
        %v2908 = vlaneseq
        %v2909 = vshrl.u32 %v2908, 7
        %v2910 = vsub.s32 0, %v2909
        %v2911 = vrot.slane %v2906, %v2910
        %v2913 = vmul.f32 %v2788, %v2911
        %v2914 = vmul.f32 %v2793, %v2911
        %v2915 = vmul.f32 %v2798, %v2911
        %v2916 = vmul.f32 %v2803, %v2911
        %v2917 = vmul.f32 %v2808, %v2911
        %v2918 = vmul.f32 %v2813, %v2911
        %v2919 = vmul.f32 %v2818, %v2911
        %v2920 = vmul.f32 %v2823, %v2911
        %v2921 = vmul.f32 %v2828, %v2911
        %v2922 = vmul.f32 %v2833, %v2911
        %v2923 = vmul.f32 %v2838, %v2911
        %v2924 = vmul.f32 %v2843, %v2911
        %v2925 = vmul.f32 %v2848, %v2911
        %v2926 = vmul.f32 %v2853, %v2911
        %v2927 = vmul.f32 %v2858, %v2911
        %v2928 = vmul.f32 %v2863, %v2911
        %v2929 = vmul.f32 %v2868, %v2911
        %v2930 = vmul.f32 %v2873, %v2911
        %v2931 = vmul.f32 %v2878, %v2911
        %v2932 = vmul.f32 %v2883, %v2911
        %v2933 = vmul.f32 %v2888, %v2911
        %v2934 = vmul.f32 %v2893, %v2911
        %v2935 = vmul.f32 %v2898, %v2911
        %v2936 = vmul.f32 %v2903, %v2911
        %v2937 = vadd.f32 %v2737, %v2913
        %v2938 = vadd.f32 %v2738, %v2914
        %v2939 = vadd.f32 %v2739, %v2915
        %v2940 = vadd.f32 %v2740, %v2916
        %v2941 = vadd.f32 %v2741, %v2917
        %v2942 = vadd.f32 %v2742, %v2918
        %v2943 = vadd.f32 %v2743, %v2919
        %v2944 = vadd.f32 %v2744, %v2920
        %v2945 = vadd.f32 %v2745, %v2921
        %v2946 = vadd.f32 %v2746, %v2922
        %v2947 = vadd.f32 %v2747, %v2923
        %v2948 = vadd.f32 %v2748, %v2924
        %v2949 = vadd.f32 %v2749, %v2925
        %v2950 = vadd.f32 %v2750, %v2926
        %v2951 = vadd.f32 %v2751, %v2927
        %v2952 = vadd.f32 %v2752, %v2928
        %v2953 = vadd.f32 %v2753, %v2929
        %v2954 = vadd.f32 %v2754, %v2930
        %v2955 = vadd.f32 %v2755, %v2931
        %v2956 = vadd.f32 %v2756, %v2932
        %v2957 = vadd.f32 %v2757, %v2933
        %v2958 = vadd.f32 %v2758, %v2934
        %v2959 = vadd.f32 %v2759, %v2935
        %v2960 = vadd.f32 %v2760, %v2936
        %v2961 = vld [vmem:[%s384 + $0x310] sm:$0xff]
        %v2962 = vld [vmem:[%s384 + $0x318] sm:$0xff]
        %v2963 = vld [vmem:[%s384 + $0x320] sm:$0xff]
        %v2964 = vld [vmem:[%s384 + $0x328] sm:$0xff]
        %v2965 = vld [vmem:[%s384 + $0x330] sm:$0xff]
        %v2966 = vld [vmem:[%s384 + $0x338] sm:$0xff]
        %v2967 = vld [vmem:[%s384 + $0x340] sm:$0xff]
        %v2968 = vld [vmem:[%s384 + $0x348] sm:$0xff]
        %v2969 = vld [vmem:[%s384 + $0x350] sm:$0xff]
        %v2970 = vld [vmem:[%s384 + $0x358] sm:$0xff]
        %v2971 = vld [vmem:[%s384 + $0x360] sm:$0xff]
        %v2972 = vld [vmem:[%s384 + $0x368] sm:$0xff]
        %v2973 = vld [vmem:[%s384 + $0x370] sm:$0xff]
        %v2974 = vld [vmem:[%s384 + $0x378] sm:$0xff]
        %v2975 = vld [vmem:[%s384 + $0x380] sm:$0xff]
        %v2976 = vld [vmem:[%s384 + $0x388] sm:$0xff]
        %v2977 = vld [vmem:[%s384 + $0x390] sm:$0xff]
        %v2978 = vld [vmem:[%s384 + $0x398] sm:$0xff]
        %v2979 = vld [vmem:[%s384 + $0x3a0] sm:$0xff]
        %v2980 = vld [vmem:[%s384 + $0x3a8] sm:$0xff]
        %v2981 = vld [vmem:[%s384 + $0x3b0] sm:$0xff]
        %v2982 = vld [vmem:[%s384 + $0x3b8] sm:$0xff]
        %v2983 = vld [vmem:[%s384 + $0x3c0] sm:$0xff]
        %v2984 = vld [vmem:[%s384 + $0x3c8] sm:$0xf]
        %2986 = vset.pattern.permute.xlu0 0
        %2987 = vperm.xlu0 %2986, %v2961
        %v2988 = vpop.permute.xlu0 %2987
        %2991 = vset.pattern.permute.xlu0 0
        %2992 = vperm.xlu0 %2991, %v2962
        %v2993 = vpop.permute.xlu0 %2992
        %2996 = vset.pattern.permute.xlu0 0
        %2997 = vperm.xlu0 %2996, %v2963
        %v2998 = vpop.permute.xlu0 %2997
        %3001 = vset.pattern.permute.xlu0 0
        %3002 = vperm.xlu0 %3001, %v2964
        %v3003 = vpop.permute.xlu0 %3002
        %3006 = vset.pattern.permute.xlu0 0
        %3007 = vperm.xlu0 %3006, %v2965
        %v3008 = vpop.permute.xlu0 %3007
        %3011 = vset.pattern.permute.xlu0 0
        %3012 = vperm.xlu0 %3011, %v2966
        %v3013 = vpop.permute.xlu0 %3012
        %3016 = vset.pattern.permute.xlu0 0
        %3017 = vperm.xlu0 %3016, %v2967
        %v3018 = vpop.permute.xlu0 %3017
        %3021 = vset.pattern.permute.xlu0 0
        %3022 = vperm.xlu0 %3021, %v2968
        %v3023 = vpop.permute.xlu0 %3022
        %3026 = vset.pattern.permute.xlu0 0
        %3027 = vperm.xlu0 %3026, %v2969
        %v3028 = vpop.permute.xlu0 %3027
        %3031 = vset.pattern.permute.xlu0 0
        %3032 = vperm.xlu0 %3031, %v2970
        %v3033 = vpop.permute.xlu0 %3032
        %3036 = vset.pattern.permute.xlu0 0
        %3037 = vperm.xlu0 %3036, %v2971
        %v3038 = vpop.permute.xlu0 %3037
        %3041 = vset.pattern.permute.xlu0 0
        %3042 = vperm.xlu0 %3041, %v2972
        %v3043 = vpop.permute.xlu0 %3042
        %3046 = vset.pattern.permute.xlu0 0
        %3047 = vperm.xlu0 %3046, %v2973
        %v3048 = vpop.permute.xlu0 %3047
        %3051 = vset.pattern.permute.xlu0 0
        %3052 = vperm.xlu0 %3051, %v2974
        %v3053 = vpop.permute.xlu0 %3052
        %3056 = vset.pattern.permute.xlu0 0
        %3057 = vperm.xlu0 %3056, %v2975
        %v3058 = vpop.permute.xlu0 %3057
        %3061 = vset.pattern.permute.xlu0 0
        %3062 = vperm.xlu0 %3061, %v2976
        %v3063 = vpop.permute.xlu0 %3062
        %3066 = vset.pattern.permute.xlu0 0
        %3067 = vperm.xlu0 %3066, %v2977
        %v3068 = vpop.permute.xlu0 %3067
        %3071 = vset.pattern.permute.xlu0 0
        %3072 = vperm.xlu0 %3071, %v2978
        %v3073 = vpop.permute.xlu0 %3072
        %3076 = vset.pattern.permute.xlu0 0
        %3077 = vperm.xlu0 %3076, %v2979
        %v3078 = vpop.permute.xlu0 %3077
        %3081 = vset.pattern.permute.xlu0 0
        %3082 = vperm.xlu0 %3081, %v2980
        %v3083 = vpop.permute.xlu0 %3082
        %3086 = vset.pattern.permute.xlu0 0
        %3087 = vperm.xlu0 %3086, %v2981
        %v3088 = vpop.permute.xlu0 %3087
        %3091 = vset.pattern.permute.xlu0 0
        %3092 = vperm.xlu0 %3091, %v2982
        %v3093 = vpop.permute.xlu0 %3092
        %3096 = vset.pattern.permute.xlu0 0
        %3097 = vperm.xlu0 %3096, %v2983
        %v3098 = vpop.permute.xlu0 %3097
        %3101 = vset.pattern.permute.xlu0 0
        %3102 = vperm.xlu0 %3101, %v2984
        %v3103 = vpop.permute.xlu0 %3102
        %s3105 = scalar_lea.vmem %s1, 13
        %v3106 = vld [vmem:[%s3105] sm:$0x1]
        %v3108 = vlaneseq
        %v3109 = vshrl.u32 %v3108, 7
        %v3110 = vsub.s32 0, %v3109
        %v3111 = vrot.slane %v3106, %v3110
        %v3113 = vmul.f32 %v2988, %v3111
        %v3114 = vmul.f32 %v2993, %v3111
        %v3115 = vmul.f32 %v2998, %v3111
        %v3116 = vmul.f32 %v3003, %v3111
        %v3117 = vmul.f32 %v3008, %v3111
        %v3118 = vmul.f32 %v3013, %v3111
        %v3119 = vmul.f32 %v3018, %v3111
        %v3120 = vmul.f32 %v3023, %v3111
        %v3121 = vmul.f32 %v3028, %v3111
        %v3122 = vmul.f32 %v3033, %v3111
        %v3123 = vmul.f32 %v3038, %v3111
        %v3124 = vmul.f32 %v3043, %v3111
        %v3125 = vmul.f32 %v3048, %v3111
        %v3126 = vmul.f32 %v3053, %v3111
        %v3127 = vmul.f32 %v3058, %v3111
        %v3128 = vmul.f32 %v3063, %v3111
        %v3129 = vmul.f32 %v3068, %v3111
        %v3130 = vmul.f32 %v3073, %v3111
        %v3131 = vmul.f32 %v3078, %v3111
        %v3132 = vmul.f32 %v3083, %v3111
        %v3133 = vmul.f32 %v3088, %v3111
        %v3134 = vmul.f32 %v3093, %v3111
        %v3135 = vmul.f32 %v3098, %v3111
        %v3136 = vmul.f32 %v3103, %v3111
        %v3137 = vadd.f32 %v2937, %v3113
        %v3138 = vadd.f32 %v2938, %v3114
        %v3139 = vadd.f32 %v2939, %v3115
        %v3140 = vadd.f32 %v2940, %v3116
        %v3141 = vadd.f32 %v2941, %v3117
        %v3142 = vadd.f32 %v2942, %v3118
        %v3143 = vadd.f32 %v2943, %v3119
        %v3144 = vadd.f32 %v2944, %v3120
        %v3145 = vadd.f32 %v2945, %v3121
        %v3146 = vadd.f32 %v2946, %v3122
        %v3147 = vadd.f32 %v2947, %v3123
        %v3148 = vadd.f32 %v2948, %v3124
        %v3149 = vadd.f32 %v2949, %v3125
        %v3150 = vadd.f32 %v2950, %v3126
        %v3151 = vadd.f32 %v2951, %v3127
        %v3152 = vadd.f32 %v2952, %v3128
        %v3153 = vadd.f32 %v2953, %v3129
        %v3154 = vadd.f32 %v2954, %v3130
        %v3155 = vadd.f32 %v2955, %v3131
        %v3156 = vadd.f32 %v2956, %v3132
        %v3157 = vadd.f32 %v2957, %v3133
        %v3158 = vadd.f32 %v2958, %v3134
        %v3159 = vadd.f32 %v2959, %v3135
        %v3160 = vadd.f32 %v2960, %v3136
        %v3161 = vld [vmem:[%s384 + $0x211] sm:$0xff]
        %v3162 = vld [vmem:[%s384 + $0x219] sm:$0xff]
        %v3163 = vld [vmem:[%s384 + $0x221] sm:$0xff]
        %v3164 = vld [vmem:[%s384 + $0x229] sm:$0xff]
        %v3165 = vld [vmem:[%s384 + $0x231] sm:$0xff]
        %v3166 = vld [vmem:[%s384 + $0x239] sm:$0xff]
        %v3167 = vld [vmem:[%s384 + $0x241] sm:$0xff]
        %v3168 = vld [vmem:[%s384 + $0x249] sm:$0xff]
        %v3169 = vld [vmem:[%s384 + $0x251] sm:$0xff]
        %v3170 = vld [vmem:[%s384 + $0x259] sm:$0xff]
        %v3171 = vld [vmem:[%s384 + $0x261] sm:$0xff]
        %v3172 = vld [vmem:[%s384 + $0x269] sm:$0xff]
        %v3173 = vld [vmem:[%s384 + $0x271] sm:$0xff]
        %v3174 = vld [vmem:[%s384 + $0x279] sm:$0xff]
        %v3175 = vld [vmem:[%s384 + $0x281] sm:$0xff]
        %v3176 = vld [vmem:[%s384 + $0x289] sm:$0xff]
        %v3177 = vld [vmem:[%s384 + $0x291] sm:$0xff]
        %v3178 = vld [vmem:[%s384 + $0x299] sm:$0xff]
        %v3179 = vld [vmem:[%s384 + $0x2a1] sm:$0xff]
        %v3180 = vld [vmem:[%s384 + $0x2a9] sm:$0xff]
        %v3181 = vld [vmem:[%s384 + $0x2b1] sm:$0xff]
        %v3182 = vld [vmem:[%s384 + $0x2b9] sm:$0xff]
        %v3183 = vld [vmem:[%s384 + $0x2c1] sm:$0xff]
        %v3184 = vld [vmem:[%s384 + $0x2c9] sm:$0xf]
        %3186 = vset.pattern.permute.xlu0 0
        %3187 = vperm.xlu0 %3186, %v3161
        %v3188 = vpop.permute.xlu0 %3187
        %3191 = vset.pattern.permute.xlu0 0
        %3192 = vperm.xlu0 %3191, %v3162
        %v3193 = vpop.permute.xlu0 %3192
        %3196 = vset.pattern.permute.xlu0 0
        %3197 = vperm.xlu0 %3196, %v3163
        %v3198 = vpop.permute.xlu0 %3197
        %3201 = vset.pattern.permute.xlu0 0
        %3202 = vperm.xlu0 %3201, %v3164
        %v3203 = vpop.permute.xlu0 %3202
        %3206 = vset.pattern.permute.xlu0 0
        %3207 = vperm.xlu0 %3206, %v3165
        %v3208 = vpop.permute.xlu0 %3207
        %3211 = vset.pattern.permute.xlu0 0
        %3212 = vperm.xlu0 %3211, %v3166
        %v3213 = vpop.permute.xlu0 %3212
        %3216 = vset.pattern.permute.xlu0 0
        %3217 = vperm.xlu0 %3216, %v3167
        %v3218 = vpop.permute.xlu0 %3217
        %3221 = vset.pattern.permute.xlu0 0
        %3222 = vperm.xlu0 %3221, %v3168
        %v3223 = vpop.permute.xlu0 %3222
        %3226 = vset.pattern.permute.xlu0 0
        %3227 = vperm.xlu0 %3226, %v3169
        %v3228 = vpop.permute.xlu0 %3227
        %3231 = vset.pattern.permute.xlu0 0
        %3232 = vperm.xlu0 %3231, %v3170
        %v3233 = vpop.permute.xlu0 %3232
        %3236 = vset.pattern.permute.xlu0 0
        %3237 = vperm.xlu0 %3236, %v3171
        %v3238 = vpop.permute.xlu0 %3237
        %3241 = vset.pattern.permute.xlu0 0
        %3242 = vperm.xlu0 %3241, %v3172
        %v3243 = vpop.permute.xlu0 %3242
        %3246 = vset.pattern.permute.xlu0 0
        %3247 = vperm.xlu0 %3246, %v3173
        %v3248 = vpop.permute.xlu0 %3247
        %3251 = vset.pattern.permute.xlu0 0
        %3252 = vperm.xlu0 %3251, %v3174
        %v3253 = vpop.permute.xlu0 %3252
        %3256 = vset.pattern.permute.xlu0 0
        %3257 = vperm.xlu0 %3256, %v3175
        %v3258 = vpop.permute.xlu0 %3257
        %3261 = vset.pattern.permute.xlu0 0
        %3262 = vperm.xlu0 %3261, %v3176
        %v3263 = vpop.permute.xlu0 %3262
        %3266 = vset.pattern.permute.xlu0 0
        %3267 = vperm.xlu0 %3266, %v3177
        %v3268 = vpop.permute.xlu0 %3267
        %3271 = vset.pattern.permute.xlu0 0
        %3272 = vperm.xlu0 %3271, %v3178
        %v3273 = vpop.permute.xlu0 %3272
        %3276 = vset.pattern.permute.xlu0 0
        %3277 = vperm.xlu0 %3276, %v3179
        %v3278 = vpop.permute.xlu0 %3277
        %3281 = vset.pattern.permute.xlu0 0
        %3282 = vperm.xlu0 %3281, %v3180
        %v3283 = vpop.permute.xlu0 %3282
        %3286 = vset.pattern.permute.xlu0 0
        %3287 = vperm.xlu0 %3286, %v3181
        %v3288 = vpop.permute.xlu0 %3287
        %3291 = vset.pattern.permute.xlu0 0
        %3292 = vperm.xlu0 %3291, %v3182
        %v3293 = vpop.permute.xlu0 %3292
        %3296 = vset.pattern.permute.xlu0 0
        %3297 = vperm.xlu0 %3296, %v3183
        %v3298 = vpop.permute.xlu0 %3297
        %3301 = vset.pattern.permute.xlu0 0
        %3302 = vperm.xlu0 %3301, %v3184
        %v3303 = vpop.permute.xlu0 %3302
        %s3305 = scalar_lea.vmem %s1, 14
        %v3306 = vld [vmem:[%s3305] sm:$0x1]
        %v3308 = vlaneseq
        %v3309 = vshrl.u32 %v3308, 7
        %v3310 = vsub.s32 0, %v3309
        %v3311 = vrot.slane %v3306, %v3310
        %v3313 = vmul.f32 %v3188, %v3311
        %v3314 = vmul.f32 %v3193, %v3311
        %v3315 = vmul.f32 %v3198, %v3311
        %v3316 = vmul.f32 %v3203, %v3311
        %v3317 = vmul.f32 %v3208, %v3311
        %v3318 = vmul.f32 %v3213, %v3311
        %v3319 = vmul.f32 %v3218, %v3311
        %v3320 = vmul.f32 %v3223, %v3311
        %v3321 = vmul.f32 %v3228, %v3311
        %v3322 = vmul.f32 %v3233, %v3311
        %v3323 = vmul.f32 %v3238, %v3311
        %v3324 = vmul.f32 %v3243, %v3311
        %v3325 = vmul.f32 %v3248, %v3311
        %v3326 = vmul.f32 %v3253, %v3311
        %v3327 = vmul.f32 %v3258, %v3311
        %v3328 = vmul.f32 %v3263, %v3311
        %v3329 = vmul.f32 %v3268, %v3311
        %v3330 = vmul.f32 %v3273, %v3311
        %v3331 = vmul.f32 %v3278, %v3311
        %v3332 = vmul.f32 %v3283, %v3311
        %v3333 = vmul.f32 %v3288, %v3311
        %v3334 = vmul.f32 %v3293, %v3311
        %v3335 = vmul.f32 %v3298, %v3311
        %v3336 = vmul.f32 %v3303, %v3311
        %v3337 = vadd.f32 %v3137, %v3313
        %v3338 = vadd.f32 %v3138, %v3314
        %v3339 = vadd.f32 %v3139, %v3315
        %v3340 = vadd.f32 %v3140, %v3316
        %v3341 = vadd.f32 %v3141, %v3317
        %v3342 = vadd.f32 %v3142, %v3318
        %v3343 = vadd.f32 %v3143, %v3319
        %v3344 = vadd.f32 %v3144, %v3320
        %v3345 = vadd.f32 %v3145, %v3321
        %v3346 = vadd.f32 %v3146, %v3322
        %v3347 = vadd.f32 %v3147, %v3323
        %v3348 = vadd.f32 %v3148, %v3324
        %v3349 = vadd.f32 %v3149, %v3325
        %v3350 = vadd.f32 %v3150, %v3326
        %v3351 = vadd.f32 %v3151, %v3327
        %v3352 = vadd.f32 %v3152, %v3328
        %v3353 = vadd.f32 %v3153, %v3329
        %v3354 = vadd.f32 %v3154, %v3330
        %v3355 = vadd.f32 %v3155, %v3331
        %v3356 = vadd.f32 %v3156, %v3332
        %v3357 = vadd.f32 %v3157, %v3333
        %v3358 = vadd.f32 %v3158, %v3334
        %v3359 = vadd.f32 %v3159, %v3335
        %v3360 = vadd.f32 %v3160, %v3336
        %v3361 = vld [vmem:[%s384 + $0x311] sm:$0xff]
        %v3362 = vld [vmem:[%s384 + $0x319] sm:$0xff]
        %v3363 = vld [vmem:[%s384 + $0x321] sm:$0xff]
        %v3364 = vld [vmem:[%s384 + $0x329] sm:$0xff]
        %v3365 = vld [vmem:[%s384 + $0x331] sm:$0xff]
        %v3366 = vld [vmem:[%s384 + $0x339] sm:$0xff]
        %v3367 = vld [vmem:[%s384 + $0x341] sm:$0xff]
        %v3368 = vld [vmem:[%s384 + $0x349] sm:$0xff]
        %v3369 = vld [vmem:[%s384 + $0x351] sm:$0xff]
        %v3370 = vld [vmem:[%s384 + $0x359] sm:$0xff]
        %v3371 = vld [vmem:[%s384 + $0x361] sm:$0xff]
        %v3372 = vld [vmem:[%s384 + $0x369] sm:$0xff]
        %v3373 = vld [vmem:[%s384 + $0x371] sm:$0xff]
        %v3374 = vld [vmem:[%s384 + $0x379] sm:$0xff]
        %v3375 = vld [vmem:[%s384 + $0x381] sm:$0xff]
        %v3376 = vld [vmem:[%s384 + $0x389] sm:$0xff]
        %v3377 = vld [vmem:[%s384 + $0x391] sm:$0xff]
        %v3378 = vld [vmem:[%s384 + $0x399] sm:$0xff]
        %v3379 = vld [vmem:[%s384 + $0x3a1] sm:$0xff]
        %v3380 = vld [vmem:[%s384 + $0x3a9] sm:$0xff]
        %v3381 = vld [vmem:[%s384 + $0x3b1] sm:$0xff]
        %v3382 = vld [vmem:[%s384 + $0x3b9] sm:$0xff]
        %v3383 = vld [vmem:[%s384 + $0x3c1] sm:$0xff]
        %v3384 = vld [vmem:[%s384 + $0x3c9] sm:$0xf]
        %3386 = vset.pattern.permute.xlu0 0
        %3387 = vperm.xlu0 %3386, %v3361
        %v3388 = vpop.permute.xlu0 %3387
        %3391 = vset.pattern.permute.xlu0 0
        %3392 = vperm.xlu0 %3391, %v3362
        %v3393 = vpop.permute.xlu0 %3392
        %3396 = vset.pattern.permute.xlu0 0
        %3397 = vperm.xlu0 %3396, %v3363
        %v3398 = vpop.permute.xlu0 %3397
        %3401 = vset.pattern.permute.xlu0 0
        %3402 = vperm.xlu0 %3401, %v3364
        %v3403 = vpop.permute.xlu0 %3402
        %3406 = vset.pattern.permute.xlu0 0
        %3407 = vperm.xlu0 %3406, %v3365
        %v3408 = vpop.permute.xlu0 %3407
        %3411 = vset.pattern.permute.xlu0 0
        %3412 = vperm.xlu0 %3411, %v3366
        %v3413 = vpop.permute.xlu0 %3412
        %3416 = vset.pattern.permute.xlu0 0
        %3417 = vperm.xlu0 %3416, %v3367
        %v3418 = vpop.permute.xlu0 %3417
        %3421 = vset.pattern.permute.xlu0 0
        %3422 = vperm.xlu0 %3421, %v3368
        %v3423 = vpop.permute.xlu0 %3422
        %3426 = vset.pattern.permute.xlu0 0
        %3427 = vperm.xlu0 %3426, %v3369
        %v3428 = vpop.permute.xlu0 %3427
        %3431 = vset.pattern.permute.xlu0 0
        %3432 = vperm.xlu0 %3431, %v3370
        %v3433 = vpop.permute.xlu0 %3432
        %3436 = vset.pattern.permute.xlu0 0
        %3437 = vperm.xlu0 %3436, %v3371
        %v3438 = vpop.permute.xlu0 %3437
        %3441 = vset.pattern.permute.xlu0 0
        %3442 = vperm.xlu0 %3441, %v3372
        %v3443 = vpop.permute.xlu0 %3442
        %3446 = vset.pattern.permute.xlu0 0
        %3447 = vperm.xlu0 %3446, %v3373
        %v3448 = vpop.permute.xlu0 %3447
        %3451 = vset.pattern.permute.xlu0 0
        %3452 = vperm.xlu0 %3451, %v3374
        %v3453 = vpop.permute.xlu0 %3452
        %3456 = vset.pattern.permute.xlu0 0
        %3457 = vperm.xlu0 %3456, %v3375
        %v3458 = vpop.permute.xlu0 %3457
        %3461 = vset.pattern.permute.xlu0 0
        %3462 = vperm.xlu0 %3461, %v3376
        %v3463 = vpop.permute.xlu0 %3462
        %3466 = vset.pattern.permute.xlu0 0
        %3467 = vperm.xlu0 %3466, %v3377
        %v3468 = vpop.permute.xlu0 %3467
        %3471 = vset.pattern.permute.xlu0 0
        %3472 = vperm.xlu0 %3471, %v3378
        %v3473 = vpop.permute.xlu0 %3472
        %3476 = vset.pattern.permute.xlu0 0
        %3477 = vperm.xlu0 %3476, %v3379
        %v3478 = vpop.permute.xlu0 %3477
        %3481 = vset.pattern.permute.xlu0 0
        %3482 = vperm.xlu0 %3481, %v3380
        %v3483 = vpop.permute.xlu0 %3482
        %3486 = vset.pattern.permute.xlu0 0
        %3487 = vperm.xlu0 %3486, %v3381
        %v3488 = vpop.permute.xlu0 %3487
        %3491 = vset.pattern.permute.xlu0 0
        %3492 = vperm.xlu0 %3491, %v3382
        %v3493 = vpop.permute.xlu0 %3492
        %3496 = vset.pattern.permute.xlu0 0
        %3497 = vperm.xlu0 %3496, %v3383
        %v3498 = vpop.permute.xlu0 %3497
        %3501 = vset.pattern.permute.xlu0 0
        %3502 = vperm.xlu0 %3501, %v3384
        %v3503 = vpop.permute.xlu0 %3502
        %s3505 = scalar_lea.vmem %s1, 15
        %v3506 = vld [vmem:[%s3505] sm:$0x1]
        %v3508 = vlaneseq
        %v3509 = vshrl.u32 %v3508, 7
        %v3510 = vsub.s32 0, %v3509
        %v3511 = vrot.slane %v3506, %v3510
        %v3513 = vmul.f32 %v3388, %v3511
        %v3514 = vmul.f32 %v3393, %v3511
        %v3515 = vmul.f32 %v3398, %v3511
        %v3516 = vmul.f32 %v3403, %v3511
        %v3517 = vmul.f32 %v3408, %v3511
        %v3518 = vmul.f32 %v3413, %v3511
        %v3519 = vmul.f32 %v3418, %v3511
        %v3520 = vmul.f32 %v3423, %v3511
        %v3521 = vmul.f32 %v3428, %v3511
        %v3522 = vmul.f32 %v3433, %v3511
        %v3523 = vmul.f32 %v3438, %v3511
        %v3524 = vmul.f32 %v3443, %v3511
        %v3525 = vmul.f32 %v3448, %v3511
        %v3526 = vmul.f32 %v3453, %v3511
        %v3527 = vmul.f32 %v3458, %v3511
        %v3528 = vmul.f32 %v3463, %v3511
        %v3529 = vmul.f32 %v3468, %v3511
        %v3530 = vmul.f32 %v3473, %v3511
        %v3531 = vmul.f32 %v3478, %v3511
        %v3532 = vmul.f32 %v3483, %v3511
        %v3533 = vmul.f32 %v3488, %v3511
        %v3534 = vmul.f32 %v3493, %v3511
        %v3535 = vmul.f32 %v3498, %v3511
        %v3536 = vmul.f32 %v3503, %v3511
        %v3537 = vadd.f32 %v3337, %v3513
        %v3538 = vadd.f32 %v3338, %v3514
        %v3539 = vadd.f32 %v3339, %v3515
        %v3540 = vadd.f32 %v3340, %v3516
        %v3541 = vadd.f32 %v3341, %v3517
        %v3542 = vadd.f32 %v3342, %v3518
        %v3543 = vadd.f32 %v3343, %v3519
        %v3544 = vadd.f32 %v3344, %v3520
        %v3545 = vadd.f32 %v3345, %v3521
        %v3546 = vadd.f32 %v3346, %v3522
        %v3547 = vadd.f32 %v3347, %v3523
        %v3548 = vadd.f32 %v3348, %v3524
        %v3549 = vadd.f32 %v3349, %v3525
        %v3550 = vadd.f32 %v3350, %v3526
        %v3551 = vadd.f32 %v3351, %v3527
        %v3552 = vadd.f32 %v3352, %v3528
        %v3553 = vadd.f32 %v3353, %v3529
        %v3554 = vadd.f32 %v3354, %v3530
        %v3555 = vadd.f32 %v3355, %v3531
        %v3556 = vadd.f32 %v3356, %v3532
        %v3557 = vadd.f32 %v3357, %v3533
        %v3558 = vadd.f32 %v3358, %v3534
        %v3559 = vadd.f32 %v3359, %v3535
        %v3560 = vadd.f32 %v3360, %v3536
        %3561 = vrot.lane.b32.xlu0 %v3537, 120
        %v3562 = vpop.permute.xlu0 %3561
        %3563 = vrot.lane.b32.xlu0 %v3538, 120
        %v3564 = vpop.permute.xlu0 %3563
        %3565 = vrot.lane.b32.xlu0 %v3539, 120
        %v3566 = vpop.permute.xlu0 %3565
        %3567 = vrot.lane.b32.xlu0 %v3540, 120
        %v3568 = vpop.permute.xlu0 %3567
        %3569 = vrot.lane.b32.xlu0 %v3541, 120
        %v3570 = vpop.permute.xlu0 %3569
        %3571 = vrot.lane.b32.xlu0 %v3542, 120
        %v3572 = vpop.permute.xlu0 %3571
        %3573 = vrot.lane.b32.xlu0 %v3543, 120
        %v3574 = vpop.permute.xlu0 %3573
        %3575 = vrot.lane.b32.xlu0 %v3544, 120
        %v3576 = vpop.permute.xlu0 %3575
        %3577 = vrot.lane.b32.xlu0 %v3545, 120
        %v3578 = vpop.permute.xlu0 %3577
        %3579 = vrot.lane.b32.xlu0 %v3546, 120
        %v3580 = vpop.permute.xlu0 %3579
        %3581 = vrot.lane.b32.xlu0 %v3547, 120
        %v3582 = vpop.permute.xlu0 %3581
        %3583 = vrot.lane.b32.xlu0 %v3548, 120
        %v3584 = vpop.permute.xlu0 %3583
        %3585 = vrot.lane.b32.xlu0 %v3549, 120
        %v3586 = vpop.permute.xlu0 %3585
        %3587 = vrot.lane.b32.xlu0 %v3550, 120
        %v3588 = vpop.permute.xlu0 %3587
        %3589 = vrot.lane.b32.xlu0 %v3551, 120
        %v3590 = vpop.permute.xlu0 %3589
        %3591 = vrot.lane.b32.xlu0 %v3552, 120
        %v3592 = vpop.permute.xlu0 %3591
        %3593 = vrot.lane.b32.xlu0 %v3553, 120
        %v3594 = vpop.permute.xlu0 %3593
        %3595 = vrot.lane.b32.xlu0 %v3554, 120
        %v3596 = vpop.permute.xlu0 %3595
        %3597 = vrot.lane.b32.xlu0 %v3555, 120
        %v3598 = vpop.permute.xlu0 %3597
        %3599 = vrot.lane.b32.xlu0 %v3556, 120
        %v3600 = vpop.permute.xlu0 %3599
        %3601 = vrot.lane.b32.xlu0 %v3557, 120
        %v3602 = vpop.permute.xlu0 %3601
        %3603 = vrot.lane.b32.xlu0 %v3558, 120
        %v3604 = vpop.permute.xlu0 %3603
        %3605 = vrot.lane.b32.xlu0 %v3559, 120
        %v3606 = vpop.permute.xlu0 %3605
        %3607 = vrot.lane.b32.xlu0 %v3560, 120
        %v3608 = vpop.permute.xlu0 %3607
        %v3609 = vmax.f32 %v3537, %v3562
        %v3610 = vmax.f32 %v3538, %v3564
        %v3611 = vmax.f32 %v3539, %v3566
        %v3612 = vmax.f32 %v3540, %v3568
        %v3613 = vmax.f32 %v3541, %v3570
        %v3614 = vmax.f32 %v3542, %v3572
        %v3615 = vmax.f32 %v3543, %v3574
        %v3616 = vmax.f32 %v3544, %v3576
        %v3617 = vmax.f32 %v3545, %v3578
        %v3618 = vmax.f32 %v3546, %v3580
        %v3619 = vmax.f32 %v3547, %v3582
        %v3620 = vmax.f32 %v3548, %v3584
        %v3621 = vmax.f32 %v3549, %v3586
        %v3622 = vmax.f32 %v3550, %v3588
        %v3623 = vmax.f32 %v3551, %v3590
        %v3624 = vmax.f32 %v3552, %v3592
        %v3625 = vmax.f32 %v3553, %v3594
        %v3626 = vmax.f32 %v3554, %v3596
        %v3627 = vmax.f32 %v3555, %v3598
        %v3628 = vmax.f32 %v3556, %v3600
        %v3629 = vmax.f32 %v3557, %v3602
        %v3630 = vmax.f32 %v3558, %v3604
        %v3631 = vmax.f32 %v3559, %v3606
        %v3632 = vmax.f32 %v3560, %v3608
        %3633 = vrot.lane.b32.xlu0 %v3537, 112
        %v3634 = vpop.permute.xlu0 %3633
        %3635 = vrot.lane.b32.xlu0 %v3538, 112
        %v3636 = vpop.permute.xlu0 %3635
        %3637 = vrot.lane.b32.xlu0 %v3539, 112
        %v3638 = vpop.permute.xlu0 %3637
        %3639 = vrot.lane.b32.xlu0 %v3540, 112
        %v3640 = vpop.permute.xlu0 %3639
        %3641 = vrot.lane.b32.xlu0 %v3541, 112
        %v3642 = vpop.permute.xlu0 %3641
        %3643 = vrot.lane.b32.xlu0 %v3542, 112
        %v3644 = vpop.permute.xlu0 %3643
        %3645 = vrot.lane.b32.xlu0 %v3543, 112
        %v3646 = vpop.permute.xlu0 %3645
        %3647 = vrot.lane.b32.xlu0 %v3544, 112
        %v3648 = vpop.permute.xlu0 %3647
        %3649 = vrot.lane.b32.xlu0 %v3545, 112
        %v3650 = vpop.permute.xlu0 %3649
        %3651 = vrot.lane.b32.xlu0 %v3546, 112
        %v3652 = vpop.permute.xlu0 %3651
        %3653 = vrot.lane.b32.xlu0 %v3547, 112
        %v3654 = vpop.permute.xlu0 %3653
        %3655 = vrot.lane.b32.xlu0 %v3548, 112
        %v3656 = vpop.permute.xlu0 %3655
        %3657 = vrot.lane.b32.xlu0 %v3549, 112
        %v3658 = vpop.permute.xlu0 %3657
        %3659 = vrot.lane.b32.xlu0 %v3550, 112
        %v3660 = vpop.permute.xlu0 %3659
        %3661 = vrot.lane.b32.xlu0 %v3551, 112
        %v3662 = vpop.permute.xlu0 %3661
        %3663 = vrot.lane.b32.xlu0 %v3552, 112
        %v3664 = vpop.permute.xlu0 %3663
        %3665 = vrot.lane.b32.xlu0 %v3553, 112
        %v3666 = vpop.permute.xlu0 %3665
        %3667 = vrot.lane.b32.xlu0 %v3554, 112
        %v3668 = vpop.permute.xlu0 %3667
        %3669 = vrot.lane.b32.xlu0 %v3555, 112
        %v3670 = vpop.permute.xlu0 %3669
        %3671 = vrot.lane.b32.xlu0 %v3556, 112
        %v3672 = vpop.permute.xlu0 %3671
        %3673 = vrot.lane.b32.xlu0 %v3557, 112
        %v3674 = vpop.permute.xlu0 %3673
        %3675 = vrot.lane.b32.xlu0 %v3558, 112
        %v3676 = vpop.permute.xlu0 %3675
        %3677 = vrot.lane.b32.xlu0 %v3559, 112
        %v3678 = vpop.permute.xlu0 %3677
        %3679 = vrot.lane.b32.xlu0 %v3560, 112
        %v3680 = vpop.permute.xlu0 %3679
        %3681 = vrot.lane.b32.xlu0 %v3537, 104
        %v3682 = vpop.permute.xlu0 %3681
        %3683 = vrot.lane.b32.xlu0 %v3538, 104
        %v3684 = vpop.permute.xlu0 %3683
        %3685 = vrot.lane.b32.xlu0 %v3539, 104
        %v3686 = vpop.permute.xlu0 %3685
        %3687 = vrot.lane.b32.xlu0 %v3540, 104
        %v3688 = vpop.permute.xlu0 %3687
        %3689 = vrot.lane.b32.xlu0 %v3541, 104
        %v3690 = vpop.permute.xlu0 %3689
        %3691 = vrot.lane.b32.xlu0 %v3542, 104
        %v3692 = vpop.permute.xlu0 %3691
        %3693 = vrot.lane.b32.xlu0 %v3543, 104
        %v3694 = vpop.permute.xlu0 %3693
        %3695 = vrot.lane.b32.xlu0 %v3544, 104
        %v3696 = vpop.permute.xlu0 %3695
        %3697 = vrot.lane.b32.xlu0 %v3545, 104
        %v3698 = vpop.permute.xlu0 %3697
        %3699 = vrot.lane.b32.xlu0 %v3546, 104
        %v3700 = vpop.permute.xlu0 %3699
        %3701 = vrot.lane.b32.xlu0 %v3547, 104
        %v3702 = vpop.permute.xlu0 %3701
        %3703 = vrot.lane.b32.xlu0 %v3548, 104
        %v3704 = vpop.permute.xlu0 %3703
        %3705 = vrot.lane.b32.xlu0 %v3549, 104
        %v3706 = vpop.permute.xlu0 %3705
        %3707 = vrot.lane.b32.xlu0 %v3550, 104
        %v3708 = vpop.permute.xlu0 %3707
        %3709 = vrot.lane.b32.xlu0 %v3551, 104
        %v3710 = vpop.permute.xlu0 %3709
        %3711 = vrot.lane.b32.xlu0 %v3552, 104
        %v3712 = vpop.permute.xlu0 %3711
        %3713 = vrot.lane.b32.xlu0 %v3553, 104
        %v3714 = vpop.permute.xlu0 %3713
        %3715 = vrot.lane.b32.xlu0 %v3554, 104
        %v3716 = vpop.permute.xlu0 %3715
        %3717 = vrot.lane.b32.xlu0 %v3555, 104
        %v3718 = vpop.permute.xlu0 %3717
        %3719 = vrot.lane.b32.xlu0 %v3556, 104
        %v3720 = vpop.permute.xlu0 %3719
        %3721 = vrot.lane.b32.xlu0 %v3557, 104
        %v3722 = vpop.permute.xlu0 %3721
        %3723 = vrot.lane.b32.xlu0 %v3558, 104
        %v3724 = vpop.permute.xlu0 %3723
        %3725 = vrot.lane.b32.xlu0 %v3559, 104
        %v3726 = vpop.permute.xlu0 %3725
        %3727 = vrot.lane.b32.xlu0 %v3560, 104
        %v3728 = vpop.permute.xlu0 %3727
        %v3729 = vmax.f32 %v3634, %v3682
        %v3730 = vmax.f32 %v3636, %v3684
        %v3731 = vmax.f32 %v3638, %v3686
        %v3732 = vmax.f32 %v3640, %v3688
        %v3733 = vmax.f32 %v3642, %v3690
        %v3734 = vmax.f32 %v3644, %v3692
        %v3735 = vmax.f32 %v3646, %v3694
        %v3736 = vmax.f32 %v3648, %v3696
        %v3737 = vmax.f32 %v3650, %v3698
        %v3738 = vmax.f32 %v3652, %v3700
        %v3739 = vmax.f32 %v3654, %v3702
        %v3740 = vmax.f32 %v3656, %v3704
        %v3741 = vmax.f32 %v3658, %v3706
        %v3742 = vmax.f32 %v3660, %v3708
        %v3743 = vmax.f32 %v3662, %v3710
        %v3744 = vmax.f32 %v3664, %v3712
        %v3745 = vmax.f32 %v3666, %v3714
        %v3746 = vmax.f32 %v3668, %v3716
        %v3747 = vmax.f32 %v3670, %v3718
        %v3748 = vmax.f32 %v3672, %v3720
        %v3749 = vmax.f32 %v3674, %v3722
        %v3750 = vmax.f32 %v3676, %v3724
        %v3751 = vmax.f32 %v3678, %v3726
        %v3752 = vmax.f32 %v3680, %v3728
        %v3753 = vmax.f32 %v3609, %v3729
        %v3754 = vmax.f32 %v3610, %v3730
        %v3755 = vmax.f32 %v3611, %v3731
        %v3756 = vmax.f32 %v3612, %v3732
        %v3757 = vmax.f32 %v3613, %v3733
        %v3758 = vmax.f32 %v3614, %v3734
        %v3759 = vmax.f32 %v3615, %v3735
        %v3760 = vmax.f32 %v3616, %v3736
        %v3761 = vmax.f32 %v3617, %v3737
        %v3762 = vmax.f32 %v3618, %v3738
        %v3763 = vmax.f32 %v3619, %v3739
        %v3764 = vmax.f32 %v3620, %v3740
        %v3765 = vmax.f32 %v3621, %v3741
        %v3766 = vmax.f32 %v3622, %v3742
        %v3767 = vmax.f32 %v3623, %v3743
        %v3768 = vmax.f32 %v3624, %v3744
        %v3769 = vmax.f32 %v3625, %v3745
        %v3770 = vmax.f32 %v3626, %v3746
        %v3771 = vmax.f32 %v3627, %v3747
        %v3772 = vmax.f32 %v3628, %v3748
        %v3773 = vmax.f32 %v3629, %v3749
        %v3774 = vmax.f32 %v3630, %v3750
        %v3775 = vmax.f32 %v3631, %v3751
        %v3776 = vmax.f32 %v3632, %v3752
        %v3777 = vld [vmem:[%s2] sm:$0x1]
        %v3779 = vlaneseq
        %v3780 = vshrl.u32 %v3779, 7
        %v3781 = vsub.s32 0, %v3780
        %v3782 = vrot.slane %v3777, %v3781
        %v3784 = vadd.f32 %v3753, %v3782
        %v3785 = vadd.f32 %v3754, %v3782
        %v3786 = vadd.f32 %v3755, %v3782
        %v3787 = vadd.f32 %v3756, %v3782
        %v3788 = vadd.f32 %v3757, %v3782
        %v3789 = vadd.f32 %v3758, %v3782
        %v3790 = vadd.f32 %v3759, %v3782
        %v3791 = vadd.f32 %v3760, %v3782
        %v3792 = vadd.f32 %v3761, %v3782
        %v3793 = vadd.f32 %v3762, %v3782
        %v3794 = vadd.f32 %v3763, %v3782
        %v3795 = vadd.f32 %v3764, %v3782
        %v3796 = vadd.f32 %v3765, %v3782
        %v3797 = vadd.f32 %v3766, %v3782
        %v3798 = vadd.f32 %v3767, %v3782
        %v3799 = vadd.f32 %v3768, %v3782
        %v3800 = vadd.f32 %v3769, %v3782
        %v3801 = vadd.f32 %v3770, %v3782
        %v3802 = vadd.f32 %v3771, %v3782
        %v3803 = vadd.f32 %v3772, %v3782
        %v3804 = vadd.f32 %v3773, %v3782
        %v3805 = vadd.f32 %v3774, %v3782
        %v3806 = vadd.f32 %v3775, %v3782
        %v3807 = vadd.f32 %v3776, %v3782
        %v3808 = vmax.f32 %v3784, 0.0
        %v3809 = vmax.f32 %v3785, 0.0
        %v3810 = vmax.f32 %v3786, 0.0
        %v3811 = vmax.f32 %v3787, 0.0
        %v3812 = vmax.f32 %v3788, 0.0
        %v3813 = vmax.f32 %v3789, 0.0
        %v3814 = vmax.f32 %v3790, 0.0
        %v3815 = vmax.f32 %v3791, 0.0
        %v3816 = vmax.f32 %v3792, 0.0
        %v3817 = vmax.f32 %v3793, 0.0
        %v3818 = vmax.f32 %v3794, 0.0
        %v3819 = vmax.f32 %v3795, 0.0
        %v3820 = vmax.f32 %v3796, 0.0
        %v3821 = vmax.f32 %v3797, 0.0
        %v3822 = vmax.f32 %v3798, 0.0
        %v3823 = vmax.f32 %v3799, 0.0
        %v3824 = vmax.f32 %v3800, 0.0
        %v3825 = vmax.f32 %v3801, 0.0
        %v3826 = vmax.f32 %v3802, 0.0
        %v3827 = vmax.f32 %v3803, 0.0
        %v3828 = vmax.f32 %v3804, 0.0
        %v3829 = vmax.f32 %v3805, 0.0
        %v3830 = vmax.f32 %v3806, 0.0
        %v3831 = vmax.f32 %v3807, 0.0
        %vm3852 = vcmask 1046528
        %v3853 = vrot.slane %v3808, 1
        %v3854 = vrot.slane %v3809, 1
        %v3855 = vsel %vm3852, %v3853, %v3854
        %v3856 = vrot.slane %v3810, 1
        %v3857 = vsel %vm3852, %v3854, %v3856
        %v3858 = vrot.slane %v3811, 1
        %v3859 = vsel %vm3852, %v3856, %v3858
        %v3860 = vrot.slane %v3812, 1
        %v3861 = vsel %vm3852, %v3858, %v3860
        %v3862 = vrot.slane %v3813, 1
        %v3863 = vsel %vm3852, %v3860, %v3862
        %v3864 = vrot.slane %v3814, 1
        %v3865 = vsel %vm3852, %v3862, %v3864
        %v3866 = vrot.slane %v3815, 1
        %v3867 = vsel %vm3852, %v3864, %v3866
        %v3868 = vrot.slane %v3816, 1
        %v3869 = vsel %vm3852, %v3866, %v3868
        %v3870 = vrot.slane %v3817, 1
        %v3871 = vsel %vm3852, %v3868, %v3870
        %v3872 = vrot.slane %v3818, 1
        %v3873 = vsel %vm3852, %v3870, %v3872
        %v3874 = vrot.slane %v3819, 1
        %v3875 = vsel %vm3852, %v3872, %v3874
        %v3876 = vrot.slane %v3820, 1
        %v3877 = vsel %vm3852, %v3874, %v3876
        %v3878 = vrot.slane %v3821, 1
        %v3879 = vsel %vm3852, %v3876, %v3878
        %v3880 = vrot.slane %v3822, 1
        %v3881 = vsel %vm3852, %v3878, %v3880
        %v3882 = vrot.slane %v3823, 1
        %v3883 = vsel %vm3852, %v3880, %v3882
        %v3884 = vrot.slane %v3824, 1
        %v3885 = vsel %vm3852, %v3882, %v3884
        %v3886 = vrot.slane %v3825, 1
        %v3887 = vsel %vm3852, %v3884, %v3886
        %v3888 = vrot.slane %v3826, 1
        %v3889 = vsel %vm3852, %v3886, %v3888
        %v3890 = vrot.slane %v3827, 1
        %v3891 = vsel %vm3852, %v3888, %v3890
        %3892 = vrot.lane.b32.xlu0 %v3855, 8
        %v3893 = vpop.permute.xlu0 %3892
        %3894 = vrot.lane.b32.xlu0 %v3857, 8
        %v3895 = vpop.permute.xlu0 %3894
        %3896 = vrot.lane.b32.xlu0 %v3859, 8
        %v3897 = vpop.permute.xlu0 %3896
        %3898 = vrot.lane.b32.xlu0 %v3861, 8
        %v3899 = vpop.permute.xlu0 %3898
        %3900 = vrot.lane.b32.xlu0 %v3863, 8
        %v3901 = vpop.permute.xlu0 %3900
        %3902 = vrot.lane.b32.xlu0 %v3865, 8
        %v3903 = vpop.permute.xlu0 %3902
        %3904 = vrot.lane.b32.xlu0 %v3867, 8
        %v3905 = vpop.permute.xlu0 %3904
        %3906 = vrot.lane.b32.xlu0 %v3869, 8
        %v3907 = vpop.permute.xlu0 %3906
        %3908 = vrot.lane.b32.xlu0 %v3871, 8
        %v3909 = vpop.permute.xlu0 %3908
        %3910 = vrot.lane.b32.xlu0 %v3873, 8
        %v3911 = vpop.permute.xlu0 %3910
        %3912 = vrot.lane.b32.xlu0 %v3875, 8
        %v3913 = vpop.permute.xlu0 %3912
        %3914 = vrot.lane.b32.xlu0 %v3877, 8
        %v3915 = vpop.permute.xlu0 %3914
        %3916 = vrot.lane.b32.xlu0 %v3879, 8
        %v3917 = vpop.permute.xlu0 %3916
        %3918 = vrot.lane.b32.xlu0 %v3881, 8
        %v3919 = vpop.permute.xlu0 %3918
        %3920 = vrot.lane.b32.xlu0 %v3883, 8
        %v3921 = vpop.permute.xlu0 %3920
        %3922 = vrot.lane.b32.xlu0 %v3885, 8
        %v3923 = vpop.permute.xlu0 %3922
        %3924 = vrot.lane.b32.xlu0 %v3887, 8
        %v3925 = vpop.permute.xlu0 %3924
        %3926 = vrot.lane.b32.xlu0 %v3889, 8
        %v3927 = vpop.permute.xlu0 %3926
        %3928 = vrot.lane.b32.xlu0 %v3891, 8
        %v3929 = vpop.permute.xlu0 %3928
        %3930 = vrot.lane.b32.xlu0 %v3890, 8
        %v3931 = vpop.permute.xlu0 %3930
        %vm3952 = vcmask 1045504
        %v3953 = vrot.slane %v3808, 2
        %v3954 = vrot.slane %v3809, 2
        %v3955 = vsel %vm3952, %v3953, %v3954
        %v3956 = vrot.slane %v3810, 2
        %v3957 = vsel %vm3952, %v3954, %v3956
        %v3958 = vrot.slane %v3811, 2
        %v3959 = vsel %vm3952, %v3956, %v3958
        %v3960 = vrot.slane %v3812, 2
        %v3961 = vsel %vm3952, %v3958, %v3960
        %v3962 = vrot.slane %v3813, 2
        %v3963 = vsel %vm3952, %v3960, %v3962
        %v3964 = vrot.slane %v3814, 2
        %v3965 = vsel %vm3952, %v3962, %v3964
        %v3966 = vrot.slane %v3815, 2
        %v3967 = vsel %vm3952, %v3964, %v3966
        %v3968 = vrot.slane %v3816, 2
        %v3969 = vsel %vm3952, %v3966, %v3968
        %v3970 = vrot.slane %v3817, 2
        %v3971 = vsel %vm3952, %v3968, %v3970
        %v3972 = vrot.slane %v3818, 2
        %v3973 = vsel %vm3952, %v3970, %v3972
        %v3974 = vrot.slane %v3819, 2
        %v3975 = vsel %vm3952, %v3972, %v3974
        %v3976 = vrot.slane %v3820, 2
        %v3977 = vsel %vm3952, %v3974, %v3976
        %v3978 = vrot.slane %v3821, 2
        %v3979 = vsel %vm3952, %v3976, %v3978
        %v3980 = vrot.slane %v3822, 2
        %v3981 = vsel %vm3952, %v3978, %v3980
        %v3982 = vrot.slane %v3823, 2
        %v3983 = vsel %vm3952, %v3980, %v3982
        %v3984 = vrot.slane %v3824, 2
        %v3985 = vsel %vm3952, %v3982, %v3984
        %v3986 = vrot.slane %v3825, 2
        %v3987 = vsel %vm3952, %v3984, %v3986
        %v3988 = vrot.slane %v3826, 2
        %v3989 = vsel %vm3952, %v3986, %v3988
        %v3990 = vrot.slane %v3827, 2
        %v3991 = vsel %vm3952, %v3988, %v3990
        %3992 = vrot.lane.b32.xlu0 %v3955, 16
        %v3993 = vpop.permute.xlu0 %3992
        %3994 = vrot.lane.b32.xlu0 %v3957, 16
        %v3995 = vpop.permute.xlu0 %3994
        %3996 = vrot.lane.b32.xlu0 %v3959, 16
        %v3997 = vpop.permute.xlu0 %3996
        %3998 = vrot.lane.b32.xlu0 %v3961, 16
        %v3999 = vpop.permute.xlu0 %3998
        %4000 = vrot.lane.b32.xlu0 %v3963, 16
        %v4001 = vpop.permute.xlu0 %4000
        %4002 = vrot.lane.b32.xlu0 %v3965, 16
        %v4003 = vpop.permute.xlu0 %4002
        %4004 = vrot.lane.b32.xlu0 %v3967, 16
        %v4005 = vpop.permute.xlu0 %4004
        %4006 = vrot.lane.b32.xlu0 %v3969, 16
        %v4007 = vpop.permute.xlu0 %4006
        %4008 = vrot.lane.b32.xlu0 %v3971, 16
        %v4009 = vpop.permute.xlu0 %4008
        %4010 = vrot.lane.b32.xlu0 %v3973, 16
        %v4011 = vpop.permute.xlu0 %4010
        %4012 = vrot.lane.b32.xlu0 %v3975, 16
        %v4013 = vpop.permute.xlu0 %4012
        %4014 = vrot.lane.b32.xlu0 %v3977, 16
        %v4015 = vpop.permute.xlu0 %4014
        %4016 = vrot.lane.b32.xlu0 %v3979, 16
        %v4017 = vpop.permute.xlu0 %4016
        %4018 = vrot.lane.b32.xlu0 %v3981, 16
        %v4019 = vpop.permute.xlu0 %4018
        %4020 = vrot.lane.b32.xlu0 %v3983, 16
        %v4021 = vpop.permute.xlu0 %4020
        %4022 = vrot.lane.b32.xlu0 %v3985, 16
        %v4023 = vpop.permute.xlu0 %4022
        %4024 = vrot.lane.b32.xlu0 %v3987, 16
        %v4025 = vpop.permute.xlu0 %4024
        %4026 = vrot.lane.b32.xlu0 %v3989, 16
        %v4027 = vpop.permute.xlu0 %4026
        %4028 = vrot.lane.b32.xlu0 %v3991, 16
        %v4029 = vpop.permute.xlu0 %4028
        %4030 = vrot.lane.b32.xlu0 %v3990, 16
        %v4031 = vpop.permute.xlu0 %4030
        %4054 = vrot.lane.b32.xlu0 %v3810, 24
        %v4055 = vpop.permute.xlu0 %4054
        %4056 = vrot.lane.b32.xlu0 %v3811, 24
        %v4057 = vpop.permute.xlu0 %4056
        %4058 = vrot.lane.b32.xlu0 %v3812, 24
        %v4059 = vpop.permute.xlu0 %4058
        %4060 = vrot.lane.b32.xlu0 %v3813, 24
        %v4061 = vpop.permute.xlu0 %4060
        %4062 = vrot.lane.b32.xlu0 %v3814, 24
        %v4063 = vpop.permute.xlu0 %4062
        %4064 = vrot.lane.b32.xlu0 %v3815, 24
        %v4065 = vpop.permute.xlu0 %4064
        %4066 = vrot.lane.b32.xlu0 %v3816, 24
        %v4067 = vpop.permute.xlu0 %4066
        %4068 = vrot.lane.b32.xlu0 %v3817, 24
        %v4069 = vpop.permute.xlu0 %4068
        %4070 = vrot.lane.b32.xlu0 %v3818, 24
        %v4071 = vpop.permute.xlu0 %4070
        %4072 = vrot.lane.b32.xlu0 %v3819, 24
        %v4073 = vpop.permute.xlu0 %4072
        %4074 = vrot.lane.b32.xlu0 %v3820, 24
        %v4075 = vpop.permute.xlu0 %4074
        %4076 = vrot.lane.b32.xlu0 %v3821, 24
        %v4077 = vpop.permute.xlu0 %4076
        %4078 = vrot.lane.b32.xlu0 %v3822, 24
        %v4079 = vpop.permute.xlu0 %4078
        %4080 = vrot.lane.b32.xlu0 %v3823, 24
        %v4081 = vpop.permute.xlu0 %4080
        %4082 = vrot.lane.b32.xlu0 %v3824, 24
        %v4083 = vpop.permute.xlu0 %4082
        %4084 = vrot.lane.b32.xlu0 %v3825, 24
        %v4085 = vpop.permute.xlu0 %4084
        %4086 = vrot.lane.b32.xlu0 %v3826, 24
        %v4087 = vpop.permute.xlu0 %4086
        %4088 = vrot.lane.b32.xlu0 %v3827, 24
        %v4089 = vpop.permute.xlu0 %4088
        %4090 = vrot.lane.b32.xlu0 %v3828, 24
        %v4091 = vpop.permute.xlu0 %4090
        %4092 = vrot.lane.b32.xlu0 %v3829, 24
        %v4093 = vpop.permute.xlu0 %4092
        %v4114 = vrot.slane %v3828, 1
        %v4115 = vsel %vm3852, %v3890, %v4114
        %v4116 = vrot.slane %v3829, 1
        %v4117 = vsel %vm3852, %v4114, %v4116
        %4118 = vrot.lane.b32.xlu0 %v3859, 32
        %v4119 = vpop.permute.xlu0 %4118
        %4120 = vrot.lane.b32.xlu0 %v3861, 32
        %v4121 = vpop.permute.xlu0 %4120
        %4122 = vrot.lane.b32.xlu0 %v3863, 32
        %v4123 = vpop.permute.xlu0 %4122
        %4124 = vrot.lane.b32.xlu0 %v3865, 32
        %v4125 = vpop.permute.xlu0 %4124
        %4126 = vrot.lane.b32.xlu0 %v3867, 32
        %v4127 = vpop.permute.xlu0 %4126
        %4128 = vrot.lane.b32.xlu0 %v3869, 32
        %v4129 = vpop.permute.xlu0 %4128
        %4130 = vrot.lane.b32.xlu0 %v3871, 32
        %v4131 = vpop.permute.xlu0 %4130
        %4132 = vrot.lane.b32.xlu0 %v3873, 32
        %v4133 = vpop.permute.xlu0 %4132
        %4134 = vrot.lane.b32.xlu0 %v3875, 32
        %v4135 = vpop.permute.xlu0 %4134
        %4136 = vrot.lane.b32.xlu0 %v3877, 32
        %v4137 = vpop.permute.xlu0 %4136
        %4138 = vrot.lane.b32.xlu0 %v3879, 32
        %v4139 = vpop.permute.xlu0 %4138
        %4140 = vrot.lane.b32.xlu0 %v3881, 32
        %v4141 = vpop.permute.xlu0 %4140
        %4142 = vrot.lane.b32.xlu0 %v3883, 32
        %v4143 = vpop.permute.xlu0 %4142
        %4144 = vrot.lane.b32.xlu0 %v3885, 32
        %v4145 = vpop.permute.xlu0 %4144
        %4146 = vrot.lane.b32.xlu0 %v3887, 32
        %v4147 = vpop.permute.xlu0 %4146
        %4148 = vrot.lane.b32.xlu0 %v3889, 32
        %v4149 = vpop.permute.xlu0 %4148
        %4150 = vrot.lane.b32.xlu0 %v3891, 32
        %v4151 = vpop.permute.xlu0 %4150
        %4152 = vrot.lane.b32.xlu0 %v4115, 32
        %v4153 = vpop.permute.xlu0 %4152
        %4154 = vrot.lane.b32.xlu0 %v4117, 32
        %v4155 = vpop.permute.xlu0 %4154
        %4156 = vrot.lane.b32.xlu0 %v4116, 32
        %v4157 = vpop.permute.xlu0 %4156
        %v4178 = vrot.slane %v3828, 2
        %v4179 = vsel %vm3952, %v3990, %v4178
        %v4180 = vrot.slane %v3829, 2
        %v4181 = vsel %vm3952, %v4178, %v4180
        %4182 = vrot.lane.b32.xlu0 %v3959, 40
        %v4183 = vpop.permute.xlu0 %4182
        %4184 = vrot.lane.b32.xlu0 %v3961, 40
        %v4185 = vpop.permute.xlu0 %4184
        %4186 = vrot.lane.b32.xlu0 %v3963, 40
        %v4187 = vpop.permute.xlu0 %4186
        %4188 = vrot.lane.b32.xlu0 %v3965, 40
        %v4189 = vpop.permute.xlu0 %4188
        %4190 = vrot.lane.b32.xlu0 %v3967, 40
        %v4191 = vpop.permute.xlu0 %4190
        %4192 = vrot.lane.b32.xlu0 %v3969, 40
        %v4193 = vpop.permute.xlu0 %4192
        %4194 = vrot.lane.b32.xlu0 %v3971, 40
        %v4195 = vpop.permute.xlu0 %4194
        %4196 = vrot.lane.b32.xlu0 %v3973, 40
        %v4197 = vpop.permute.xlu0 %4196
        %4198 = vrot.lane.b32.xlu0 %v3975, 40
        %v4199 = vpop.permute.xlu0 %4198
        %4200 = vrot.lane.b32.xlu0 %v3977, 40
        %v4201 = vpop.permute.xlu0 %4200
        %4202 = vrot.lane.b32.xlu0 %v3979, 40
        %v4203 = vpop.permute.xlu0 %4202
        %4204 = vrot.lane.b32.xlu0 %v3981, 40
        %v4205 = vpop.permute.xlu0 %4204
        %4206 = vrot.lane.b32.xlu0 %v3983, 40
        %v4207 = vpop.permute.xlu0 %4206
        %4208 = vrot.lane.b32.xlu0 %v3985, 40
        %v4209 = vpop.permute.xlu0 %4208
        %4210 = vrot.lane.b32.xlu0 %v3987, 40
        %v4211 = vpop.permute.xlu0 %4210
        %4212 = vrot.lane.b32.xlu0 %v3989, 40
        %v4213 = vpop.permute.xlu0 %4212
        %4214 = vrot.lane.b32.xlu0 %v3991, 40
        %v4215 = vpop.permute.xlu0 %4214
        %4216 = vrot.lane.b32.xlu0 %v4179, 40
        %v4217 = vpop.permute.xlu0 %4216
        %4218 = vrot.lane.b32.xlu0 %v4181, 40
        %v4219 = vpop.permute.xlu0 %4218
        %4220 = vrot.lane.b32.xlu0 %v4180, 40
        %v4221 = vpop.permute.xlu0 %4220
        %4244 = vrot.lane.b32.xlu0 %v3812, 48
        %v4245 = vpop.permute.xlu0 %4244
        %4246 = vrot.lane.b32.xlu0 %v3813, 48
        %v4247 = vpop.permute.xlu0 %4246
        %4248 = vrot.lane.b32.xlu0 %v3814, 48
        %v4249 = vpop.permute.xlu0 %4248
        %4250 = vrot.lane.b32.xlu0 %v3815, 48
        %v4251 = vpop.permute.xlu0 %4250
        %4252 = vrot.lane.b32.xlu0 %v3816, 48
        %v4253 = vpop.permute.xlu0 %4252
        %4254 = vrot.lane.b32.xlu0 %v3817, 48
        %v4255 = vpop.permute.xlu0 %4254
        %4256 = vrot.lane.b32.xlu0 %v3818, 48
        %v4257 = vpop.permute.xlu0 %4256
        %4258 = vrot.lane.b32.xlu0 %v3819, 48
        %v4259 = vpop.permute.xlu0 %4258
        %4260 = vrot.lane.b32.xlu0 %v3820, 48
        %v4261 = vpop.permute.xlu0 %4260
        %4262 = vrot.lane.b32.xlu0 %v3821, 48
        %v4263 = vpop.permute.xlu0 %4262
        %4264 = vrot.lane.b32.xlu0 %v3822, 48
        %v4265 = vpop.permute.xlu0 %4264
        %4266 = vrot.lane.b32.xlu0 %v3823, 48
        %v4267 = vpop.permute.xlu0 %4266
        %4268 = vrot.lane.b32.xlu0 %v3824, 48
        %v4269 = vpop.permute.xlu0 %4268
        %4270 = vrot.lane.b32.xlu0 %v3825, 48
        %v4271 = vpop.permute.xlu0 %4270
        %4272 = vrot.lane.b32.xlu0 %v3826, 48
        %v4273 = vpop.permute.xlu0 %4272
        %4274 = vrot.lane.b32.xlu0 %v3827, 48
        %v4275 = vpop.permute.xlu0 %4274
        %4276 = vrot.lane.b32.xlu0 %v3828, 48
        %v4277 = vpop.permute.xlu0 %4276
        %4278 = vrot.lane.b32.xlu0 %v3829, 48
        %v4279 = vpop.permute.xlu0 %4278
        %4280 = vrot.lane.b32.xlu0 %v3830, 48
        %v4281 = vpop.permute.xlu0 %4280
        %4282 = vrot.lane.b32.xlu0 %v3831, 48
        %v4283 = vpop.permute.xlu0 %4282
        %v4304 = vrot.slane %v3830, 1
        %v4305 = vsel %vm3852, %v4116, %v4304
        %v4306 = vrot.slane %v3831, 1
        %v4307 = vsel %vm3852, %v4304, %v4306
        %4308 = vrot.lane.b32.xlu0 %v3863, 56
        %v4309 = vpop.permute.xlu0 %4308
        %4310 = vrot.lane.b32.xlu0 %v3865, 56
        %v4311 = vpop.permute.xlu0 %4310
        %4312 = vrot.lane.b32.xlu0 %v3867, 56
        %v4313 = vpop.permute.xlu0 %4312
        %4314 = vrot.lane.b32.xlu0 %v3869, 56
        %v4315 = vpop.permute.xlu0 %4314
        %4316 = vrot.lane.b32.xlu0 %v3871, 56
        %v4317 = vpop.permute.xlu0 %4316
        %4318 = vrot.lane.b32.xlu0 %v3873, 56
        %v4319 = vpop.permute.xlu0 %4318
        %4320 = vrot.lane.b32.xlu0 %v3875, 56
        %v4321 = vpop.permute.xlu0 %4320
        %4322 = vrot.lane.b32.xlu0 %v3877, 56
        %v4323 = vpop.permute.xlu0 %4322
        %4324 = vrot.lane.b32.xlu0 %v3879, 56
        %v4325 = vpop.permute.xlu0 %4324
        %4326 = vrot.lane.b32.xlu0 %v3881, 56
        %v4327 = vpop.permute.xlu0 %4326
        %4328 = vrot.lane.b32.xlu0 %v3883, 56
        %v4329 = vpop.permute.xlu0 %4328
        %4330 = vrot.lane.b32.xlu0 %v3885, 56
        %v4331 = vpop.permute.xlu0 %4330
        %4332 = vrot.lane.b32.xlu0 %v3887, 56
        %v4333 = vpop.permute.xlu0 %4332
        %4334 = vrot.lane.b32.xlu0 %v3889, 56
        %v4335 = vpop.permute.xlu0 %4334
        %4336 = vrot.lane.b32.xlu0 %v3891, 56
        %v4337 = vpop.permute.xlu0 %4336
        %4338 = vrot.lane.b32.xlu0 %v4115, 56
        %v4339 = vpop.permute.xlu0 %4338
        %4340 = vrot.lane.b32.xlu0 %v4117, 56
        %v4341 = vpop.permute.xlu0 %4340
        %4342 = vrot.lane.b32.xlu0 %v4305, 56
        %v4343 = vpop.permute.xlu0 %4342
        %4344 = vrot.lane.b32.xlu0 %v4307, 56
        %v4345 = vpop.permute.xlu0 %4344
        %4346 = vrot.lane.b32.xlu0 %v4306, 56
        %v4347 = vpop.permute.xlu0 %4346
        %v4368 = vrot.slane %v3830, 2
        %v4369 = vsel %vm3952, %v4180, %v4368
        %v4370 = vrot.slane %v3831, 2
        %v4371 = vsel %vm3952, %v4368, %v4370
        %4372 = vrot.lane.b32.xlu0 %v3963, 64
        %v4373 = vpop.permute.xlu0 %4372
        %4374 = vrot.lane.b32.xlu0 %v3965, 64
        %v4375 = vpop.permute.xlu0 %4374
        %4376 = vrot.lane.b32.xlu0 %v3967, 64
        %v4377 = vpop.permute.xlu0 %4376
        %4378 = vrot.lane.b32.xlu0 %v3969, 64
        %v4379 = vpop.permute.xlu0 %4378
        %4380 = vrot.lane.b32.xlu0 %v3971, 64
        %v4381 = vpop.permute.xlu0 %4380
        %4382 = vrot.lane.b32.xlu0 %v3973, 64
        %v4383 = vpop.permute.xlu0 %4382
        %4384 = vrot.lane.b32.xlu0 %v3975, 64
        %v4385 = vpop.permute.xlu0 %4384
        %4386 = vrot.lane.b32.xlu0 %v3977, 64
        %v4387 = vpop.permute.xlu0 %4386
        %4388 = vrot.lane.b32.xlu0 %v3979, 64
        %v4389 = vpop.permute.xlu0 %4388
        %4390 = vrot.lane.b32.xlu0 %v3981, 64
        %v4391 = vpop.permute.xlu0 %4390
        %4392 = vrot.lane.b32.xlu0 %v3983, 64
        %v4393 = vpop.permute.xlu0 %4392
        %4394 = vrot.lane.b32.xlu0 %v3985, 64
        %v4395 = vpop.permute.xlu0 %4394
        %4396 = vrot.lane.b32.xlu0 %v3987, 64
        %v4397 = vpop.permute.xlu0 %4396
        %4398 = vrot.lane.b32.xlu0 %v3989, 64
        %v4399 = vpop.permute.xlu0 %4398
        %4400 = vrot.lane.b32.xlu0 %v3991, 64
        %v4401 = vpop.permute.xlu0 %4400
        %4402 = vrot.lane.b32.xlu0 %v4179, 64
        %v4403 = vpop.permute.xlu0 %4402
        %4404 = vrot.lane.b32.xlu0 %v4181, 64
        %v4405 = vpop.permute.xlu0 %4404
        %4406 = vrot.lane.b32.xlu0 %v4369, 64
        %v4407 = vpop.permute.xlu0 %4406
        %4408 = vrot.lane.b32.xlu0 %v4371, 64
        %v4409 = vpop.permute.xlu0 %4408
        %4410 = vrot.lane.b32.xlu0 %v4370, 64
        %v4411 = vpop.permute.xlu0 %4410
        %vm4432 = vcmask 64512
        %v4433 = vsel %vm4432, %v3808, %v3893
        %v4434 = vsel %vm4432, %v3809, %v3895
        %v4435 = vsel %vm4432, %v3810, %v3897
        %v4436 = vsel %vm4432, %v3811, %v3899
        %v4437 = vsel %vm4432, %v3812, %v3901
        %v4438 = vsel %vm4432, %v3813, %v3903
        %v4439 = vsel %vm4432, %v3814, %v3905
        %v4440 = vsel %vm4432, %v3815, %v3907
        %v4441 = vsel %vm4432, %v3816, %v3909
        %v4442 = vsel %vm4432, %v3817, %v3911
        %v4443 = vsel %vm4432, %v3818, %v3913
        %v4444 = vsel %vm4432, %v3819, %v3915
        %v4445 = vsel %vm4432, %v3820, %v3917
        %v4446 = vsel %vm4432, %v3821, %v3919
        %v4447 = vsel %vm4432, %v3822, %v3921
        %v4448 = vsel %vm4432, %v3823, %v3923
        %v4449 = vsel %vm4432, %v3824, %v3925
        %v4450 = vsel %vm4432, %v3825, %v3927
        %v4451 = vsel %vm4432, %v3826, %v3929
        %v4452 = vsel %vm4432, %v3827, %v3931
        %vm4453 = vcmask 130048
        %v4454 = vsel %vm4453, %v4433, %v3993
        %v4455 = vsel %vm4453, %v4434, %v3995
        %v4456 = vsel %vm4453, %v4435, %v3997
        %v4457 = vsel %vm4453, %v4436, %v3999
        %v4458 = vsel %vm4453, %v4437, %v4001
        %v4459 = vsel %vm4453, %v4438, %v4003
        %v4460 = vsel %vm4453, %v4439, %v4005
        %v4461 = vsel %vm4453, %v4440, %v4007
        %v4462 = vsel %vm4453, %v4441, %v4009
        %v4463 = vsel %vm4453, %v4442, %v4011
        %v4464 = vsel %vm4453, %v4443, %v4013
        %v4465 = vsel %vm4453, %v4444, %v4015
        %v4466 = vsel %vm4453, %v4445, %v4017
        %v4467 = vsel %vm4453, %v4446, %v4019
        %v4468 = vsel %vm4453, %v4447, %v4021
        %v4469 = vsel %vm4453, %v4448, %v4023
        %v4470 = vsel %vm4453, %v4449, %v4025
        %v4471 = vsel %vm4453, %v4450, %v4027
        %v4472 = vsel %vm4453, %v4451, %v4029
        %v4473 = vsel %vm4453, %v4452, %v4031
        %vm4474 = vcmask 195584
        %v4475 = vsel %vm4474, %v4454, %v4055
        %v4476 = vsel %vm4474, %v4455, %v4057
        %v4477 = vsel %vm4474, %v4456, %v4059
        %v4478 = vsel %vm4474, %v4457, %v4061
        %v4479 = vsel %vm4474, %v4458, %v4063
        %v4480 = vsel %vm4474, %v4459, %v4065
        %v4481 = vsel %vm4474, %v4460, %v4067
        %v4482 = vsel %vm4474, %v4461, %v4069
        %v4483 = vsel %vm4474, %v4462, %v4071
        %v4484 = vsel %vm4474, %v4463, %v4073
        %v4485 = vsel %vm4474, %v4464, %v4075
        %v4486 = vsel %vm4474, %v4465, %v4077
        %v4487 = vsel %vm4474, %v4466, %v4079
        %v4488 = vsel %vm4474, %v4467, %v4081
        %v4489 = vsel %vm4474, %v4468, %v4083
        %v4490 = vsel %vm4474, %v4469, %v4085
        %v4491 = vsel %vm4474, %v4470, %v4087
        %v4492 = vsel %vm4474, %v4471, %v4089
        %v4493 = vsel %vm4474, %v4472, %v4091
        %v4494 = vsel %vm4474, %v4473, %v4093
        %vm4495 = vcmask 261120
        %v4496 = vsel %vm4495, %v4475, %v4119
        %v4497 = vsel %vm4495, %v4476, %v4121
        %v4498 = vsel %vm4495, %v4477, %v4123
        %v4499 = vsel %vm4495, %v4478, %v4125
        %v4500 = vsel %vm4495, %v4479, %v4127
        %v4501 = vsel %vm4495, %v4480, %v4129
        %v4502 = vsel %vm4495, %v4481, %v4131
        %v4503 = vsel %vm4495, %v4482, %v4133
        %v4504 = vsel %vm4495, %v4483, %v4135
        %v4505 = vsel %vm4495, %v4484, %v4137
        %v4506 = vsel %vm4495, %v4485, %v4139
        %v4507 = vsel %vm4495, %v4486, %v4141
        %v4508 = vsel %vm4495, %v4487, %v4143
        %v4509 = vsel %vm4495, %v4488, %v4145
        %v4510 = vsel %vm4495, %v4489, %v4147
        %v4511 = vsel %vm4495, %v4490, %v4149
        %v4512 = vsel %vm4495, %v4491, %v4151
        %v4513 = vsel %vm4495, %v4492, %v4153
        %v4514 = vsel %vm4495, %v4493, %v4155
        %v4515 = vsel %vm4495, %v4494, %v4157
        %vm4516 = vcmask 326656
        %v4517 = vsel %vm4516, %v4496, %v4183
        %v4518 = vsel %vm4516, %v4497, %v4185
        %v4519 = vsel %vm4516, %v4498, %v4187
        %v4520 = vsel %vm4516, %v4499, %v4189
        %v4521 = vsel %vm4516, %v4500, %v4191
        %v4522 = vsel %vm4516, %v4501, %v4193
        %v4523 = vsel %vm4516, %v4502, %v4195
        %v4524 = vsel %vm4516, %v4503, %v4197
        %v4525 = vsel %vm4516, %v4504, %v4199
        %v4526 = vsel %vm4516, %v4505, %v4201
        %v4527 = vsel %vm4516, %v4506, %v4203
        %v4528 = vsel %vm4516, %v4507, %v4205
        %v4529 = vsel %vm4516, %v4508, %v4207
        %v4530 = vsel %vm4516, %v4509, %v4209
        %v4531 = vsel %vm4516, %v4510, %v4211
        %v4532 = vsel %vm4516, %v4511, %v4213
        %v4533 = vsel %vm4516, %v4512, %v4215
        %v4534 = vsel %vm4516, %v4513, %v4217
        %v4535 = vsel %vm4516, %v4514, %v4219
        %v4536 = vsel %vm4516, %v4515, %v4221
        %vm4537 = vcmask 392192
        %v4538 = vsel %vm4537, %v4517, %v4245
        %v4539 = vsel %vm4537, %v4518, %v4247
        %v4540 = vsel %vm4537, %v4519, %v4249
        %v4541 = vsel %vm4537, %v4520, %v4251
        %v4542 = vsel %vm4537, %v4521, %v4253
        %v4543 = vsel %vm4537, %v4522, %v4255
        %v4544 = vsel %vm4537, %v4523, %v4257
        %v4545 = vsel %vm4537, %v4524, %v4259
        %v4546 = vsel %vm4537, %v4525, %v4261
        %v4547 = vsel %vm4537, %v4526, %v4263
        %v4548 = vsel %vm4537, %v4527, %v4265
        %v4549 = vsel %vm4537, %v4528, %v4267
        %v4550 = vsel %vm4537, %v4529, %v4269
        %v4551 = vsel %vm4537, %v4530, %v4271
        %v4552 = vsel %vm4537, %v4531, %v4273
        %v4553 = vsel %vm4537, %v4532, %v4275
        %v4554 = vsel %vm4537, %v4533, %v4277
        %v4555 = vsel %vm4537, %v4534, %v4279
        %v4556 = vsel %vm4537, %v4535, %v4281
        %v4557 = vsel %vm4537, %v4536, %v4283
        %vm4558 = vcmask 457728
        %v4559 = vsel %vm4558, %v4538, %v4309
        %v4560 = vsel %vm4558, %v4539, %v4311
        %v4561 = vsel %vm4558, %v4540, %v4313
        %v4562 = vsel %vm4558, %v4541, %v4315
        %v4563 = vsel %vm4558, %v4542, %v4317
        %v4564 = vsel %vm4558, %v4543, %v4319
        %v4565 = vsel %vm4558, %v4544, %v4321
        %v4566 = vsel %vm4558, %v4545, %v4323
        %v4567 = vsel %vm4558, %v4546, %v4325
        %v4568 = vsel %vm4558, %v4547, %v4327
        %v4569 = vsel %vm4558, %v4548, %v4329
        %v4570 = vsel %vm4558, %v4549, %v4331
        %v4571 = vsel %vm4558, %v4550, %v4333
        %v4572 = vsel %vm4558, %v4551, %v4335
        %v4573 = vsel %vm4558, %v4552, %v4337
        %v4574 = vsel %vm4558, %v4553, %v4339
        %v4575 = vsel %vm4558, %v4554, %v4341
        %v4576 = vsel %vm4558, %v4555, %v4343
        %v4577 = vsel %vm4558, %v4556, %v4345
        %v4578 = vsel %vm4558, %v4557, %v4347
        %vm4579 = vcmask 523264
        %v4580 = vsel %vm4579, %v4559, %v4373
        %v4581 = vsel %vm4579, %v4560, %v4375
        %v4582 = vsel %vm4579, %v4561, %v4377
        %v4583 = vsel %vm4579, %v4562, %v4379
        %v4584 = vsel %vm4579, %v4563, %v4381
        %v4585 = vsel %vm4579, %v4564, %v4383
        %v4586 = vsel %vm4579, %v4565, %v4385
        %v4587 = vsel %vm4579, %v4566, %v4387
        %v4588 = vsel %vm4579, %v4567, %v4389
        %v4589 = vsel %vm4579, %v4568, %v4391
        %v4590 = vsel %vm4579, %v4569, %v4393
        %v4591 = vsel %vm4579, %v4570, %v4395
        %v4592 = vsel %vm4579, %v4571, %v4397
        %v4593 = vsel %vm4579, %v4572, %v4399
        %v4594 = vsel %vm4579, %v4573, %v4401
        %v4595 = vsel %vm4579, %v4574, %v4403
        %v4596 = vsel %vm4579, %v4575, %v4405
        %v4597 = vsel %vm4579, %v4576, %v4407
        %v4598 = vsel %vm4579, %v4577, %v4409
        %v4599 = vsel %vm4579, %v4578, %v4411
        %v4600 = vld [vmem:[%s3] sm:$0xff]
        %v4601 = vld [vmem:[%s3 + $0x8] sm:$0xff]
        %v4602 = vld [vmem:[%s3 + $0x10] sm:$0xff]
        %v4603 = vld [vmem:[%s3 + $0x18] sm:$0xff]
        %v4604 = vld [vmem:[%s3 + $0x20] sm:$0xff]
        %v4605 = vld [vmem:[%s3 + $0x28] sm:$0xff]
        %v4606 = vld [vmem:[%s3 + $0x30] sm:$0xff]
        %v4607 = vld [vmem:[%s3 + $0x38] sm:$0xff]
        %v4608 = vld [vmem:[%s3 + $0x40] sm:$0xff]
        %v4609 = vld [vmem:[%s4] sm:$0x1]
        %v4611 = vlaneseq
        %v4612 = vshrl.u32 %v4611, 7
        %v4613 = vsub.s32 0, %v4612
        %v4614 = vrot.slane %v4609, %v4613
        %vm4616 = vcmask 588800
        %v4618 = vsel %vm4616, %v4580, 0
        %v4621 = vsel %vm4616, %v4581, 0
        %v4624 = vsel %vm4616, %v4582, 0
        %v4627 = vsel %vm4616, %v4583, 0
        %v4630 = vsel %vm4616, %v4584, 0
        %v4633 = vsel %vm4616, %v4585, 0
        %v4636 = vsel %vm4616, %v4586, 0
        %v4639 = vsel %vm4616, %v4587, 0
        %v4642 = vsel %vm4616, %v4588, 0
        %v4645 = vsel %vm4616, %v4589, 0
        %v4648 = vsel %vm4616, %v4590, 0
        %v4651 = vsel %vm4616, %v4591, 0
        %v4654 = vsel %vm4616, %v4592, 0
        %v4657 = vsel %vm4616, %v4593, 0
        %v4660 = vsel %vm4616, %v4594, 0
        %v4663 = vsel %vm4616, %v4595, 0
        %v4666 = vsel %vm4616, %v4596, 0
        %v4669 = vsel %vm4616, %v4597, 0
        %v4672 = vsel %vm4616, %v4598, 0
        %v4675 = vsel %vm4616, %v4599, 0
        %4677 = vmatprep.subr.mxu0 0.0
        %4678 = vmatpush1.msra.mxu0 0.0
        %4679 = vmatprep.subr.mxu0 0.0
        %4680 = vmatpush1.msra.mxu0 0.0
        %4681 = vmatprep.subr.mxu0 0.0
        %4682 = vmatpush1.msra.mxu0 0.0
        %4683 = vmatprep.subr.mxu0 0.0
        %4684 = vmatpush1.msra.mxu0 0.0
        %4685 = vmatprep.subr.mxu0 0.0
        %4686 = vmatpush1.msra.mxu0 0.0
        %4687 = vmatprep.subr.mxu0 0.0
        %4688 = vmatpush1.msra.mxu0 0.0
        %4689 = vmatprep.subr.mxu0 0.0
        %4690 = vmatpush1.msra.mxu0 0.0
        %4691 = vmatprep.subr.mxu0 0.0
        %4692 = vmatpush1.msra.mxu0 %v4608
        %4693 = vmatprep.subr.mxu0 0.0
        %4694 = vmatpush1.msra.mxu0 %v4607
        %4695 = vmatprep.subr.mxu0 0.0
        %4696 = vmatpush1.msra.mxu0 %v4606
        %4697 = vmatprep.subr.mxu0 0.0
        %4698 = vmatpush1.msra.mxu0 %v4605
        %4699 = vmatprep.subr.mxu0 0.0
        %4700 = vmatpush1.msra.mxu0 %v4604
        %4701 = vmatprep.subr.mxu0 0.0
        %4702 = vmatpush1.msra.mxu0 %v4603
        %4703 = vmatprep.subr.mxu0 0.0
        %4704 = vmatpush1.msra.mxu0 %v4602
        %4705 = vmatprep.subr.mxu0 0.0
        %4706 = vmatpush1.msra.mxu0 %v4601
        %4707 = vmatprep.subr.mxu0 0.0
        %4708 = vmatpush1.msra.mxu0 %v4600
        %4709 = vmatprep.subr.mxu0 0.0
        %4710 = vmatpush2.msra.mxu0 0.0
        %4711 = vmatprep.subr.mxu0 0.0
        %4712 = vmatpush2.msra.mxu0 0.0
        %4713 = vmatprep.subr.mxu0 0.0
        %4714 = vmatpush2.msra.mxu0 0.0
        %4715 = vmatprep.subr.mxu0 0.0
        %4716 = vmatpush2.msra.mxu0 0.0
        %4717 = vmatprep.subr.mxu0 0.0
        %4718 = vmatpush2.msra.mxu0 0.0
        %4719 = vmatprep.subr.mxu0 0.0
        %4720 = vmatpush2.msra.mxu0 0.0
        %4721 = vmatprep.subr.mxu0 0.0
        %4722 = vmatpush2.msra.mxu0 0.0
        %4723 = vmatprep.subr.mxu0 0.0
        %4724 = vmatpush2.msra.mxu0 0.0
        %4725 = vmatprep.subr.mxu0 0.0
        %4726 = vmatpush2.msra.mxu0 0.0
        %4727 = vmatprep.subr.mxu0 0.0
        %4728 = vmatpush2.msra.mxu0 0.0
        %4729 = vmatprep.subr.mxu0 0.0
        %4730 = vmatpush2.msra.mxu0 0.0
        %4731 = vmatprep.subr.mxu0 0.0
        %4732 = vmatpush2.msra.mxu0 0.0
        %4733 = vmatprep.subr.mxu0 0.0
        %4734 = vmatpush2.msra.mxu0 0.0
        %4735 = vmatprep.subr.mxu0 0.0
        %4736 = vmatpush2.msra.mxu0 0.0
        %4737 = vmatprep.subr.mxu0 0.0
        %4738 = vmatpush2.msra.mxu0 0.0
        %4739 = vmatprep.subr.mxu0 0.0
        %4740 = vmatpush2.msra.mxu0 0.0
        %4741 = vmatprep.mubr.f32.mxu0 0.0
        %4742 = vmatmul.mubr.f32.gmra.mxu0 %v4618
        %v4743 = vpop.f32.mrf.mxu0
        %v4744 = vadd.f32 %v4614, %v4743
        %v4745 = vpop.f32.mrf.mxu0
        %4746 = vmatprep.mubr.f32.mxu0 0.0
        %4747 = vmatmul.mubr.f32.gmra.mxu0 %v4621
        %v4748 = vpop.f32.mrf.mxu0
        %v4749 = vadd.f32 %v4614, %v4748
        %v4750 = vpop.f32.mrf.mxu0
        %4751 = vmatprep.mubr.f32.mxu0 0.0
        %4752 = vmatmul.mubr.f32.gmra.mxu0 %v4624
        %v4753 = vpop.f32.mrf.mxu0
        %v4754 = vadd.f32 %v4614, %v4753
        %v4755 = vpop.f32.mrf.mxu0
        %4756 = vmatprep.mubr.f32.mxu0 0.0
        %4757 = vmatmul.mubr.f32.gmra.mxu0 %v4627
        %v4758 = vpop.f32.mrf.mxu0
        %v4759 = vadd.f32 %v4614, %v4758
        %v4760 = vpop.f32.mrf.mxu0
        %4761 = vmatprep.mubr.f32.mxu0 0.0
        %4762 = vmatmul.mubr.f32.gmra.mxu0 %v4630
        %v4763 = vpop.f32.mrf.mxu0
        %v4764 = vadd.f32 %v4614, %v4763
        %v4765 = vpop.f32.mrf.mxu0
        %4766 = vmatprep.mubr.f32.mxu0 0.0
        %4767 = vmatmul.mubr.f32.gmra.mxu0 %v4633
        %v4768 = vpop.f32.mrf.mxu0
        %v4769 = vadd.f32 %v4614, %v4768
        %v4770 = vpop.f32.mrf.mxu0
        %4771 = vmatprep.mubr.f32.mxu0 0.0
        %4772 = vmatmul.mubr.f32.gmra.mxu0 %v4636
        %v4773 = vpop.f32.mrf.mxu0
        %v4774 = vadd.f32 %v4614, %v4773
        %v4775 = vpop.f32.mrf.mxu0
        %4776 = vmatprep.mubr.f32.mxu0 0.0
        %4777 = vmatmul.mubr.f32.gmra.mxu0 %v4639
        %v4778 = vpop.f32.mrf.mxu0
        %v4779 = vadd.f32 %v4614, %v4778
        %v4780 = vpop.f32.mrf.mxu0
        %4781 = vmatprep.mubr.f32.mxu0 0.0
        %4782 = vmatmul.mubr.f32.gmra.mxu0 %v4642
        %v4783 = vpop.f32.mrf.mxu0
        %v4784 = vadd.f32 %v4614, %v4783
        %v4785 = vpop.f32.mrf.mxu0
        %4786 = vmatprep.mubr.f32.mxu0 0.0
        %4787 = vmatmul.mubr.f32.gmra.mxu0 %v4645
        %v4788 = vpop.f32.mrf.mxu0
        %v4789 = vadd.f32 %v4614, %v4788
        %v4790 = vpop.f32.mrf.mxu0
        %4791 = vmatprep.mubr.f32.mxu0 0.0
        %4792 = vmatmul.mubr.f32.gmra.mxu0 %v4648
        %v4793 = vpop.f32.mrf.mxu0
        %v4794 = vadd.f32 %v4614, %v4793
        %v4795 = vpop.f32.mrf.mxu0
        %4796 = vmatprep.mubr.f32.mxu0 0.0
        %4797 = vmatmul.mubr.f32.gmra.mxu0 %v4651
        %v4798 = vpop.f32.mrf.mxu0
        %v4799 = vadd.f32 %v4614, %v4798
        %v4800 = vpop.f32.mrf.mxu0
        %4801 = vmatprep.mubr.f32.mxu0 0.0
        %4802 = vmatmul.mubr.f32.gmra.mxu0 %v4654
        %v4803 = vpop.f32.mrf.mxu0
        %v4804 = vadd.f32 %v4614, %v4803
        %v4805 = vpop.f32.mrf.mxu0
        %4806 = vmatprep.mubr.f32.mxu0 0.0
        %4807 = vmatmul.mubr.f32.gmra.mxu0 %v4657
        %v4808 = vpop.f32.mrf.mxu0
        %v4809 = vadd.f32 %v4614, %v4808
        %v4810 = vpop.f32.mrf.mxu0
        %4811 = vmatprep.mubr.f32.mxu0 0.0
        %4812 = vmatmul.mubr.f32.gmra.mxu0 %v4660
        %v4813 = vpop.f32.mrf.mxu0
        %v4814 = vadd.f32 %v4614, %v4813
        %v4815 = vpop.f32.mrf.mxu0
        %4816 = vmatprep.mubr.f32.mxu0 0.0
        %4817 = vmatmul.mubr.f32.gmra.mxu0 %v4663
        %v4818 = vpop.f32.mrf.mxu0
        %v4819 = vadd.f32 %v4614, %v4818
        %v4820 = vpop.f32.mrf.mxu0
        %4821 = vmatprep.mubr.f32.mxu0 0.0
        %4822 = vmatmul.mubr.f32.gmra.mxu0 %v4666
        %v4823 = vpop.f32.mrf.mxu0
        %v4824 = vadd.f32 %v4614, %v4823
        %v4825 = vpop.f32.mrf.mxu0
        %4826 = vmatprep.mubr.f32.mxu0 0.0
        %4827 = vmatmul.mubr.f32.gmra.mxu0 %v4669
        %v4828 = vpop.f32.mrf.mxu0
        %v4829 = vadd.f32 %v4614, %v4828
        %v4830 = vpop.f32.mrf.mxu0
        %4831 = vmatprep.mubr.f32.mxu0 0.0
        %4832 = vmatmul.mubr.f32.gmra.mxu0 %v4672
        %v4833 = vpop.f32.mrf.mxu0
        %v4834 = vadd.f32 %v4614, %v4833
        %v4835 = vpop.f32.mrf.mxu0
        %4836 = vmatprep.mubr.f32.mxu0 0.0
        %4837 = vmatmul.mubr.f32.gmra.mxu0 %v4675
        %v4838 = vpop.f32.mrf.mxu0
        %v4839 = vadd.f32 %v4614, %v4838
        %v4840 = vpop.f32.mrf.mxu0
        %4841 = vdwg.mxu0
        %v4842 = vmax.f32 %v4744, 0.0
        %v4843 = vmax.f32 %v4749, 0.0
        %v4844 = vmax.f32 %v4754, 0.0
        %v4845 = vmax.f32 %v4759, 0.0
        %v4846 = vmax.f32 %v4764, 0.0
        %v4847 = vmax.f32 %v4769, 0.0
        %v4848 = vmax.f32 %v4774, 0.0
        %v4849 = vmax.f32 %v4779, 0.0
        %v4850 = vmax.f32 %v4784, 0.0
        %v4851 = vmax.f32 %v4789, 0.0
        %v4852 = vmax.f32 %v4794, 0.0
        %v4853 = vmax.f32 %v4799, 0.0
        %v4854 = vmax.f32 %v4804, 0.0
        %v4855 = vmax.f32 %v4809, 0.0
        %v4856 = vmax.f32 %v4814, 0.0
        %v4857 = vmax.f32 %v4819, 0.0
        %v4858 = vmax.f32 %v4824, 0.0
        %v4859 = vmax.f32 %v4829, 0.0
        %v4860 = vmax.f32 %v4834, 0.0
        %v4861 = vmax.f32 %v4839, 0.0
        %v4876 = vrot.slane %v4842, 1
        %v4877 = vrot.slane %v4843, 1
        %v4878 = vsel %vm3852, %v4876, %v4877
        %v4879 = vrot.slane %v4844, 1
        %v4880 = vsel %vm3852, %v4877, %v4879
        %v4881 = vrot.slane %v4846, 1
        %v4882 = vrot.slane %v4847, 1
        %v4883 = vsel %vm3852, %v4881, %v4882
        %v4884 = vrot.slane %v4848, 1
        %v4885 = vsel %vm3852, %v4882, %v4884
        %v4886 = vrot.slane %v4850, 1
        %v4887 = vrot.slane %v4851, 1
        %v4888 = vsel %vm3852, %v4886, %v4887
        %v4889 = vrot.slane %v4852, 1
        %v4890 = vsel %vm3852, %v4887, %v4889
        %v4891 = vrot.slane %v4854, 1
        %v4892 = vrot.slane %v4855, 1
        %v4893 = vsel %vm3852, %v4891, %v4892
        %v4894 = vrot.slane %v4856, 1
        %v4895 = vsel %vm3852, %v4892, %v4894
        %v4896 = vrot.slane %v4858, 1
        %v4897 = vrot.slane %v4859, 1
        %v4898 = vsel %vm3852, %v4896, %v4897
        %v4909 = vmax.f32 %v4842, %v4878
        %v4910 = vmax.f32 %v4843, %v4880
        %v4911 = vmax.f32 %v4846, %v4883
        %v4912 = vmax.f32 %v4847, %v4885
        %v4913 = vmax.f32 %v4850, %v4888
        %v4914 = vmax.f32 %v4851, %v4890
        %v4915 = vmax.f32 %v4854, %v4893
        %v4916 = vmax.f32 %v4855, %v4895
        %v4917 = vmax.f32 %v4858, %v4898
        %v4918 = vmax.f32 %v4859, %v4897
        %v4925 = vrot.slane %v4845, 1
        %v4926 = vsel %vm3852, %v4879, %v4925
        %v4927 = vsel %vm3852, %v4925, %v4881
        %v4928 = vrot.slane %v4849, 1
        %v4929 = vsel %vm3852, %v4884, %v4928
        %v4930 = vsel %vm3852, %v4928, %v4886
        %v4931 = vrot.slane %v4853, 1
        %v4932 = vsel %vm3852, %v4889, %v4931
        %v4933 = vsel %vm3852, %v4931, %v4891
        %v4934 = vrot.slane %v4857, 1
        %v4935 = vsel %vm3852, %v4894, %v4934
        %v4936 = vsel %vm3852, %v4934, %v4896
        %v4937 = vrot.slane %v4860, 1
        %v4938 = vrot.slane %v4861, 1
        %v4939 = vsel %vm3852, %v4937, %v4938
        %v4950 = vmax.f32 %v4844, %v4926
        %v4951 = vmax.f32 %v4845, %v4927
        %v4952 = vmax.f32 %v4848, %v4929
        %v4953 = vmax.f32 %v4849, %v4930
        %v4954 = vmax.f32 %v4852, %v4932
        %v4955 = vmax.f32 %v4853, %v4933
        %v4956 = vmax.f32 %v4856, %v4935
        %v4957 = vmax.f32 %v4857, %v4936
        %v4958 = vmax.f32 %v4860, %v4939
        %v4959 = vmax.f32 %v4861, %v4938
        %v4960 = vmax.f32 %v4909, %v4950
        %v4961 = vmax.f32 %v4910, %v4951
        %v4962 = vmax.f32 %v4911, %v4952
        %v4963 = vmax.f32 %v4912, %v4953
        %v4964 = vmax.f32 %v4913, %v4954
        %v4965 = vmax.f32 %v4914, %v4955
        %v4966 = vmax.f32 %v4915, %v4956
        %v4967 = vmax.f32 %v4916, %v4957
        %v4968 = vmax.f32 %v4917, %v4958
        %v4969 = vmax.f32 %v4918, %v4959
        %v4971 = vrot.slane %v4960, 2
        %4972 = vrot.lane.b32.xlu0 %v4971, 16
        %v4973 = vpop.permute.xlu0 %4972
        %v4975 = vrot.slane %v4960, 4
        %4976 = vrot.lane.b32.xlu0 %v4975, 32
        %v4977 = vpop.permute.xlu0 %4976
        %v4979 = vrot.slane %v4960, 6
        %4980 = vrot.lane.b32.xlu0 %v4979, 48
        %v4981 = vpop.permute.xlu0 %4980
        %4984 = vrot.lane.b32.xlu0 %v4961, 64
        %v4985 = vpop.permute.xlu0 %4984
        %4988 = vrot.lane.b32.xlu0 %v4962, 80
        %v4989 = vpop.permute.xlu0 %4988
        %v4991 = vrot.slane %v4962, 2
        %4992 = vrot.lane.b32.xlu0 %v4991, 96
        %v4993 = vpop.permute.xlu0 %4992
        %v4995 = vrot.slane %v4962, 4
        %4996 = vrot.lane.b32.xlu0 %v4995, 112
        %v4997 = vpop.permute.xlu0 %4996
        %v4999 = vrot.slane %v4962, 6
        %5002 = vrot.lane.b32.xlu0 %v4963, 16
        %v5003 = vpop.permute.xlu0 %5002
        %5006 = vrot.lane.b32.xlu0 %v4964, 32
        %v5007 = vpop.permute.xlu0 %5006
        %v5009 = vrot.slane %v4964, 2
        %5010 = vrot.lane.b32.xlu0 %v5009, 48
        %v5011 = vpop.permute.xlu0 %5010
        %v5013 = vrot.slane %v4964, 4
        %5014 = vrot.lane.b32.xlu0 %v5013, 64
        %v5015 = vpop.permute.xlu0 %5014
        %v5017 = vrot.slane %v4964, 6
        %5018 = vrot.lane.b32.xlu0 %v5017, 80
        %v5019 = vpop.permute.xlu0 %5018
        %5022 = vrot.lane.b32.xlu0 %v4965, 96
        %v5023 = vpop.permute.xlu0 %5022
        %5026 = vrot.lane.b32.xlu0 %v4966, 112
        %v5027 = vpop.permute.xlu0 %5026
        %v5029 = vsel %vm4453, %v4960, %v4973
        %v5030 = vsel %vm4495, %v5029, %v4977
        %v5031 = vsel %vm4537, %v5030, %v4981
        %v5032 = vsel %vm4579, %v5031, %v4985
        %vm5033 = vcmask 654336
        %v5034 = vsel %vm5033, %v5032, %v4989
        %vm5035 = vcmask 785408
        %v5036 = vsel %vm5035, %v5034, %v4993
        %vm5037 = vcmask 916480
        %v5038 = vsel %vm5037, %v5036, %v4997
        %v5039 = vsel %vm4453, %v4999, %v5003
        %v5040 = vsel %vm4495, %v5039, %v5007
        %v5041 = vsel %vm4537, %v5040, %v5011
        %v5042 = vsel %vm4579, %v5041, %v5015
        %v5043 = vsel %vm5033, %v5042, %v5019
        %v5044 = vsel %vm5035, %v5043, %v5023
        %v5045 = vsel %vm5037, %v5044, %v5027
        %v5046 = vrot.slane %v4966, 2
        %5047 = vrot.lane.b32.xlu0 %v5046, 16
        %v5048 = vpop.permute.xlu0 %5047
        %v5050 = vrot.slane %v4966, 4
        %5051 = vrot.lane.b32.xlu0 %v5050, 32
        %v5052 = vpop.permute.xlu0 %5051
        %v5055 = vrot.slane %v4967, 6
        %5056 = vrot.lane.b32.xlu0 %v5055, 48
        %v5057 = vpop.permute.xlu0 %5056
        %v5060 = vrot.slane %v4968, 6
        %5061 = vrot.lane.b32.xlu0 %v5060, 64
        %v5062 = vpop.permute.xlu0 %5061
        %5064 = vrot.lane.b32.xlu0 %v4968, 80
        %v5065 = vpop.permute.xlu0 %5064
        %v5067 = vrot.slane %v4968, 2
        %5068 = vrot.lane.b32.xlu0 %v5067, 96
        %v5069 = vpop.permute.xlu0 %5068
        %v5071 = vrot.slane %v4968, 4
        %5072 = vrot.lane.b32.xlu0 %v5071, 112
        %v5073 = vpop.permute.xlu0 %5072
        %v5076 = vrot.slane %v4969, 6
        %v5077 = vsel %vm4453, %v4966, %v5048
        %v5078 = vsel %vm4495, %v5077, %v5052
        %v5079 = vsel %vm4537, %v5078, %v5057
        %v5080 = vsel %vm4579, %v5079, %v5062
        %v5081 = vsel %vm5033, %v5080, %v5065
        %v5082 = vsel %vm5035, %v5081, %v5069
        %v5083 = vsel %vm5037, %v5082, %v5073
        %v5085 = vrot.slane %v5083, 2
        %v5086 = vrot.slane %v5076, 2
        %v5088 = vld [vmem:[%s5] sm:$0xff]
        %v5089 = vld [vmem:[%s5 + $0x8] sm:$0xff]
        %v5090 = vld [vmem:[%s5 + $0x10] sm:$0xff]
        %v5091 = vld [vmem:[%s5 + $0x18] sm:$0xff]
        %v5092 = vld [vmem:[%s5 + $0x20] sm:$0xff]
        %v5093 = vld [vmem:[%s5 + $0x28] sm:$0xff]
        %v5094 = vld [vmem:[%s5 + $0x30] sm:$0xff]
        %v5095 = vld [vmem:[%s5 + $0x38] sm:$0xff]
        %v5096 = vld [vmem:[%s5 + $0x40] sm:$0xff]
        %v5097 = vld [vmem:[%s5 + $0x48] sm:$0xff]
        %v5098 = vld [vmem:[%s5 + $0x50] sm:$0xff]
        %v5099 = vld [vmem:[%s5 + $0x58] sm:$0xff]
        %v5100 = vld [vmem:[%s5 + $0x60] sm:$0xff]
        %v5101 = vld [vmem:[%s5 + $0x68] sm:$0xff]
        %v5102 = vld [vmem:[%s5 + $0x70] sm:$0xff]
        %v5103 = vld [vmem:[%s5 + $0x78] sm:$0xff]
        %v5104 = vld [vmem:[%s5 + $0x80] sm:$0xff]
        %v5105 = vld [vmem:[%s5 + $0x88] sm:$0xff]
        %v5106 = vld [vmem:[%s5 + $0x90] sm:$0xff]
        %v5107 = vld [vmem:[%s5 + $0x98] sm:$0xff]
        %v5108 = vld [vmem:[%s5 + $0xa0] sm:$0xff]
        %v5109 = vld [vmem:[%s5 + $0xa8] sm:$0xff]
        %v5110 = vld [vmem:[%s5 + $0xb0] sm:$0xff]
        %v5111 = vld [vmem:[%s5 + $0xb8] sm:$0xff]
        %v5112 = vld [vmem:[%s5 + $0xc0] sm:$0xff]
        %v5113 = vld [vmem:[%s5 + $0xc8] sm:$0xff]
        %v5114 = vld [vmem:[%s5 + $0xd0] sm:$0xff]
        %v5115 = vld [vmem:[%s5 + $0xd8] sm:$0xff]
        %v5116 = vld [vmem:[%s5 + $0xe0] sm:$0xff]
        %v5117 = vld [vmem:[%s5 + $0xe8] sm:$0xff]
        %v5118 = vld [vmem:[%s5 + $0xf0] sm:$0xff]
        %v5119 = vld [vmem:[%s5 + $0xf8] sm:$0xff]
        %v5120 = vld [vmem:[%s5 + $0x100] sm:$0xff]
        %v5121 = vld [vmem:[%s5 + $0x108] sm:$0xff]
        %v5122 = vld [vmem:[%s5 + $0x110] sm:$0xff]
        %v5123 = vld [vmem:[%s5 + $0x118] sm:$0xff]
        %v5124 = vld [vmem:[%s5 + $0x120] sm:$0xff]
        %v5125 = vld [vmem:[%s5 + $0x128] sm:$0xff]
        %v5126 = vld [vmem:[%s5 + $0x130] sm:$0xff]
        %v5127 = vld [vmem:[%s5 + $0x138] sm:$0xff]
        %v5128 = vld [vmem:[%s5 + $0x140] sm:$0xff]
        %v5129 = vld [vmem:[%s5 + $0x148] sm:$0xff]
        %v5130 = vld [vmem:[%s5 + $0x150] sm:$0xff]
        %v5131 = vld [vmem:[%s5 + $0x158] sm:$0xff]
        %v5132 = vld [vmem:[%s5 + $0x160] sm:$0xff]
        %v5133 = vld [vmem:[%s5 + $0x168] sm:$0xff]
        %v5134 = vld [vmem:[%s5 + $0x170] sm:$0xff]
        %v5135 = vld [vmem:[%s5 + $0x178] sm:$0xff]
        %v5136 = vld [vmem:[%s5 + $0x180] sm:$0xff]
        %v5137 = vld [vmem:[%s5 + $0x188] sm:$0xff]
        %v5138 = vld [vmem:[%s6] sm:$0x1]
        %v5139 = vsel %vm4453, %v5086, 0
        %5141 = vmatprep.subr.mxu0 0.0
        %5142 = vmatpush1.msra.mxu0 %v5103
        %5143 = vmatprep.subr.mxu0 0.0
        %5144 = vmatpush1.msra.mxu0 %v5102
        %5145 = vmatprep.subr.mxu0 0.0
        %5146 = vmatpush1.msra.mxu0 %v5101
        %5147 = vmatprep.subr.mxu0 0.0
        %5148 = vmatpush1.msra.mxu0 %v5100
        %5149 = vmatprep.subr.mxu0 0.0
        %5150 = vmatpush1.msra.mxu0 %v5099
        %5151 = vmatprep.subr.mxu0 0.0
        %5152 = vmatpush1.msra.mxu0 %v5098
        %5153 = vmatprep.subr.mxu0 0.0
        %5154 = vmatpush1.msra.mxu0 %v5097
        %5155 = vmatprep.subr.mxu0 0.0
        %5156 = vmatpush1.msra.mxu0 %v5096
        %5157 = vmatprep.subr.mxu0 0.0
        %5158 = vmatpush1.msra.mxu0 %v5095
        %5159 = vmatprep.subr.mxu0 0.0
        %5160 = vmatpush1.msra.mxu0 %v5094
        %5161 = vmatprep.subr.mxu0 0.0
        %5162 = vmatpush1.msra.mxu0 %v5093
        %5163 = vmatprep.subr.mxu0 0.0
        %5164 = vmatpush1.msra.mxu0 %v5092
        %5165 = vmatprep.subr.mxu0 0.0
        %5166 = vmatpush1.msra.mxu0 %v5091
        %5167 = vmatprep.subr.mxu0 0.0
        %5168 = vmatpush1.msra.mxu0 %v5090
        %5169 = vmatprep.subr.mxu0 0.0
        %5170 = vmatpush1.msra.mxu0 %v5089
        %5171 = vmatprep.subr.mxu0 0.0
        %5172 = vmatpush1.msra.mxu0 %v5088
        %5173 = vmatprep.subr.mxu0 0.0
        %5174 = vmatpush2.msra.mxu0 %v5119
        %5175 = vmatprep.subr.mxu0 0.0
        %5176 = vmatpush2.msra.mxu0 %v5118
        %5177 = vmatprep.subr.mxu0 0.0
        %5178 = vmatpush2.msra.mxu0 %v5117
        %5179 = vmatprep.subr.mxu0 0.0
        %5180 = vmatpush2.msra.mxu0 %v5116
        %5181 = vmatprep.subr.mxu0 0.0
        %5182 = vmatpush2.msra.mxu0 %v5115
        %5183 = vmatprep.subr.mxu0 0.0
        %5184 = vmatpush2.msra.mxu0 %v5114
        %5185 = vmatprep.subr.mxu0 0.0
        %5186 = vmatpush2.msra.mxu0 %v5113
        %5187 = vmatprep.subr.mxu0 0.0
        %5188 = vmatpush2.msra.mxu0 %v5112
        %5189 = vmatprep.subr.mxu0 0.0
        %5190 = vmatpush2.msra.mxu0 %v5111
        %5191 = vmatprep.subr.mxu0 0.0
        %5192 = vmatpush2.msra.mxu0 %v5110
        %5193 = vmatprep.subr.mxu0 0.0
        %5194 = vmatpush2.msra.mxu0 %v5109
        %5195 = vmatprep.subr.mxu0 0.0
        %5196 = vmatpush2.msra.mxu0 %v5108
        %5197 = vmatprep.subr.mxu0 0.0
        %5198 = vmatpush2.msra.mxu0 %v5107
        %5199 = vmatprep.subr.mxu0 0.0
        %5200 = vmatpush2.msra.mxu0 %v5106
        %5201 = vmatprep.subr.mxu0 0.0
        %5202 = vmatpush2.msra.mxu0 %v5105
        %5203 = vmatprep.subr.mxu0 0.0
        %5204 = vmatpush2.msra.mxu0 %v5104
        %5205 = vmatprep.mubr.f32.mxu0 %v5045
        %5206 = vmatmul.mubr.f32.gmra.mxu0 %v5038
        %v5207 = vpop.f32.mrf.mxu0
        %v5208 = vadd.f32 %v5138, %v5207
        %v5209 = vpop.f32.mrf.mxu0
        %5210 = vdwg.mxu0
        %5211 = vmatprep.subr.mxu0 0.0
        %5212 = vmatpush1.msra.mxu0 %v5135
        %5213 = vmatprep.subr.mxu0 0.0
        %5214 = vmatpush1.msra.mxu0 %v5134
        %5215 = vmatprep.subr.mxu0 0.0
        %5216 = vmatpush1.msra.mxu0 %v5133
        %5217 = vmatprep.subr.mxu0 0.0
        %5218 = vmatpush1.msra.mxu0 %v5132
        %5219 = vmatprep.subr.mxu0 0.0
        %5220 = vmatpush1.msra.mxu0 %v5131
        %5221 = vmatprep.subr.mxu0 0.0
        %5222 = vmatpush1.msra.mxu0 %v5130
        %5223 = vmatprep.subr.mxu0 0.0
        %5224 = vmatpush1.msra.mxu0 %v5129
        %5225 = vmatprep.subr.mxu0 0.0
        %5226 = vmatpush1.msra.mxu0 %v5128
        %5227 = vmatprep.subr.mxu0 0.0
        %5228 = vmatpush1.msra.mxu0 %v5127
        %5229 = vmatprep.subr.mxu0 0.0
        %5230 = vmatpush1.msra.mxu0 %v5126
        %5231 = vmatprep.subr.mxu0 0.0
        %5232 = vmatpush1.msra.mxu0 %v5125
        %5233 = vmatprep.subr.mxu0 0.0
        %5234 = vmatpush1.msra.mxu0 %v5124
        %5235 = vmatprep.subr.mxu0 0.0
        %5236 = vmatpush1.msra.mxu0 %v5123
        %5237 = vmatprep.subr.mxu0 0.0
        %5238 = vmatpush1.msra.mxu0 %v5122
        %5239 = vmatprep.subr.mxu0 0.0
        %5240 = vmatpush1.msra.mxu0 %v5121
        %5241 = vmatprep.subr.mxu0 0.0
        %5242 = vmatpush1.msra.mxu0 %v5120
        %5243 = vmatprep.subr.mxu0 0.0
        %5244 = vmatpush2.msra.mxu0 0.0
        %5245 = vmatprep.subr.mxu0 0.0
        %5246 = vmatpush2.msra.mxu0 0.0
        %5247 = vmatprep.subr.mxu0 0.0
        %5248 = vmatpush2.msra.mxu0 0.0
        %5249 = vmatprep.subr.mxu0 0.0
        %5250 = vmatpush2.msra.mxu0 0.0
        %5251 = vmatprep.subr.mxu0 0.0
        %5252 = vmatpush2.msra.mxu0 0.0
        %5253 = vmatprep.subr.mxu0 0.0
        %5254 = vmatpush2.msra.mxu0 0.0
        %5255 = vmatprep.subr.mxu0 0.0
        %5256 = vmatpush2.msra.mxu0 0.0
        %5257 = vmatprep.subr.mxu0 0.0
        %5258 = vmatpush2.msra.mxu0 0.0
        %5259 = vmatprep.subr.mxu0 0.0
        %5260 = vmatpush2.msra.mxu0 0.0
        %5261 = vmatprep.subr.mxu0 0.0
        %5262 = vmatpush2.msra.mxu0 0.0
        %5263 = vmatprep.subr.mxu0 0.0
        %5264 = vmatpush2.msra.mxu0 0.0
        %5265 = vmatprep.subr.mxu0 0.0
        %5266 = vmatpush2.msra.mxu0 0.0
        %5267 = vmatprep.subr.mxu0 0.0
        %5268 = vmatpush2.msra.mxu0 0.0
        %5269 = vmatprep.subr.mxu0 0.0
        %5270 = vmatpush2.msra.mxu0 0.0
        %5271 = vmatprep.subr.mxu0 0.0
        %5272 = vmatpush2.msra.mxu0 %v5137
        %5273 = vmatprep.subr.mxu0 0.0
        %5274 = vmatpush2.msra.mxu0 %v5136
        %5275 = vmatprep.mubr.f32.mxu0 %v5139
        %5276 = vmatmul.mubr.f32.gmra.mxu0 %v5085
        %v5277 = vpop.f32.mrf.mxu0
        %v5278 = vadd.f32 %v5208, %v5277
        %v5279 = vpop.f32.mrf.mxu0
        %5280 = vdwg.mxu0
        %v5281 = vmax.f32 %v5278, 0.0
        %v5282 = vld [vmem:[%s7] sm:$0xff]
        %v5283 = vld [vmem:[%s7 + $0x8] sm:$0xff]
        %v5284 = vld [vmem:[%s7 + $0x10] sm:$0xff]
        %v5285 = vld [vmem:[%s7 + $0x18] sm:$0xff]
        %v5286 = vld [vmem:[%s7 + $0x20] sm:$0xff]
        %v5287 = vld [vmem:[%s7 + $0x28] sm:$0xff]
        %v5288 = vld [vmem:[%s7 + $0x30] sm:$0xff]
        %v5289 = vld [vmem:[%s7 + $0x38] sm:$0xff]
        %v5290 = vld [vmem:[%s7 + $0x40] sm:$0xff]
        %v5291 = vld [vmem:[%s7 + $0x48] sm:$0xff]
        %v5292 = vld [vmem:[%s7 + $0x50] sm:$0xff]
        %v5293 = vld [vmem:[%s7 + $0x58] sm:$0xff]
        %v5294 = vld [vmem:[%s7 + $0x60] sm:$0xff]
        %v5295 = vld [vmem:[%s7 + $0x68] sm:$0xff]
        %v5296 = vld [vmem:[%s7 + $0x70] sm:$0xff]
        %v5297 = vld [vmem:[%s7 + $0x78] sm:$0xff]
        %v5298 = vld [vmem:[%s8] sm:$0x1]
        %5299 = vmatprep.subr.mxu0 0.0
        %5300 = vmatpush1.msra.mxu0 %v5297
        %5301 = vmatprep.subr.mxu0 0.0
        %5302 = vmatpush1.msra.mxu0 %v5296
        %5303 = vmatprep.subr.mxu0 0.0
        %5304 = vmatpush1.msra.mxu0 %v5295
        %5305 = vmatprep.subr.mxu0 0.0
        %5306 = vmatpush1.msra.mxu0 %v5294
        %5307 = vmatprep.subr.mxu0 0.0
        %5308 = vmatpush1.msra.mxu0 %v5293
        %5309 = vmatprep.subr.mxu0 0.0
        %5310 = vmatpush1.msra.mxu0 %v5292
        %5311 = vmatprep.subr.mxu0 0.0
        %5312 = vmatpush1.msra.mxu0 %v5291
        %5313 = vmatprep.subr.mxu0 0.0
        %5314 = vmatpush1.msra.mxu0 %v5290
        %5315 = vmatprep.subr.mxu0 0.0
        %5316 = vmatpush1.msra.mxu0 %v5289
        %5317 = vmatprep.subr.mxu0 0.0
        %5318 = vmatpush1.msra.mxu0 %v5288
        %5319 = vmatprep.subr.mxu0 0.0
        %5320 = vmatpush1.msra.mxu0 %v5287
        %5321 = vmatprep.subr.mxu0 0.0
        %5322 = vmatpush1.msra.mxu0 %v5286
        %5323 = vmatprep.subr.mxu0 0.0
        %5324 = vmatpush1.msra.mxu0 %v5285
        %5325 = vmatprep.subr.mxu0 0.0
        %5326 = vmatpush1.msra.mxu0 %v5284
        %5327 = vmatprep.subr.mxu0 0.0
        %5328 = vmatpush1.msra.mxu0 %v5283
        %5329 = vmatprep.subr.mxu0 0.0
        %5330 = vmatpush1.msra.mxu0 %v5282
        %5331 = vmatprep.subr.mxu0 0.0
        %5332 = vmatpush2.msra.mxu0 0.0
        %5333 = vmatprep.subr.mxu0 0.0
        %5334 = vmatpush2.msra.mxu0 0.0
        %5335 = vmatprep.subr.mxu0 0.0
        %5336 = vmatpush2.msra.mxu0 0.0
        %5337 = vmatprep.subr.mxu0 0.0
        %5338 = vmatpush2.msra.mxu0 0.0
        %5339 = vmatprep.subr.mxu0 0.0
        %5340 = vmatpush2.msra.mxu0 0.0
        %5341 = vmatprep.subr.mxu0 0.0
        %5342 = vmatpush2.msra.mxu0 0.0
        %5343 = vmatprep.subr.mxu0 0.0
        %5344 = vmatpush2.msra.mxu0 0.0
        %5345 = vmatprep.subr.mxu0 0.0
        %5346 = vmatpush2.msra.mxu0 0.0
        %5347 = vmatprep.subr.mxu0 0.0
        %5348 = vmatpush2.msra.mxu0 0.0
        %5349 = vmatprep.subr.mxu0 0.0
        %5350 = vmatpush2.msra.mxu0 0.0
        %5351 = vmatprep.subr.mxu0 0.0
        %5352 = vmatpush2.msra.mxu0 0.0
        %5353 = vmatprep.subr.mxu0 0.0
        %5354 = vmatpush2.msra.mxu0 0.0
        %5355 = vmatprep.subr.mxu0 0.0
        %5356 = vmatpush2.msra.mxu0 0.0
        %5357 = vmatprep.subr.mxu0 0.0
        %5358 = vmatpush2.msra.mxu0 0.0
        %5359 = vmatprep.subr.mxu0 0.0
        %5360 = vmatpush2.msra.mxu0 0.0
        %5361 = vmatprep.subr.mxu0 0.0
        %5362 = vmatpush2.msra.mxu0 0.0
        %5363 = vmatprep.mubr.f32.mxu0 0.0
        %5364 = vmatmul.mubr.f32.gmra.mxu0 %v5281
        %v5365 = vpop.f32.mrf.mxu0
        %v5366 = vadd.f32 %v5298, %v5365
        %v5367 = vpop.f32.mrf.mxu0
        %5368 = vdwg.mxu0
        %v5369 = vmax.f32 %v5366, 0.0
        %v5370 = vld [vmem:[%s9] sm:$0xff]
        %v5371 = vld [vmem:[%s9 + $0x8] sm:$0xff]
        %v5372 = vld [vmem:[%s9 + $0x10] sm:$0xff]
        %v5373 = vld [vmem:[%s9 + $0x18] sm:$0xff]
        %v5374 = vld [vmem:[%s9 + $0x20] sm:$0xff]
        %v5375 = vld [vmem:[%s9 + $0x28] sm:$0xff]
        %v5376 = vld [vmem:[%s9 + $0x30] sm:$0xff]
        %v5377 = vld [vmem:[%s9 + $0x38] sm:$0xff]
        %v5378 = vld [vmem:[%s9 + $0x40] sm:$0xff]
        %v5379 = vld [vmem:[%s9 + $0x48] sm:$0xff]
        %v5380 = vld [vmem:[%s9 + $0x50] sm:$0xff]
        %v5381 = vld [vmem:[%s9 + $0x58] sm:$0xff]
        %v5382 = vld [vmem:[%s9 + $0x60] sm:$0xff]
        %v5383 = vld [vmem:[%s9 + $0x68] sm:$0xff]
        %v5384 = vld [vmem:[%s9 + $0x70] sm:$0xff]
        %v5385 = vld [vmem:[%s9 + $0x78] sm:$0xff]
        %v5386 = vld [vmem:[%s10] sm:$0x1]
        %5387 = vmatprep.subr.mxu0 0.0
        %5388 = vmatpush1.msra.mxu0 %v5385
        %5389 = vmatprep.subr.mxu0 0.0
        %5390 = vmatpush1.msra.mxu0 %v5384
        %5391 = vmatprep.subr.mxu0 0.0
        %5392 = vmatpush1.msra.mxu0 %v5383
        %5393 = vmatprep.subr.mxu0 0.0
        %5394 = vmatpush1.msra.mxu0 %v5382
        %5395 = vmatprep.subr.mxu0 0.0
        %5396 = vmatpush1.msra.mxu0 %v5381
        %5397 = vmatprep.subr.mxu0 0.0
        %5398 = vmatpush1.msra.mxu0 %v5380
        %5399 = vmatprep.subr.mxu0 0.0
        %5400 = vmatpush1.msra.mxu0 %v5379
        %5401 = vmatprep.subr.mxu0 0.0
        %5402 = vmatpush1.msra.mxu0 %v5378
        %5403 = vmatprep.subr.mxu0 0.0
        %5404 = vmatpush1.msra.mxu0 %v5377
        %5405 = vmatprep.subr.mxu0 0.0
        %5406 = vmatpush1.msra.mxu0 %v5376
        %5407 = vmatprep.subr.mxu0 0.0
        %5408 = vmatpush1.msra.mxu0 %v5375
        %5409 = vmatprep.subr.mxu0 0.0
        %5410 = vmatpush1.msra.mxu0 %v5374
        %5411 = vmatprep.subr.mxu0 0.0
        %5412 = vmatpush1.msra.mxu0 %v5373
        %5413 = vmatprep.subr.mxu0 0.0
        %5414 = vmatpush1.msra.mxu0 %v5372
        %5415 = vmatprep.subr.mxu0 0.0
        %5416 = vmatpush1.msra.mxu0 %v5371
        %5417 = vmatprep.subr.mxu0 0.0
        %5418 = vmatpush1.msra.mxu0 %v5370
        %5419 = vmatprep.subr.mxu0 0.0
        %5420 = vmatpush2.msra.mxu0 0.0
        %5421 = vmatprep.subr.mxu0 0.0
        %5422 = vmatpush2.msra.mxu0 0.0
        %5423 = vmatprep.subr.mxu0 0.0
        %5424 = vmatpush2.msra.mxu0 0.0
        %5425 = vmatprep.subr.mxu0 0.0
        %5426 = vmatpush2.msra.mxu0 0.0
        %5427 = vmatprep.subr.mxu0 0.0
        %5428 = vmatpush2.msra.mxu0 0.0
        %5429 = vmatprep.subr.mxu0 0.0
        %5430 = vmatpush2.msra.mxu0 0.0
        %5431 = vmatprep.subr.mxu0 0.0
        %5432 = vmatpush2.msra.mxu0 0.0
        %5433 = vmatprep.subr.mxu0 0.0
        %5434 = vmatpush2.msra.mxu0 0.0
        %5435 = vmatprep.subr.mxu0 0.0
        %5436 = vmatpush2.msra.mxu0 0.0
        %5437 = vmatprep.subr.mxu0 0.0
        %5438 = vmatpush2.msra.mxu0 0.0
        %5439 = vmatprep.subr.mxu0 0.0
        %5440 = vmatpush2.msra.mxu0 0.0
        %5441 = vmatprep.subr.mxu0 0.0
        %5442 = vmatpush2.msra.mxu0 0.0
        %5443 = vmatprep.subr.mxu0 0.0
        %5444 = vmatpush2.msra.mxu0 0.0
        %5445 = vmatprep.subr.mxu0 0.0
        %5446 = vmatpush2.msra.mxu0 0.0
        %5447 = vmatprep.subr.mxu0 0.0
        %5448 = vmatpush2.msra.mxu0 0.0
        %5449 = vmatprep.subr.mxu0 0.0
        %5450 = vmatpush2.msra.mxu0 0.0
        %5451 = vmatprep.mubr.f32.mxu0 0.0
        %5452 = vmatmul.mubr.f32.gmra.mxu0 %v5369
        %v5453 = vpop.f32.mrf.mxu0
        %v5454 = vadd.f32 %v5386, %v5453
        %v5455 = vpop.f32.mrf.mxu0
        %5456 = vdwg.mxu0
        %v5457 = vmax.f32 %v5454, 0.0
        %5458 = vst [vmem:[%s379] sm:$0x1] %v5457
        %s5459 = sand.u32 %s269, 1
        %s5460 = scalar_lea.sflag [#allocation3], %s5459
        %s5461 = sand.u32 %s269, 1
        %s5462 = scalar_lea.vmem [#allocation2], %s5461
        // Predicated region
        $region65: #{net_forward.1} parent=63 // pred_check
          %p5463 = pneg %p279
        $region66: #{net_forward.1} parent=63 // pred_check_branch
          %5465 = sbr.rel (%p5463) target = $region68
        $region67: #{net_forward.1} parent=63 // pred_region
          %s5467 = ssub.s32 16, 16
          %5468 = vsyncadd %s5460, %s5467
          %s5469 = smul.addr %s25, 16
          %s5470 = scalar_lea.hbm %s11, %s5469
          %s5472 = sshll.u32 %s5462, 4
          %s5473 = int_to_ptr.vmem [resolvable:$true] %s5472
          %5475 = dma.vmem_to_hbm [thread:$0]  %s5473, 16, %s5470, %s5460
        $region68: #{net_forward.1} parent=63 // pred_fallthru
          _
      $region64: #{net_forward.1} parent=5 // pred_fallthru
        _
      %p5476 = scmp.le.s32.totalorder 2, %s20
      // Predicated region
      $region69: #{net_forward.1} parent=5 // pred_check
        %p5477 = pneg %p5476
      $region70: #{net_forward.1} parent=5 // pred_check_branch
        %5479 = sbr.rel (%p5477) target = $region72
      $region71: #{net_forward.1} parent=5 // pred_region
        %s5480 = ssub.s32 %s20, 2
        // Predicated region
        $region73: #{net_forward.1} parent=71 // pred_check
          %p5481 = pneg %p285
        $region74: #{net_forward.1} parent=71 // pred_check_branch
          %5483 = sbr.rel (%p5481) target = $region76
        $region75: #{net_forward.1} parent=71 // pred_region
          %s5484 = sand.u32 %s270, 1
          %s5485 = scalar_lea.sflag [#allocation3], %s5484
          %s5486 = sand.u32 %s270, 1
          %s5487 = scalar_lea.vmem [#allocation2], %s5486
          %5488 = dma.done %s5485, 16
        $region76: #{net_forward.1} parent=71 // pred_fallthru
          _
      $region72: #{net_forward.1} parent=5 // pred_fallthru
        _
    $region6: #{net_forward.1} parent=1 // loop_footer
      %s24 = sadd.s32 1, %s20
    $region7: #{net_forward.1} parent=1 // loop_footer_branch
      %19 = sbr.rel target = $region3
    $region8: #{net_forward.1} parent=1 // loop_exit
      _
    %5489 = vsyncpa [#allocation3], 1
    %s5490 = scalar_lea.sflag [#allocation3], 1
    %5491 = vsyncpa %s5490, 1

</llo_original>
